<compile_context>
chip_gen: v6e
topology: v6e:2x2x1
jax: 0.10.0
libtpu: 0.0.40
codegen_flags: <defaults>
</compile_context>

<pallas_src>
import jax
import jax.numpy as jnp
from jax import lax
from jax.experimental import pallas as pl
from jax.experimental.pallas import tpu as pltpu

# bf16 MXU inputs, f32 accumulation (set to jnp.float32 to reproduce the
# PyTorch module's f32 numerics exactly, at ~2x the HBM bytes).
MXU_DTYPE = jnp.bfloat16


# ----------------------------------------------------------------------------
# Small helpers
# ----------------------------------------------------------------------------
def _round_up(n, m):
    return ((n + m - 1) // m) * m


def _pick_tile_m(m, max_rows=1024):
    """Row-tile chooser; the caller zero-pads rows up to tile*steps.
    * tiles are multiples of 16 (bf16 sublane packing) and capped at max_rows,
      so a double-buffered (4, tile, 150) bf16 block stays ~1 MiB -- far under
      v7x's 64 MiB VMEM and v5e's 16 MiB default scoped window.
    * for m > 16 we force >= 2 grid steps so the "parallel" M axis can shard
      across v7x's two TensorCores (harmless on single-TC v5e/v6e)."""
    if m <= 16:
        return _round_up(m, 8), 1
    tile = min(max_rows, _round_up((m + 1) // 2, 16))
    steps = (m + tile - 1) // tile
    return tile, steps


_VMEM_LIMIT = 32 * 1024 * 1024  # plenty of headroom on v5e/v6e/v7x for <2 MiB blocks


# ----------------------------------------------------------------------------
# Pallas kernels
# ----------------------------------------------------------------------------
def _conv_relu_pool_kernel(x_ref, w_ref, b_ref, o_ref):
    """x_ref: (4, tm, K) bf16 = the 4 pool-window positions of tm pooled rows.
    o[m, n] = relu(max_d(x[d, m, :] @ w[:, n]) + b[n])  (max/bias/relu commute,
    so the 2x2 maxpool is an elementwise max of 4 MXU results in-register).
    Epilogue (max/bias/relu) is in f32 (v5e VPU has no bf16); only the final
    store casts to bf16."""
    w = w_ref[...]
    acc = jnp.dot(x_ref[0], w, preferred_element_type=jnp.float32)
    for d in range(1, 4):
        acc = jnp.maximum(
            acc, jnp.dot(x_ref[d], w, preferred_element_type=jnp.float32))
    o_ref[...] = jnp.maximum(acc + b_ref[...], 0.0).astype(o_ref.dtype)


def _fc3_kernel(x_ref, w1_ref, b1_ref, w2_ref, b2_ref, w3_ref, b3_ref, o_ref):
    """Fused linear1 -> relu -> linear2 -> relu -> linear3 on a (tm, 400) tile.
    bf16 MXU inputs, f32 accumulation; (tm,120)/(tm,84) intermediates stay in
    registers/VMEM and never touch HBM."""
    h = jnp.dot(x_ref[...], w1_ref[...], preferred_element_type=jnp.float32)
    h = jnp.maximum(h + b1_ref[...], 0.0).astype(w2_ref.dtype)
    h = jnp.dot(h, w2_ref[...], preferred_element_type=jnp.float32)
    h = jnp.maximum(h + b2_ref[...], 0.0).astype(w3_ref.dtype)
    h = jnp.dot(h, w3_ref[...], preferred_element_type=jnp.float32)
    o_ref[...] = (h + b3_ref[...]).astype(o_ref.dtype)


# ----------------------------------------------------------------------------
# Pallas wrappers
# ----------------------------------------------------------------------------
def conv_relu_pool(patches, w, b):
    """patches: (4, M, K) bf16, w: (K, N) bf16, b: (1, N) f32 -> (M, N) bf16."""
    _, M, K = patches.shape
    N = w.shape[1]
    tm, steps = _pick_tile_m(M)
    Mp = tm * steps
    if Mp > M:  # pad rows so the tile divides exactly (padded rows sliced off)
        patches = jnp.pad(patches, ((0, 0), (0, Mp - M), (0, 0)))
    out = pl.pallas_call(
        _conv_relu_pool_kernel,
        out_shape=jax.ShapeDtypeStruct((Mp, N), MXU_DTYPE),
        grid=(steps,),
        in_specs=[
            pl.BlockSpec((4, tm, K), lambda i: (0, i, 0)),
            pl.BlockSpec(w.shape, lambda i: (0, 0)),
            pl.BlockSpec(b.shape, lambda i: (0, 0)),
        ],
        out_specs=pl.BlockSpec((tm, N), lambda i: (i, 0)),
        compiler_params=pltpu.CompilerParams(
            dimension_semantics=("parallel",),
            vmem_limit_bytes=_VMEM_LIMIT),
    )(patches, w, b)
    return out[:M]


def fc_stack(flat, params):
    """flat: (B, 400) bf16 -> (B, 10) f32; all three linears in one kernel."""
    B, K = flat.shape
    tm, steps = _pick_tile_m(B)
    Bp = tm * steps
    if Bp > B:
        flat = jnp.pad(flat, ((0, Bp - B), (0, 0)))
    weights = [params[k] for k in ("wl1", "bl1", "wl2", "bl2", "wl3", "bl3")]
    n_out = params["wl3"].shape[1]
    out = pl.pallas_call(
        _fc3_kernel,
        out_shape=jax.ShapeDtypeStruct((Bp, n_out), jnp.float32),
        grid=(steps,),
        in_specs=[pl.BlockSpec((tm, K), lambda i: (i, 0))]
                + [pl.BlockSpec(a.shape, lambda i: (0, 0)) for a in weights],
        out_specs=pl.BlockSpec((tm, n_out), lambda i: (i, 0)),
        compiler_params=pltpu.CompilerParams(
            dimension_semantics=("parallel",),
            vmem_limit_bytes=_VMEM_LIMIT),
    )(flat, *weights)
    return out[:B]


# ----------------------------------------------------------------------------
# JAX glue: im2col with the 2x2 pooling window folded into a leading axis.
# Column order (c, i, j) matches the torch (Cout, Cin, KH, KW) weight flatten.
# K is left at its true size (75 / 150): no HBM-side zero padding.
# ----------------------------------------------------------------------------
def pooled_im2col(x_nhwc, k):
    B, H, W, C = x_nhwc.shape
    OH, OW = H - k + 1, W - k + 1
    Hp, Wp = OH // 2, OW // 2
    K = C * k * k
    cols = []
    for c in range(C):
        for i in range(k):
            for j in range(k):
                cols.append(x_nhwc[:, i:i + OH, j:j + OW, c])
    p = jnp.stack(cols, axis=-1)                              # (B, OH, OW, K)
    p = p.reshape(B, Hp, 2, Wp, 2, K)
    p = jnp.transpose(p, (2, 4, 0, 1, 3, 5))                  # (di, dj, B, Hp, Wp, K)
    return p.reshape(4, B * Hp * Wp, K)                       # (4, M_pooled, K)


# ----------------------------------------------------------------------------
# Parameters (deterministic init, same layouts/fan-in as the PyTorch module).
# Returns (pallas_params, reference_params_in_torch_layout).
# ----------------------------------------------------------------------------
def init_params(key):
    def uniform(key, shape, fan_in):
        bound = 1.0 / jnp.sqrt(jnp.float32(fan_in))
        return jax.random.uniform(key, shape, jnp.float32, -bound, bound)

    ks = jax.random.split(key, 10)
    w1 = uniform(ks[0], (6, 3, 5, 5), 75)
    b1 = uniform(ks[1], (6,), 75)
    w2 = uniform(ks[2], (16, 6, 5, 5), 150)
    b2 = uniform(ks[3], (16,), 150)
    wl1 = uniform(ks[4], (120, 400), 400)
    bl1 = uniform(ks[5], (120,), 400)
    wl2 = uniform(ks[6], (84, 120), 120)
    bl2 = uniform(ks[7], (84,), 120)
    wl3 = uniform(ks[8], (10, 84), 84)
    bl3 = uniform(ks[9], (10,), 84)

    ref = dict(w1=w1, b1=b1, w2=w2, b2=b2, wl1=wl1, bl1=bl1,
               wl2=wl2, bl2=bl2, wl3=wl3, bl3=bl3)

    # Conv weights in (K, Cout) im2col layout; conv1's 6 output lanes padded to
    # 8 only (narrow bf16 intermediate store, sliced back to 6 in the wrapper).
    w1_p = jnp.pad(w1.reshape(6, 75).T, ((0, 0), (0, 2)))      # (75, 8)
    b1_p = jnp.pad(b1, (0, 2)).reshape(1, 8)                   # f32
    w2_p = w2.reshape(16, 150).T                               # (150, 16)
    b2_p = b2.reshape(1, 16)

    # Pre-permute linear1's rows from torch's NCHW flatten order (c*25+h*5+w)
    # to the NHWC order (h*80+w*16+c) the conv2 kernel emits, so the wrapper
    # flattens y2 with a plain reshape (no transpose materialization).
    perm = jnp.transpose(jnp.arange(400).reshape(16, 5, 5), (1, 2, 0)).reshape(400)
    wl1_p = wl1.T[perm]                                        # (400, 120)

    p = {
        "w1": w1_p.astype(MXU_DTYPE), "b1": b1_p,
        "w2": w2_p.astype(MXU_DTYPE), "b2": b2_p,
        "wl1": wl1_p.astype(MXU_DTYPE), "bl1": bl1.reshape(1, 120),
        "wl2": wl2.T.astype(MXU_DTYPE), "bl2": bl2.reshape(1, 84),
        "wl3": wl3.T.astype(MXU_DTYPE), "bl3": bl3.reshape(1, 10),
    }
    return p, ref


# ----------------------------------------------------------------------------
# Forward pass (matches ConvNet.forward semantics, bf16 MXU / f32 accumulate)
# ----------------------------------------------------------------------------
def convnet_forward(x, params):
    # x: (B, 3, 32, 32) NCHW float32
    B = x.shape[0]
    x_nhwc = jnp.transpose(x, (0, 2, 3, 1)).astype(MXU_DTYPE)   # (B,32,32,3)

    # conv1 (3->6, k=5) + relu + 2x2 maxpool, fused in one kernel
    p1 = pooled_im2col(x_nhwc, 5)                               # (4, B*196, 75)
    y1 = conv_relu_pool(p1, params["w1"], params["b1"])         # (B*196, 8) bf16
    y1 = y1.reshape(B, 14, 14, 8)[..., :6]                      # (B, 14, 14, 6)

    # conv2 (6->16, k=5) + relu + 2x2 maxpool, fused in one kernel
    p2 = pooled_im2col(y1, 5)                                   # (4, B*25, 150)
    y2 = conv_relu_pool(p2, params["w2"], params["b2"])         # (B*25, 16) bf16

    # NHWC (h, w, c) flatten; linear1's rows were pre-permuted to this order
    # at init, so no transpose back to NCHW is needed here.
    flat = y2.reshape(B, 16 * 5 * 5)                            # (B, 400) bf16

    return fc_stack(flat, params)                               # (B, 10) f32


# ----------------------------------------------------------------------------
# Pure-JAX f32 reference (exact ConvNet.forward) for a tolerance check.
# ----------------------------------------------------------------------------
def convnet_reference(x, ref):
    dn = ("NCHW", "OIHW", "NCHW")
    y = lax.conv_general_dilated(x, ref["w1"], (1, 1), "VALID", dimension_numbers=dn)
    y = jnp.maximum(y + ref["b1"].reshape(1, -1, 1, 1), 0.0)
    y = lax.reduce_window(y, -jnp.inf, lax.max, (1, 1, 2, 2), (1, 1, 2, 2), "VALID")
    y = lax.conv_general_dilated(y, ref["w2"], (1, 1), "VALID", dimension_numbers=dn)
    y = jnp.maximum(y + ref["b2"].reshape(1, -1, 1, 1), 0.0)
    y = lax.reduce_window(y, -jnp.inf, lax.max, (1, 1, 2, 2), (1, 1, 2, 2), "VALID")
    h = y.reshape(y.shape[0], -1)                               # torch NCHW flatten
    h = jnp.maximum(h @ ref["wl1"].T + ref["bl1"], 0.0)
    h = jnp.maximum(h @ ref["wl2"].T + ref["bl2"], 0.0)
    return h @ ref["wl3"].T + ref["bl3"]


if __name__ == "__main__":
    key = jax.random.PRNGKey(0)
    k_param, k_x = jax.random.split(key)
    params, ref_params = init_params(k_param)
    # The module's view(-1, 16*5*5) implies 3x32x32 spatial input (CIFAR-like).
    x = jax.random.normal(k_x, (2, 3, 32, 32), dtype=jnp.float32)

    out = jax.jit(convnet_forward)(x, params)
    out = jax.block_until_ready(out)
    assert out.shape == (2, 10) and out.dtype == jnp.float32

    ref_out = convnet_reference(x, ref_params)
    err = float(jnp.max(jnp.abs(out - ref_out)))
    assert err < 6e-2, f"max |err| vs f32 reference too large: {err}"
    print("KERNEL_OK")
</pallas_src>

<mosaic_0001>
module attributes {stable_mosaic.version = 11 : i64} {
  func.func @_conv_relu_pool_kernel(%arg0: i32, %arg1: memref<4x208x75xbf16, #tpu.memory_space<vmem>>, %arg2: memref<75x8xbf16, #tpu.memory_space<vmem>>, %arg3: memref<1x8xf32, #tpu.memory_space<vmem>>, %arg4: memref<208x8xbf16, #tpu.memory_space<vmem>>) attributes {dimension_semantics = [#tpu.dimension_semantics<parallel>], iteration_bounds = array<i64: 2>, scalar_prefetch = 0 : i64, scratch_operands = 0 : i64, tpu.core_type = #tpu.core_type<tc>, window_params = [{transform_indices = @transform_0, window_bounds = array<i64: 4, 208, 75>}, {pipeline_mode = #tpu.pipeline_mode<synchronous>, transform_indices = @transform_1, window_bounds = array<i64: 75, 8>}, {pipeline_mode = #tpu.pipeline_mode<synchronous>, transform_indices = @transform_2, window_bounds = array<i64: 1, 8>}, {transform_indices = @transform_3, window_bounds = array<i64: 208, 8>}]} {
    %c0 = arith.constant 0 : index
    %c0_0 = arith.constant 0 : index
    %0 = vector.load %arg2[%c0, %c0_0] : memref<75x8xbf16, #tpu.memory_space<vmem>>, vector<75x8xbf16>
    %c0_1 = arith.constant 0 : index
    %c0_2 = arith.constant 0 : index
    %c0_3 = arith.constant 0 : index
    %1 = vector.load %arg1[%c0_1, %c0_2, %c0_3] : memref<4x208x75xbf16, #tpu.memory_space<vmem>>, vector<1x208x75xbf16>
    %2 = vector.shape_cast %1 : vector<1x208x75xbf16> to vector<208x75xbf16>
    %cst = arith.constant dense<0.000000e+00> : vector<208x8xf32>
    %3 = tpu.matmul %2, %0, %cst {dimension_numbers = #tpu.dot_dimension_numbers<[1], [0], [0], [1], [0, 0, 1, 1], [], []>} : vector<208x75xbf16>, vector<75x8xbf16>, vector<208x8xf32> -> vector<208x8xf32>
    %c1 = arith.constant 1 : index
    %c0_4 = arith.constant 0 : index
    %c0_5 = arith.constant 0 : index
    %4 = vector.load %arg1[%c1, %c0_4, %c0_5] : memref<4x208x75xbf16, #tpu.memory_space<vmem>>, vector<1x208x75xbf16>
    %5 = vector.shape_cast %4 : vector<1x208x75xbf16> to vector<208x75xbf16>
    %cst_6 = arith.constant dense<0.000000e+00> : vector<208x8xf32>
    %6 = tpu.matmul %5, %0, %cst_6 {dimension_numbers = #tpu.dot_dimension_numbers<[1], [0], [0], [1], [0, 0, 1, 1], [], []>} : vector<208x75xbf16>, vector<75x8xbf16>, vector<208x8xf32> -> vector<208x8xf32>
    %7 = arith.maximumf %3, %6 : vector<208x8xf32>
    %c2 = arith.constant 2 : index
    %c0_7 = arith.constant 0 : index
    %c0_8 = arith.constant 0 : index
    %8 = vector.load %arg1[%c2, %c0_7, %c0_8] : memref<4x208x75xbf16, #tpu.memory_space<vmem>>, vector<1x208x75xbf16>
    %9 = vector.shape_cast %8 : vector<1x208x75xbf16> to vector<208x75xbf16>
    %cst_9 = arith.constant dense<0.000000e+00> : vector<208x8xf32>
    %10 = tpu.matmul %9, %0, %cst_9 {dimension_numbers = #tpu.dot_dimension_numbers<[1], [0], [0], [1], [0, 0, 1, 1], [], []>} : vector<208x75xbf16>, vector<75x8xbf16>, vector<208x8xf32> -> vector<208x8xf32>
    %11 = arith.maximumf %7, %10 : vector<208x8xf32>
    %c3 = arith.constant 3 : index
    %c0_10 = arith.constant 0 : index
    %c0_11 = arith.constant 0 : index
    %12 = vector.load %arg1[%c3, %c0_10, %c0_11] : memref<4x208x75xbf16, #tpu.memory_space<vmem>>, vector<1x208x75xbf16>
    %13 = vector.shape_cast %12 : vector<1x208x75xbf16> to vector<208x75xbf16>
    %cst_12 = arith.constant dense<0.000000e+00> : vector<208x8xf32>
    %14 = tpu.matmul %13, %0, %cst_12 {dimension_numbers = #tpu.dot_dimension_numbers<[1], [0], [0], [1], [0, 0, 1, 1], [], []>} : vector<208x75xbf16>, vector<75x8xbf16>, vector<208x8xf32> -> vector<208x8xf32>
    %15 = arith.maximumf %11, %14 : vector<208x8xf32>
    %c0_13 = arith.constant 0 : index
    %c0_14 = arith.constant 0 : index
    %16 = vector.load %arg3[%c0_13, %c0_14] : memref<1x8xf32, #tpu.memory_space<vmem>>, vector<1x8xf32>
    %17 = vector.broadcast %16 : vector<1x8xf32> to vector<208x8xf32>
    %18 = arith.addf %15, %17 : vector<208x8xf32>
    %cst_15 = arith.constant 0.000000e+00 : f32
    %19 = vector.broadcast %cst_15 : f32 to vector<208x8xf32>
    %20 = arith.maximumf %18, %19 : vector<208x8xf32>
    %21 = arith.truncf %20 : vector<208x8xf32> to vector<208x8xbf16>
    %c0_16 = arith.constant 0 : index
    %c0_17 = arith.constant 0 : index
    %22 = vector.load %arg4[%c0_16, %c0_17] : memref<208x8xbf16, #tpu.memory_space<vmem>>, vector<208x8xbf16>
    tpu.vector_store %arg4[%c0_16, %c0_17], %21 {strides = array<i32>} : memref<208x8xbf16, #tpu.memory_space<vmem>>, vector<208x8xbf16>,
    return
  }
  func.func @transform_0(%arg0: i32) -> (i32, i32, i32) {
    %c0_i32 = arith.constant 0 : i32
    %c0_i32_0 = arith.constant 0 : i32
    %c0_i32_1 = arith.constant 0 : i32
    return %c0_i32, %arg0, %c0_i32_0 : i32, i32, i32
  }
  func.func @transform_1(%arg0: i32) -> (i32, i32) {
    %c0_i32 = arith.constant 0 : i32
    %c0_i32_0 = arith.constant 0 : i32
    %c0_i32_1 = arith.constant 0 : i32
    return %c0_i32, %c0_i32_0 : i32, i32
  }
  func.func @transform_2(%arg0: i32) -> (i32, i32) {
    %c0_i32 = arith.constant 0 : i32
    %c0_i32_0 = arith.constant 0 : i32
    %c0_i32_1 = arith.constant 0 : i32
    return %c0_i32, %c0_i32_0 : i32, i32
  }
  func.func @transform_3(%arg0: i32) -> (i32, i32) {
    %c0_i32 = arith.constant 0 : i32
    %c0_i32_0 = arith.constant 0 : i32
    return %arg0, %c0_i32 : i32, i32
  }
}

module attributes {stable_mosaic.version = 11 : i64} {
  func.func @_conv_relu_pool_kernel(%arg0: i32, %arg1: memref<4x32x150xbf16, #tpu.memory_space<vmem>>, %arg2: memref<150x16xbf16, #tpu.memory_space<vmem>>, %arg3: memref<1x16xf32, #tpu.memory_space<vmem>>, %arg4: memref<32x16xbf16, #tpu.memory_space<vmem>>) attributes {dimension_semantics = [#tpu.dimension_semantics<parallel>], iteration_bounds = array<i64: 2>, scalar_prefetch = 0 : i64, scratch_operands = 0 : i64, tpu.core_type = #tpu.core_type<tc>, window_params = [{transform_indices = @transform_0, window_bounds = array<i64: 4, 32, 150>}, {pipeline_mode = #tpu.pipeline_mode<synchronous>, transform_indices = @transform_1, window_bounds = array<i64: 150, 16>}, {pipeline_mode = #tpu.pipeline_mode<synchronous>, transform_indices = @transform_2, window_bounds = array<i64: 1, 16>}, {transform_indices = @transform_3, window_bounds = array<i64: 32, 16>}]} {
    %c0 = arith.constant 0 : index
    %c0_0 = arith.constant 0 : index
    %0 = vector.load %arg2[%c0, %c0_0] : memref<150x16xbf16, #tpu.memory_space<vmem>>, vector<150x16xbf16>
    %c0_1 = arith.constant 0 : index
    %c0_2 = arith.constant 0 : index
    %c0_3 = arith.constant 0 : index
    %1 = vector.load %arg1[%c0_1, %c0_2, %c0_3] : memref<4x32x150xbf16, #tpu.memory_space<vmem>>, vector<1x32x150xbf16>
    %2 = vector.shape_cast %1 : vector<1x32x150xbf16> to vector<32x150xbf16>
    %cst = arith.constant dense<0.000000e+00> : vector<32x16xf32>
    %3 = tpu.matmul %2, %0, %cst {dimension_numbers = #tpu.dot_dimension_numbers<[1], [0], [0], [1], [0, 0, 1, 1], [], []>} : vector<32x150xbf16>, vector<150x16xbf16>, vector<32x16xf32> -> vector<32x16xf32>
    %c1 = arith.constant 1 : index
    %c0_4 = arith.constant 0 : index
    %c0_5 = arith.constant 0 : index
    %4 = vector.load %arg1[%c1, %c0_4, %c0_5] : memref<4x32x150xbf16, #tpu.memory_space<vmem>>, vector<1x32x150xbf16>
    %5 = vector.shape_cast %4 : vector<1x32x150xbf16> to vector<32x150xbf16>
    %cst_6 = arith.constant dense<0.000000e+00> : vector<32x16xf32>
    %6 = tpu.matmul %5, %0, %cst_6 {dimension_numbers = #tpu.dot_dimension_numbers<[1], [0], [0], [1], [0, 0, 1, 1], [], []>} : vector<32x150xbf16>, vector<150x16xbf16>, vector<32x16xf32> -> vector<32x16xf32>
    %7 = arith.maximumf %3, %6 : vector<32x16xf32>
    %c2 = arith.constant 2 : index
    %c0_7 = arith.constant 0 : index
    %c0_8 = arith.constant 0 : index
    %8 = vector.load %arg1[%c2, %c0_7, %c0_8] : memref<4x32x150xbf16, #tpu.memory_space<vmem>>, vector<1x32x150xbf16>
    %9 = vector.shape_cast %8 : vector<1x32x150xbf16> to vector<32x150xbf16>
    %cst_9 = arith.constant dense<0.000000e+00> : vector<32x16xf32>
    %10 = tpu.matmul %9, %0, %cst_9 {dimension_numbers = #tpu.dot_dimension_numbers<[1], [0], [0], [1], [0, 0, 1, 1], [], []>} : vector<32x150xbf16>, vector<150x16xbf16>, vector<32x16xf32> -> vector<32x16xf32>
    %11 = arith.maximumf %7, %10 : vector<32x16xf32>
    %c3 = arith.constant 3 : index
    %c0_10 = arith.constant 0 : index
    %c0_11 = arith.constant 0 : index
    %12 = vector.load %arg1[%c3, %c0_10, %c0_11] : memref<4x32x150xbf16, #tpu.memory_space<vmem>>, vector<1x32x150xbf16>
    %13 = vector.shape_cast %12 : vector<1x32x150xbf16> to vector<32x150xbf16>
    %cst_12 = arith.constant dense<0.000000e+00> : vector<32x16xf32>
    %14 = tpu.matmul %13, %0, %cst_12 {dimension_numbers = #tpu.dot_dimension_numbers<[1], [0], [0], [1], [0, 0, 1, 1], [], []>} : vector<32x150xbf16>, vector<150x16xbf16>, vector<32x16xf32> -> vector<32x16xf32>
    %15 = arith.maximumf %11, %14 : vector<32x16xf32>
    %c0_13 = arith.constant 0 : index
    %c0_14 = arith.constant 0 : index
    %16 = vector.load %arg3[%c0_13, %c0_14] : memref<1x16xf32, #tpu.memory_space<vmem>>, vector<1x16xf32>
    %17 = vector.broadcast %16 : vector<1x16xf32> to vector<32x16xf32>
    %18 = arith.addf %15, %17 : vector<32x16xf32>
    %cst_15 = arith.constant 0.000000e+00 : f32
    %19 = vector.broadcast %cst_15 : f32 to vector<32x16xf32>
    %20 = arith.maximumf %18, %19 : vector<32x16xf32>
    %21 = arith.truncf %20 : vector<32x16xf32> to vector<32x16xbf16>
    %c0_16 = arith.constant 0 : index
    %c0_17 = arith.constant 0 : index
    %22 = vector.load %arg4[%c0_16, %c0_17] : memref<32x16xbf16, #tpu.memory_space<vmem>>, vector<32x16xbf16>
    tpu.vector_store %arg4[%c0_16, %c0_17], %21 {strides = array<i32>} : memref<32x16xbf16, #tpu.memory_space<vmem>>, vector<32x16xbf16>,
    return
  }
  func.func @transform_0(%arg0: i32) -> (i32, i32, i32) {
    %c0_i32 = arith.constant 0 : i32
    %c0_i32_0 = arith.constant 0 : i32
    %c0_i32_1 = arith.constant 0 : i32
    return %c0_i32, %arg0, %c0_i32_0 : i32, i32, i32
  }
  func.func @transform_1(%arg0: i32) -> (i32, i32) {
    %c0_i32 = arith.constant 0 : i32
    %c0_i32_0 = arith.constant 0 : i32
    %c0_i32_1 = arith.constant 0 : i32
    return %c0_i32, %c0_i32_0 : i32, i32
  }
  func.func @transform_2(%arg0: i32) -> (i32, i32) {
    %c0_i32 = arith.constant 0 : i32
    %c0_i32_0 = arith.constant 0 : i32
    %c0_i32_1 = arith.constant 0 : i32
    return %c0_i32, %c0_i32_0 : i32, i32
  }
  func.func @transform_3(%arg0: i32) -> (i32, i32) {
    %c0_i32 = arith.constant 0 : i32
    %c0_i32_0 = arith.constant 0 : i32
    return %arg0, %c0_i32 : i32, i32
  }
}

module attributes {stable_mosaic.version = 11 : i64} {
  func.func @_fc3_kernel(%arg0: i32, %arg1: memref<8x400xbf16, #tpu.memory_space<vmem>>, %arg2: memref<400x120xbf16, #tpu.memory_space<vmem>>, %arg3: memref<1x120xf32, #tpu.memory_space<vmem>>, %arg4: memref<120x84xbf16, #tpu.memory_space<vmem>>, %arg5: memref<1x84xf32, #tpu.memory_space<vmem>>, %arg6: memref<84x10xbf16, #tpu.memory_space<vmem>>, %arg7: memref<1x10xf32, #tpu.memory_space<vmem>>, %arg8: memref<8x10xf32, #tpu.memory_space<vmem>>) attributes {dimension_semantics = [#tpu.dimension_semantics<parallel>], iteration_bounds = array<i64: 1>, scalar_prefetch = 0 : i64, scratch_operands = 0 : i64, tpu.core_type = #tpu.core_type<tc>, window_params = [{transform_indices = @transform_0, window_bounds = array<i64: 8, 400>}, {pipeline_mode = #tpu.pipeline_mode<synchronous>, transform_indices = @transform_1, window_bounds = array<i64: 400, 120>}, {pipeline_mode = #tpu.pipeline_mode<synchronous>, transform_indices = @transform_2, window_bounds = array<i64: 1, 120>}, {pipeline_mode = #tpu.pipeline_mode<synchronous>, transform_indices = @transform_3, window_bounds = array<i64: 120, 84>}, {pipeline_mode = #tpu.pipeline_mode<synchronous>, transform_indices = @transform_4, window_bounds = array<i64: 1, 84>}, {pipeline_mode = #tpu.pipeline_mode<synchronous>, transform_indices = @transform_5, window_bounds = array<i64: 84, 10>}, {pipeline_mode = #tpu.pipeline_mode<synchronous>, transform_indices = @transform_6, window_bounds = array<i64: 1, 10>}, {transform_indices = @transform_7, window_bounds = array<i64: 8, 10>}]} {
    %c0 = arith.constant 0 : index
    %c0_0 = arith.constant 0 : index
    %0 = vector.load %arg1[%c0, %c0_0] : memref<8x400xbf16, #tpu.memory_space<vmem>>, vector<8x400xbf16>
    %c0_1 = arith.constant 0 : index
    %c0_2 = arith.constant 0 : index
    %1 = vector.load %arg2[%c0_1, %c0_2] : memref<400x120xbf16, #tpu.memory_space<vmem>>, vector<400x120xbf16>
    %cst = arith.constant dense<0.000000e+00> : vector<8x120xf32>
    %2 = tpu.matmul %0, %1, %cst {dimension_numbers = #tpu.dot_dimension_numbers<[1], [0], [0], [1], [0, 0, 1, 1], [], []>} : vector<8x400xbf16>, vector<400x120xbf16>, vector<8x120xf32> -> vector<8x120xf32>
    %c0_3 = arith.constant 0 : index
    %c0_4 = arith.constant 0 : index
    %3 = vector.load %arg3[%c0_3, %c0_4] : memref<1x120xf32, #tpu.memory_space<vmem>>, vector<1x120xf32>
    %4 = vector.broadcast %3 : vector<1x120xf32> to vector<8x120xf32>
    %5 = arith.addf %2, %4 : vector<8x120xf32>
    %cst_5 = arith.constant 0.000000e+00 : f32
    %6 = vector.broadcast %cst_5 : f32 to vector<8x120xf32>
    %7 = arith.maximumf %5, %6 : vector<8x120xf32>
    %8 = arith.truncf %7 : vector<8x120xf32> to vector<8x120xbf16>
    %c0_6 = arith.constant 0 : index
    %c0_7 = arith.constant 0 : index
    %9 = vector.load %arg4[%c0_6, %c0_7] : memref<120x84xbf16, #tpu.memory_space<vmem>>, vector<120x84xbf16>
    %cst_8 = arith.constant dense<0.000000e+00> : vector<8x84xf32>
    %10 = tpu.matmul %8, %9, %cst_8 {dimension_numbers = #tpu.dot_dimension_numbers<[1], [0], [0], [1], [0, 0, 1, 1], [], []>} : vector<8x120xbf16>, vector<120x84xbf16>, vector<8x84xf32> -> vector<8x84xf32>
    %c0_9 = arith.constant 0 : index
    %c0_10 = arith.constant 0 : index
    %11 = vector.load %arg5[%c0_9, %c0_10] : memref<1x84xf32, #tpu.memory_space<vmem>>, vector<1x84xf32>
    %12 = vector.broadcast %11 : vector<1x84xf32> to vector<8x84xf32>
    %13 = arith.addf %10, %12 : vector<8x84xf32>
    %cst_11 = arith.constant 0.000000e+00 : f32
    %14 = vector.broadcast %cst_11 : f32 to vector<8x84xf32>
    %15 = arith.maximumf %13, %14 : vector<8x84xf32>
    %16 = arith.truncf %15 : vector<8x84xf32> to vector<8x84xbf16>
    %c0_12 = arith.constant 0 : index
    %c0_13 = arith.constant 0 : index
    %17 = vector.load %arg6[%c0_12, %c0_13] : memref<84x10xbf16, #tpu.memory_space<vmem>>, vector<84x10xbf16>
    %cst_14 = arith.constant dense<0.000000e+00> : vector<8x10xf32>
    %18 = tpu.matmul %16, %17, %cst_14 {dimension_numbers = #tpu.dot_dimension_numbers<[1], [0], [0], [1], [0, 0, 1, 1], [], []>} : vector<8x84xbf16>, vector<84x10xbf16>, vector<8x10xf32> -> vector<8x10xf32>
    %c0_15 = arith.constant 0 : index
    %c0_16 = arith.constant 0 : index
    %19 = vector.load %arg7[%c0_15, %c0_16] : memref<1x10xf32, #tpu.memory_space<vmem>>, vector<1x10xf32>
    %20 = vector.broadcast %19 : vector<1x10xf32> to vector<8x10xf32>
    %21 = arith.addf %18, %20 : vector<8x10xf32>
    %c0_17 = arith.constant 0 : index
    %c0_18 = arith.constant 0 : index
    %22 = vector.load %arg8[%c0_17, %c0_18] : memref<8x10xf32, #tpu.memory_space<vmem>>, vector<8x10xf32>
    tpu.vector_store %arg8[%c0_17, %c0_18], %21 {strides = array<i32>} : memref<8x10xf32, #tpu.memory_space<vmem>>, vector<8x10xf32>,
    return
  }
  func.func @transform_0(%arg0: i32) -> (i32, i32) {
    %c0_i32 = arith.constant 0 : i32
    %c0_i32_0 = arith.constant 0 : i32
    return %arg0, %c0_i32 : i32, i32
  }
  func.func @transform_1(%arg0: i32) -> (i32, i32) {
    %c0_i32 = arith.constant 0 : i32
    %c0_i32_0 = arith.constant 0 : i32
    %c0_i32_1 = arith.constant 0 : i32
    return %c0_i32, %c0_i32_0 : i32, i32
  }
  func.func @transform_2(%arg0: i32) -> (i32, i32) {
    %c0_i32 = arith.constant 0 : i32
    %c0_i32_0 = arith.constant 0 : i32
    %c0_i32_1 = arith.constant 0 : i32
    return %c0_i32, %c0_i32_0 : i32, i32
  }
  func.func @transform_3(%arg0: i32) -> (i32, i32) {
    %c0_i32 = arith.constant 0 : i32
    %c0_i32_0 = arith.constant 0 : i32
    %c0_i32_1 = arith.constant 0 : i32
    return %c0_i32, %c0_i32_0 : i32, i32
  }
  func.func @transform_4(%arg0: i32) -> (i32, i32) {
    %c0_i32 = arith.constant 0 : i32
    %c0_i32_0 = arith.constant 0 : i32
    %c0_i32_1 = arith.constant 0 : i32
    return %c0_i32, %c0_i32_0 : i32, i32
  }
  func.func @transform_5(%arg0: i32) -> (i32, i32) {
    %c0_i32 = arith.constant 0 : i32
    %c0_i32_0 = arith.constant 0 : i32
    %c0_i32_1 = arith.constant 0 : i32
    return %c0_i32, %c0_i32_0 : i32, i32
  }
  func.func @transform_6(%arg0: i32) -> (i32, i32) {
    %c0_i32 = arith.constant 0 : i32
    %c0_i32_0 = arith.constant 0 : i32
    %c0_i32_1 = arith.constant 0 : i32
    return %c0_i32, %c0_i32_0 : i32, i32
  }
  func.func @transform_7(%arg0: i32) -> (i32, i32) {
    %c0_i32 = arith.constant 0 : i32
    %c0_i32_0 = arith.constant 0 : i32
    return %arg0, %c0_i32 : i32, i32
  }
}

</mosaic_0001>

<llo_original>
// kernel: convnet_forward.3
$region0: #{convnet_forward.3}
  #allocation0 [shape = 'u32[]', space=smem, size = 0x4, offset = 0x4, fixed_abs, tag = 'smem constant byte address 0x4 - core index']
  #allocation1 [shape = 'u32[144,128]{1,0:T(1,128)}', space=vmem, size = 0x12000, scoped, tag = 'internal scratch']
  %s0 = inlined_call_operand.vmem [shape: bf16[4,416,75], index: 0, kind: input, shape index: {}]
  %s1 = inlined_call_operand.vmem [shape: bf16[75,8], index: 1, kind: input, shape index: {}]
  %s2 = inlined_call_operand.vmem [shape: f32[1,8], index: 2, kind: input, shape index: {}]
  %s3 = inlined_call_operand.vmem [shape: bf16[416,8], index: 3, kind: output, shape index: {}]
  %s4 = sld [smem:[#allocation0]]
  $region86: #{convnet_forward.3} parent=0
    _
  %s6 = ssub.s32 1, %s4
  %s7 = scalar_select 0, %s6, %s4
  $region1: #{convnet_forward.3} parent=0
    #allocation2 [shape = 'u8[425984]{0}', space=vmem, size = 0x68000, scoped, tag = 'input window, operand 0']
    loop: start=0, step=1, limit=4
    $region2: #{convnet_forward.3} parent=1 // loop_pre_header
      _
    $region3: #{convnet_forward.3} parent=1 // loop_header
      %s9 = sphi 0, %s13
      %p10 = scmp.ge.s32.totalorder %s9, 4
      %s19 = sphi 0, %s21
      %s22 = sphi 0, %s19
      %s23 = sphi 0, %s22
      %s39 = sphi 0, %s23
      %s43 = sphi 0, %s43
      %s45 = sphi 0, %s43
      %s46 = sphi 0, %s45
      %s60 = sphi 0, %s46
      %s64 = sphi 0, %s64
      %s66 = sphi 0, %s64
      %s67 = sphi 0, %s66
      %s81 = sphi 0, %s67
      %s87 = sphi 0, %s89
      %s90 = sphi 0, %s87
      %s91 = sphi 0, %s90
      %s107 = sphi 0, %s91
    $region4: #{convnet_forward.3} parent=1 // loop_header_branch
      %12 = sbr.rel (%p10) target = $region8
    $region5: #{convnet_forward.3} parent=1 // loop_body
      %s14 = ssub.s32 %s9, 1
      %s15 = ssub.s32 %s9, 2
      %s16 = sadd.s32 %s9, 1
      %s17 = ssub.s32 %s9, %s16
      %p18 = scmp.eq.s32.totalorder %s17, 0
      %s20 = sadd.s32 %s19, 1
      %s21 = scalar_select %p18, %s19, %s20
      %p24 = pneg %p18
      %p25 = scmp.eq.s32.totalorder %s9, 1
      %p26 = por %p24, %p25
      %p27 = scmp.ne.s32.totalorder %s19, %s22
      %p28 = scmp.eq.s32.totalorder %s9, 0
      %p29 = por %p27, %p28
      %p30 = scmp.ne.s32.totalorder %s19, %s22
      %p31 = scmp.eq.s32.totalorder %s14, 1
      %p32 = por %p30, %p31
      %p33 = scmp.ne.s32.totalorder %s22, %s23
      %p34 = scmp.eq.s32.totalorder %s14, 0
      %p35 = por %p33, %p34
      %p36 = scmp.ne.s32.totalorder %s22, %s23
      %p37 = scmp.eq.s32.totalorder %s15, 1
      %p38 = por %p36, %p37
      %p40 = scmp.ne.s32.totalorder %s23, %s39
      %p41 = scmp.eq.s32.totalorder %s15, 0
      %p42 = por %p40, %p41
      %s44 = sadd.s32 %s43, 1
      %p47 = scmp.eq.s32.totalorder %s9, 1
      %p48 = scmp.ne.s32.totalorder %s43, %s45
      %p49 = scmp.eq.s32.totalorder %s9, 0
      %p50 = por %p48, %p49
      %p51 = scmp.ne.s32.totalorder %s43, %s45
      %p52 = scmp.eq.s32.totalorder %s14, 1
      %p53 = por %p51, %p52
      %p54 = scmp.ne.s32.totalorder %s45, %s46
      %p55 = scmp.eq.s32.totalorder %s14, 0
      %p56 = por %p54, %p55
      %p57 = scmp.ne.s32.totalorder %s45, %s46
      %p58 = scmp.eq.s32.totalorder %s15, 1
      %p59 = por %p57, %p58
      %p61 = scmp.ne.s32.totalorder %s46, %s60
      %p62 = scmp.eq.s32.totalorder %s15, 0
      %p63 = por %p61, %p62
      %s65 = sadd.s32 %s64, 1
      %p68 = scmp.eq.s32.totalorder %s9, 1
      %p69 = scmp.ne.s32.totalorder %s64, %s66
      %p70 = scmp.eq.s32.totalorder %s9, 0
      %p71 = por %p69, %p70
      %p72 = scmp.ne.s32.totalorder %s64, %s66
      %p73 = scmp.eq.s32.totalorder %s14, 1
      %p74 = por %p72, %p73
      %p75 = scmp.ne.s32.totalorder %s66, %s67
      %p76 = scmp.eq.s32.totalorder %s14, 0
      %p77 = por %p75, %p76
      %p78 = scmp.ne.s32.totalorder %s66, %s67
      %p79 = scmp.eq.s32.totalorder %s15, 1
      %p80 = por %p78, %p79
      %p82 = scmp.ne.s32.totalorder %s67, %s81
      %p83 = scmp.eq.s32.totalorder %s15, 0
      %p84 = por %p82, %p83
      %s85 = ssub.s32 %s9, %s16
      %p86 = scmp.eq.s32.totalorder %s85, 0
      %s88 = sadd.s32 %s87, 1
      %s89 = scalar_select %p86, %s87, %s88
      %p92 = pneg %p86
      %p93 = scmp.eq.s32.totalorder %s9, 1
      %p94 = por %p92, %p93
      %p95 = scmp.ne.s32.totalorder %s87, %s90
      %p96 = scmp.eq.s32.totalorder %s9, 0
      %p97 = por %p95, %p96
      %p98 = scmp.ne.s32.totalorder %s87, %s90
      %p99 = scmp.eq.s32.totalorder %s14, 1
      %p100 = por %p98, %p99
      %p101 = scmp.ne.s32.totalorder %s90, %s91
      %p102 = scmp.eq.s32.totalorder %s14, 0
      %p103 = por %p101, %p102
      %p104 = scmp.ne.s32.totalorder %s90, %s91
      %p105 = scmp.eq.s32.totalorder %s15, 1
      %p106 = por %p104, %p105
      %p108 = scmp.ne.s32.totalorder %s91, %s107
      %p109 = scmp.eq.s32.totalorder %s15, 0
      %p110 = por %p108, %p109
      %p111 = scmp.le.s32.totalorder 1, %s9
      %p112 = scmp.lt.s32.totalorder %s9, 3
      %p113 = pnand %p111, %p112
      %p114 = pneg %p113
      // Predicated region
      $region9: #{convnet_forward.3} parent=5 // pred_check
        _
      $region10: #{convnet_forward.3} parent=5 // pred_check_branch
        %116 = sbr.rel (%p113) target = $region12
      $region11: #{convnet_forward.3} parent=5 // pred_region
        %s117 = ssub.s32 %s9, 1
        // Predicated region
        $region13: #{convnet_forward.3} parent=11 // pred_check
          %p118 = pneg %p56
        $region14: #{convnet_forward.3} parent=11 // pred_check_branch
          %120 = sbr.rel (%p118) target = $region16
        $region15: #{convnet_forward.3} parent=11 // pred_region
          _
        $region16: #{convnet_forward.3} parent=11 // pred_fallthru
          _
        // Predicated region
        $region17: #{convnet_forward.3} parent=11 // pred_check
          %p121 = pneg %p77
        $region18: #{convnet_forward.3} parent=11 // pred_check_branch
          %123 = sbr.rel (%p121) target = $region20
        $region19: #{convnet_forward.3} parent=11 // pred_region
          _
        $region20: #{convnet_forward.3} parent=11 // pred_fallthru
          _
      $region12: #{convnet_forward.3} parent=5 // pred_fallthru
        _
      %p124 = scmp.lt.s32.totalorder %s9, 2
      // Predicated region
      $region21: #{convnet_forward.3} parent=5 // pred_check
        %p125 = pneg %p124
      $region22: #{convnet_forward.3} parent=5 // pred_check_branch
        %127 = sbr.rel (%p125) target = $region24
      $region23: #{convnet_forward.3} parent=5 // pred_region
        // Predicated region
        $region25: #{convnet_forward.3} parent=23 // pred_check
          %p128 = pneg %p29
        $region26: #{convnet_forward.3} parent=23 // pred_check_branch
          %130 = sbr.rel (%p128) target = $region28
        $region27: #{convnet_forward.3} parent=23 // pred_region
          %s131 = sand.u32 %s19, 1
          %s132 = sand.u32 %s19, 1
          %s133 = smul.addr %s132, 416
          %s134 = scalar_lea.vmem [#allocation2], %s133
          %s135 = smul.u32 26, %s9
          %s136 = smul.addr %s135, 4
          %s137 = scalar_lea.vmem %s0, %s136
          // Predicated region
          $region29: #{convnet_forward.3} parent=27 // pred_check
            _
          $region30: #{convnet_forward.3} parent=27 // pred_check_branch
            %139 = sbr.rel (0) target = $region32
          $region31: #{convnet_forward.3} parent=27 // pred_region
            // Predicated region
            $region33: #{convnet_forward.3} parent=31 // pred_check
              _
            $region34: #{convnet_forward.3} parent=31 // pred_check_branch
              %141 = sbr.rel target = $region36
            $region35: #{convnet_forward.3} parent=31 // pred_region
              // Predicated region
              $region48: #{convnet_forward.3} parent=35 // pred_check
                _
              $region49: #{convnet_forward.3} parent=35 // pred_check_branch
                %363 = sbr.rel (0) target = $region51
              $region50: #{convnet_forward.3} parent=35 // pred_region
                loop: start=0, step=1, limit=1
                $region52: #{convnet_forward.3} parent=50 // loop_pre_header
                  _
                $region53: #{convnet_forward.3} parent=50 // loop_header
                  %s365 = sphi 0, %s369
                  %p366 = scmp.ge.s32.totalorder %s365, 1
                  %s370 = sphi %s137, %s137
                  %s371 = sphi %s134, %s134
                $region54: #{convnet_forward.3} parent=50 // loop_header_branch
                  %368 = sbr.rel (%p366) target = $region58
                $region55: #{convnet_forward.3} parent=50 // loop_body
                  _
                $region56: #{convnet_forward.3} parent=50 // loop_footer
                  %s369 = sadd.s32 1, %s365
                $region57: #{convnet_forward.3} parent=50 // loop_footer_branch
                  %364 = sbr.rel target = $region53
                $region58: #{convnet_forward.3} parent=50 // loop_exit
                  _
                %s373 = ssub.s32 16, 1
                loop: start=0, step=1, limit=1
                $region59: #{convnet_forward.3} parent=50 // loop_pre_header
                  _
                $region60: #{convnet_forward.3} parent=50 // loop_header
                  %s375 = sphi 0, %s379
                  %p376 = scmp.ge.s32.totalorder %s375, 1
                  %s380 = sphi %s137, %s137
                  %s381 = sphi %s134, %s134
                $region61: #{convnet_forward.3} parent=50 // loop_header_branch
                  %378 = sbr.rel (%p376) target = $region65
                $region62: #{convnet_forward.3} parent=50 // loop_body
                  %v382 = vld [vmem:[%s380] sm:%s373]
                  %383 = vst [vmem:[%s381] sm:%s373] %v382
                  %v384 = vld [vmem:[%s380 + $0x4] sm:%s373]
                  %385 = vst [vmem:[%s381 + $0x4] sm:%s373] %v384
                  %v386 = vld [vmem:[%s380 + $0x8] sm:%s373]
                  %387 = vst [vmem:[%s381 + $0x8] sm:%s373] %v386
                  %v388 = vld [vmem:[%s380 + $0xc] sm:%s373]
                  %389 = vst [vmem:[%s381 + $0xc] sm:%s373] %v388
                  %v390 = vld [vmem:[%s380 + $0x10] sm:%s373]
                  %391 = vst [vmem:[%s381 + $0x10] sm:%s373] %v390
                  %v392 = vld [vmem:[%s380 + $0x14] sm:%s373]
                  %393 = vst [vmem:[%s381 + $0x14] sm:%s373] %v392
                  %v394 = vld [vmem:[%s380 + $0x18] sm:%s373]
                  %395 = vst [vmem:[%s381 + $0x18] sm:%s373] %v394
                  %v396 = vld [vmem:[%s380 + $0x1c] sm:%s373]
                  %397 = vst [vmem:[%s381 + $0x1c] sm:%s373] %v396
                  %v398 = vld [vmem:[%s380 + $0x20] sm:%s373]
                  %399 = vst [vmem:[%s381 + $0x20] sm:%s373] %v398
                  %v400 = vld [vmem:[%s380 + $0x24] sm:%s373]
                  %401 = vst [vmem:[%s381 + $0x24] sm:%s373] %v400
                  %v402 = vld [vmem:[%s380 + $0x28] sm:%s373]
                  %403 = vst [vmem:[%s381 + $0x28] sm:%s373] %v402
                  %v404 = vld [vmem:[%s380 + $0x2c] sm:%s373]
                  %405 = vst [vmem:[%s381 + $0x2c] sm:%s373] %v404
                  %v406 = vld [vmem:[%s380 + $0x30] sm:%s373]
                  %407 = vst [vmem:[%s381 + $0x30] sm:%s373] %v406
                  %v408 = vld [vmem:[%s380 + $0x34] sm:%s373]
                  %409 = vst [vmem:[%s381 + $0x34] sm:%s373] %v408
                  %v410 = vld [vmem:[%s380 + $0x38] sm:%s373]
                  %411 = vst [vmem:[%s381 + $0x38] sm:%s373] %v410
                  %v412 = vld [vmem:[%s380 + $0x3c] sm:%s373]
                  %413 = vst [vmem:[%s381 + $0x3c] sm:%s373] %v412
                  %v414 = vld [vmem:[%s380 + $0x40] sm:%s373]
                  %415 = vst [vmem:[%s381 + $0x40] sm:%s373] %v414
                  %v416 = vld [vmem:[%s380 + $0x44] sm:%s373]
                  %417 = vst [vmem:[%s381 + $0x44] sm:%s373] %v416
                  %v418 = vld [vmem:[%s380 + $0x48] sm:%s373]
                  %419 = vst [vmem:[%s381 + $0x48] sm:%s373] %v418
                  %v420 = vld [vmem:[%s380 + $0x4c] sm:%s373]
                  %421 = vst [vmem:[%s381 + $0x4c] sm:%s373] %v420
                  %v422 = vld [vmem:[%s380 + $0x50] sm:%s373]
                  %423 = vst [vmem:[%s381 + $0x50] sm:%s373] %v422
                  %v424 = vld [vmem:[%s380 + $0x54] sm:%s373]
                  %425 = vst [vmem:[%s381 + $0x54] sm:%s373] %v424
                  %v426 = vld [vmem:[%s380 + $0x58] sm:%s373]
                  %427 = vst [vmem:[%s381 + $0x58] sm:%s373] %v426
                  %v428 = vld [vmem:[%s380 + $0x5c] sm:%s373]
                  %429 = vst [vmem:[%s381 + $0x5c] sm:%s373] %v428
                  %v430 = vld [vmem:[%s380 + $0x60] sm:%s373]
                  %431 = vst [vmem:[%s381 + $0x60] sm:%s373] %v430
                  %v432 = vld [vmem:[%s380 + $0x64] sm:%s373]
                  %433 = vst [vmem:[%s381 + $0x64] sm:%s373] %v432
                  %v434 = vld [vmem:[%s380 + $0xd0] sm:%s373]
                  %435 = vst [vmem:[%s381 + $0x68] sm:%s373] %v434
                  %v436 = vld [vmem:[%s380 + $0xd4] sm:%s373]
                  %437 = vst [vmem:[%s381 + $0x6c] sm:%s373] %v436
                  %v438 = vld [vmem:[%s380 + $0xd8] sm:%s373]
                  %439 = vst [vmem:[%s381 + $0x70] sm:%s373] %v438
                  %v440 = vld [vmem:[%s380 + $0xdc] sm:%s373]
                  %441 = vst [vmem:[%s381 + $0x74] sm:%s373] %v440
                  %v442 = vld [vmem:[%s380 + $0xe0] sm:%s373]
                  %443 = vst [vmem:[%s381 + $0x78] sm:%s373] %v442
                  %v444 = vld [vmem:[%s380 + $0xe4] sm:%s373]
                  %445 = vst [vmem:[%s381 + $0x7c] sm:%s373] %v444
                  %v446 = vld [vmem:[%s380 + $0xe8] sm:%s373]
                  %447 = vst [vmem:[%s381 + $0x80] sm:%s373] %v446
                  %v448 = vld [vmem:[%s380 + $0xec] sm:%s373]
                  %449 = vst [vmem:[%s381 + $0x84] sm:%s373] %v448
                  %v450 = vld [vmem:[%s380 + $0xf0] sm:%s373]
                  %451 = vst [vmem:[%s381 + $0x88] sm:%s373] %v450
                  %v452 = vld [vmem:[%s380 + $0xf4] sm:%s373]
                  %453 = vst [vmem:[%s381 + $0x8c] sm:%s373] %v452
                  %v454 = vld [vmem:[%s380 + $0xf8] sm:%s373]
                  %455 = vst [vmem:[%s381 + $0x90] sm:%s373] %v454
                  %v456 = vld [vmem:[%s380 + $0xfc] sm:%s373]
                  %457 = vst [vmem:[%s381 + $0x94] sm:%s373] %v456
                  %v458 = vld [vmem:[%s380 + $0x100] sm:%s373]
                  %459 = vst [vmem:[%s381 + $0x98] sm:%s373] %v458
                  %v460 = vld [vmem:[%s380 + $0x104] sm:%s373]
                  %461 = vst [vmem:[%s381 + $0x9c] sm:%s373] %v460
                  %v462 = vld [vmem:[%s380 + $0x108] sm:%s373]
                  %463 = vst [vmem:[%s381 + $0xa0] sm:%s373] %v462
                  %v464 = vld [vmem:[%s380 + $0x10c] sm:%s373]
                  %465 = vst [vmem:[%s381 + $0xa4] sm:%s373] %v464
                  %v466 = vld [vmem:[%s380 + $0x110] sm:%s373]
                  %467 = vst [vmem:[%s381 + $0xa8] sm:%s373] %v466
                  %v468 = vld [vmem:[%s380 + $0x114] sm:%s373]
                  %469 = vst [vmem:[%s381 + $0xac] sm:%s373] %v468
                  %v470 = vld [vmem:[%s380 + $0x118] sm:%s373]
                  %471 = vst [vmem:[%s381 + $0xb0] sm:%s373] %v470
                  %v472 = vld [vmem:[%s380 + $0x11c] sm:%s373]
                  %473 = vst [vmem:[%s381 + $0xb4] sm:%s373] %v472
                  %v474 = vld [vmem:[%s380 + $0x120] sm:%s373]
                  %475 = vst [vmem:[%s381 + $0xb8] sm:%s373] %v474
                  %v476 = vld [vmem:[%s380 + $0x124] sm:%s373]
                  %477 = vst [vmem:[%s381 + $0xbc] sm:%s373] %v476
                  %v478 = vld [vmem:[%s380 + $0x128] sm:%s373]
                  %479 = vst [vmem:[%s381 + $0xc0] sm:%s373] %v478
                  %v480 = vld [vmem:[%s380 + $0x12c] sm:%s373]
                  %481 = vst [vmem:[%s381 + $0xc4] sm:%s373] %v480
                  %v482 = vld [vmem:[%s380 + $0x130] sm:%s373]
                  %483 = vst [vmem:[%s381 + $0xc8] sm:%s373] %v482
                  %v484 = vld [vmem:[%s380 + $0x134] sm:%s373]
                  %485 = vst [vmem:[%s381 + $0xcc] sm:%s373] %v484
                  %v486 = vld [vmem:[%s380 + $0x1a0] sm:%s373]
                  %487 = vst [vmem:[%s381 + $0xd0] sm:%s373] %v486
                  %v488 = vld [vmem:[%s380 + $0x1a4] sm:%s373]
                  %489 = vst [vmem:[%s381 + $0xd4] sm:%s373] %v488
                  %v490 = vld [vmem:[%s380 + $0x1a8] sm:%s373]
                  %491 = vst [vmem:[%s381 + $0xd8] sm:%s373] %v490
                  %v492 = vld [vmem:[%s380 + $0x1ac] sm:%s373]
                  %493 = vst [vmem:[%s381 + $0xdc] sm:%s373] %v492
                  %v494 = vld [vmem:[%s380 + $0x1b0] sm:%s373]
                  %495 = vst [vmem:[%s381 + $0xe0] sm:%s373] %v494
                  %v496 = vld [vmem:[%s380 + $0x1b4] sm:%s373]
                  %497 = vst [vmem:[%s381 + $0xe4] sm:%s373] %v496
                  %v498 = vld [vmem:[%s380 + $0x1b8] sm:%s373]
                  %499 = vst [vmem:[%s381 + $0xe8] sm:%s373] %v498
                  %v500 = vld [vmem:[%s380 + $0x1bc] sm:%s373]
                  %501 = vst [vmem:[%s381 + $0xec] sm:%s373] %v500
                  %v502 = vld [vmem:[%s380 + $0x1c0] sm:%s373]
                  %503 = vst [vmem:[%s381 + $0xf0] sm:%s373] %v502
                  %v504 = vld [vmem:[%s380 + $0x1c4] sm:%s373]
                  %505 = vst [vmem:[%s381 + $0xf4] sm:%s373] %v504
                  %v506 = vld [vmem:[%s380 + $0x1c8] sm:%s373]
                  %507 = vst [vmem:[%s381 + $0xf8] sm:%s373] %v506
                  %v508 = vld [vmem:[%s380 + $0x1cc] sm:%s373]
                  %509 = vst [vmem:[%s381 + $0xfc] sm:%s373] %v508
                  %v510 = vld [vmem:[%s380 + $0x1d0] sm:%s373]
                  %511 = vst [vmem:[%s381 + $0x100] sm:%s373] %v510
                  %v512 = vld [vmem:[%s380 + $0x1d4] sm:%s373]
                  %513 = vst [vmem:[%s381 + $0x104] sm:%s373] %v512
                  %v514 = vld [vmem:[%s380 + $0x1d8] sm:%s373]
                  %515 = vst [vmem:[%s381 + $0x108] sm:%s373] %v514
                  %v516 = vld [vmem:[%s380 + $0x1dc] sm:%s373]
                  %517 = vst [vmem:[%s381 + $0x10c] sm:%s373] %v516
                  %v518 = vld [vmem:[%s380 + $0x1e0] sm:%s373]
                  %519 = vst [vmem:[%s381 + $0x110] sm:%s373] %v518
                  %v520 = vld [vmem:[%s380 + $0x1e4] sm:%s373]
                  %521 = vst [vmem:[%s381 + $0x114] sm:%s373] %v520
                  %v522 = vld [vmem:[%s380 + $0x1e8] sm:%s373]
                  %523 = vst [vmem:[%s381 + $0x118] sm:%s373] %v522
                  %v524 = vld [vmem:[%s380 + $0x1ec] sm:%s373]
                  %525 = vst [vmem:[%s381 + $0x11c] sm:%s373] %v524
                  %v526 = vld [vmem:[%s380 + $0x1f0] sm:%s373]
                  %527 = vst [vmem:[%s381 + $0x120] sm:%s373] %v526
                  %v528 = vld [vmem:[%s380 + $0x1f4] sm:%s373]
                  %529 = vst [vmem:[%s381 + $0x124] sm:%s373] %v528
                  %v530 = vld [vmem:[%s380 + $0x1f8] sm:%s373]
                  %531 = vst [vmem:[%s381 + $0x128] sm:%s373] %v530
                  %v532 = vld [vmem:[%s380 + $0x1fc] sm:%s373]
                  %533 = vst [vmem:[%s381 + $0x12c] sm:%s373] %v532
                  %v534 = vld [vmem:[%s380 + $0x200] sm:%s373]
                  %535 = vst [vmem:[%s381 + $0x130] sm:%s373] %v534
                  %v536 = vld [vmem:[%s380 + $0x204] sm:%s373]
                  %537 = vst [vmem:[%s381 + $0x134] sm:%s373] %v536
                  %v538 = vld [vmem:[%s380 + $0x270] sm:%s373]
                  %539 = vst [vmem:[%s381 + $0x138] sm:%s373] %v538
                  %v540 = vld [vmem:[%s380 + $0x274] sm:%s373]
                  %541 = vst [vmem:[%s381 + $0x13c] sm:%s373] %v540
                  %v542 = vld [vmem:[%s380 + $0x278] sm:%s373]
                  %543 = vst [vmem:[%s381 + $0x140] sm:%s373] %v542
                  %v544 = vld [vmem:[%s380 + $0x27c] sm:%s373]
                  %545 = vst [vmem:[%s381 + $0x144] sm:%s373] %v544
                  %v546 = vld [vmem:[%s380 + $0x280] sm:%s373]
                  %547 = vst [vmem:[%s381 + $0x148] sm:%s373] %v546
                  %v548 = vld [vmem:[%s380 + $0x284] sm:%s373]
                  %549 = vst [vmem:[%s381 + $0x14c] sm:%s373] %v548
                  %v550 = vld [vmem:[%s380 + $0x288] sm:%s373]
                  %551 = vst [vmem:[%s381 + $0x150] sm:%s373] %v550
                  %v552 = vld [vmem:[%s380 + $0x28c] sm:%s373]
                  %553 = vst [vmem:[%s381 + $0x154] sm:%s373] %v552
                  %v554 = vld [vmem:[%s380 + $0x290] sm:%s373]
                  %555 = vst [vmem:[%s381 + $0x158] sm:%s373] %v554
                  %v556 = vld [vmem:[%s380 + $0x294] sm:%s373]
                  %557 = vst [vmem:[%s381 + $0x15c] sm:%s373] %v556
                  %v558 = vld [vmem:[%s380 + $0x298] sm:%s373]
                  %559 = vst [vmem:[%s381 + $0x160] sm:%s373] %v558
                  %v560 = vld [vmem:[%s380 + $0x29c] sm:%s373]
                  %561 = vst [vmem:[%s381 + $0x164] sm:%s373] %v560
                  %v562 = vld [vmem:[%s380 + $0x2a0] sm:%s373]
                  %563 = vst [vmem:[%s381 + $0x168] sm:%s373] %v562
                  %v564 = vld [vmem:[%s380 + $0x2a4] sm:%s373]
                  %565 = vst [vmem:[%s381 + $0x16c] sm:%s373] %v564
                  %v566 = vld [vmem:[%s380 + $0x2a8] sm:%s373]
                  %567 = vst [vmem:[%s381 + $0x170] sm:%s373] %v566
                  %v568 = vld [vmem:[%s380 + $0x2ac] sm:%s373]
                  %569 = vst [vmem:[%s381 + $0x174] sm:%s373] %v568
                  %v570 = vld [vmem:[%s380 + $0x2b0] sm:%s373]
                  %571 = vst [vmem:[%s381 + $0x178] sm:%s373] %v570
                  %v572 = vld [vmem:[%s380 + $0x2b4] sm:%s373]
                  %573 = vst [vmem:[%s381 + $0x17c] sm:%s373] %v572
                  %v574 = vld [vmem:[%s380 + $0x2b8] sm:%s373]
                  %575 = vst [vmem:[%s381 + $0x180] sm:%s373] %v574
                  %v576 = vld [vmem:[%s380 + $0x2bc] sm:%s373]
                  %577 = vst [vmem:[%s381 + $0x184] sm:%s373] %v576
                  %v578 = vld [vmem:[%s380 + $0x2c0] sm:%s373]
                  %579 = vst [vmem:[%s381 + $0x188] sm:%s373] %v578
                  %v580 = vld [vmem:[%s380 + $0x2c4] sm:%s373]
                  %581 = vst [vmem:[%s381 + $0x18c] sm:%s373] %v580
                  %v582 = vld [vmem:[%s380 + $0x2c8] sm:%s373]
                  %583 = vst [vmem:[%s381 + $0x190] sm:%s373] %v582
                  %v584 = vld [vmem:[%s380 + $0x2cc] sm:%s373]
                  %585 = vst [vmem:[%s381 + $0x194] sm:%s373] %v584
                  %v586 = vld [vmem:[%s380 + $0x2d0] sm:%s373]
                  %587 = vst [vmem:[%s381 + $0x198] sm:%s373] %v586
                  %v588 = vld [vmem:[%s380 + $0x2d4] sm:%s373]
                  %589 = vst [vmem:[%s381 + $0x19c] sm:%s373] %v588
                $region63: #{convnet_forward.3} parent=50 // loop_footer
                  %s379 = sadd.s32 1, %s375
                $region64: #{convnet_forward.3} parent=50 // loop_footer_branch
                  %374 = sbr.rel target = $region60
                $region65: #{convnet_forward.3} parent=50 // loop_exit
                  _
              $region51: #{convnet_forward.3} parent=35 // pred_fallthru
                _
            $region36: #{convnet_forward.3} parent=31 // pred_fallthru
              _
            // Predicated region
            $region37: #{convnet_forward.3} parent=31 // pred_check
              _
            $region38: #{convnet_forward.3} parent=31 // pred_check_branch
              %143 = sbr.rel (0) target = $region40
            $region39: #{convnet_forward.3} parent=31 // pred_region
              %s145 = ssub.s32 16, 1
              loop: start=0, step=1, limit=1
              $region41: #{convnet_forward.3} parent=39 // loop_pre_header
                _
              $region42: #{convnet_forward.3} parent=39 // loop_header
                %s147 = sphi 0, %s151
                %p148 = scmp.ge.s32.totalorder %s147, 1
                %s152 = sphi %s137, %s137
                %s153 = sphi %s134, %s134
              $region43: #{convnet_forward.3} parent=39 // loop_header_branch
                %150 = sbr.rel (%p148) target = $region47
              $region44: #{convnet_forward.3} parent=39 // loop_body
                %v154 = vld [vmem:[%s152] sm:%s145]
                %155 = vst [vmem:[%s153] sm:%s145] %v154
                %v156 = vld [vmem:[%s152 + $0x4] sm:%s145]
                %157 = vst [vmem:[%s153 + $0x4] sm:%s145] %v156
                %v158 = vld [vmem:[%s152 + $0x8] sm:%s145]
                %159 = vst [vmem:[%s153 + $0x8] sm:%s145] %v158
                %v160 = vld [vmem:[%s152 + $0xc] sm:%s145]
                %161 = vst [vmem:[%s153 + $0xc] sm:%s145] %v160
                %v162 = vld [vmem:[%s152 + $0x10] sm:%s145]
                %163 = vst [vmem:[%s153 + $0x10] sm:%s145] %v162
                %v164 = vld [vmem:[%s152 + $0x14] sm:%s145]
                %165 = vst [vmem:[%s153 + $0x14] sm:%s145] %v164
                %v166 = vld [vmem:[%s152 + $0x18] sm:%s145]
                %167 = vst [vmem:[%s153 + $0x18] sm:%s145] %v166
                %v168 = vld [vmem:[%s152 + $0x1c] sm:%s145]
                %169 = vst [vmem:[%s153 + $0x1c] sm:%s145] %v168
                %v170 = vld [vmem:[%s152 + $0x20] sm:%s145]
                %171 = vst [vmem:[%s153 + $0x20] sm:%s145] %v170
                %v172 = vld [vmem:[%s152 + $0x24] sm:%s145]
                %173 = vst [vmem:[%s153 + $0x24] sm:%s145] %v172
                %v174 = vld [vmem:[%s152 + $0x28] sm:%s145]
                %175 = vst [vmem:[%s153 + $0x28] sm:%s145] %v174
                %v176 = vld [vmem:[%s152 + $0x2c] sm:%s145]
                %177 = vst [vmem:[%s153 + $0x2c] sm:%s145] %v176
                %v178 = vld [vmem:[%s152 + $0x30] sm:%s145]
                %179 = vst [vmem:[%s153 + $0x30] sm:%s145] %v178
                %v180 = vld [vmem:[%s152 + $0x34] sm:%s145]
                %181 = vst [vmem:[%s153 + $0x34] sm:%s145] %v180
                %v182 = vld [vmem:[%s152 + $0x38] sm:%s145]
                %183 = vst [vmem:[%s153 + $0x38] sm:%s145] %v182
                %v184 = vld [vmem:[%s152 + $0x3c] sm:%s145]
                %185 = vst [vmem:[%s153 + $0x3c] sm:%s145] %v184
                %v186 = vld [vmem:[%s152 + $0x40] sm:%s145]
                %187 = vst [vmem:[%s153 + $0x40] sm:%s145] %v186
                %v188 = vld [vmem:[%s152 + $0x44] sm:%s145]
                %189 = vst [vmem:[%s153 + $0x44] sm:%s145] %v188
                %v190 = vld [vmem:[%s152 + $0x48] sm:%s145]
                %191 = vst [vmem:[%s153 + $0x48] sm:%s145] %v190
                %v192 = vld [vmem:[%s152 + $0x4c] sm:%s145]
                %193 = vst [vmem:[%s153 + $0x4c] sm:%s145] %v192
                %v194 = vld [vmem:[%s152 + $0x50] sm:%s145]
                %195 = vst [vmem:[%s153 + $0x50] sm:%s145] %v194
                %v196 = vld [vmem:[%s152 + $0x54] sm:%s145]
                %197 = vst [vmem:[%s153 + $0x54] sm:%s145] %v196
                %v198 = vld [vmem:[%s152 + $0x58] sm:%s145]
                %199 = vst [vmem:[%s153 + $0x58] sm:%s145] %v198
                %v200 = vld [vmem:[%s152 + $0x5c] sm:%s145]
                %201 = vst [vmem:[%s153 + $0x5c] sm:%s145] %v200
                %v202 = vld [vmem:[%s152 + $0x60] sm:%s145]
                %203 = vst [vmem:[%s153 + $0x60] sm:%s145] %v202
                %v204 = vld [vmem:[%s152 + $0x64] sm:%s145]
                %205 = vst [vmem:[%s153 + $0x64] sm:%s145] %v204
                %v206 = vld [vmem:[%s152 + $0xd0] sm:%s145]
                %207 = vst [vmem:[%s153 + $0x68] sm:%s145] %v206
                %v208 = vld [vmem:[%s152 + $0xd4] sm:%s145]
                %209 = vst [vmem:[%s153 + $0x6c] sm:%s145] %v208
                %v210 = vld [vmem:[%s152 + $0xd8] sm:%s145]
                %211 = vst [vmem:[%s153 + $0x70] sm:%s145] %v210
                %v212 = vld [vmem:[%s152 + $0xdc] sm:%s145]
                %213 = vst [vmem:[%s153 + $0x74] sm:%s145] %v212
                %v214 = vld [vmem:[%s152 + $0xe0] sm:%s145]
                %215 = vst [vmem:[%s153 + $0x78] sm:%s145] %v214
                %v216 = vld [vmem:[%s152 + $0xe4] sm:%s145]
                %217 = vst [vmem:[%s153 + $0x7c] sm:%s145] %v216
                %v218 = vld [vmem:[%s152 + $0xe8] sm:%s145]
                %219 = vst [vmem:[%s153 + $0x80] sm:%s145] %v218
                %v220 = vld [vmem:[%s152 + $0xec] sm:%s145]
                %221 = vst [vmem:[%s153 + $0x84] sm:%s145] %v220
                %v222 = vld [vmem:[%s152 + $0xf0] sm:%s145]
                %223 = vst [vmem:[%s153 + $0x88] sm:%s145] %v222
                %v224 = vld [vmem:[%s152 + $0xf4] sm:%s145]
                %225 = vst [vmem:[%s153 + $0x8c] sm:%s145] %v224
                %v226 = vld [vmem:[%s152 + $0xf8] sm:%s145]
                %227 = vst [vmem:[%s153 + $0x90] sm:%s145] %v226
                %v228 = vld [vmem:[%s152 + $0xfc] sm:%s145]
                %229 = vst [vmem:[%s153 + $0x94] sm:%s145] %v228
                %v230 = vld [vmem:[%s152 + $0x100] sm:%s145]
                %231 = vst [vmem:[%s153 + $0x98] sm:%s145] %v230
                %v232 = vld [vmem:[%s152 + $0x104] sm:%s145]
                %233 = vst [vmem:[%s153 + $0x9c] sm:%s145] %v232
                %v234 = vld [vmem:[%s152 + $0x108] sm:%s145]
                %235 = vst [vmem:[%s153 + $0xa0] sm:%s145] %v234
                %v236 = vld [vmem:[%s152 + $0x10c] sm:%s145]
                %237 = vst [vmem:[%s153 + $0xa4] sm:%s145] %v236
                %v238 = vld [vmem:[%s152 + $0x110] sm:%s145]
                %239 = vst [vmem:[%s153 + $0xa8] sm:%s145] %v238
                %v240 = vld [vmem:[%s152 + $0x114] sm:%s145]
                %241 = vst [vmem:[%s153 + $0xac] sm:%s145] %v240
                %v242 = vld [vmem:[%s152 + $0x118] sm:%s145]
                %243 = vst [vmem:[%s153 + $0xb0] sm:%s145] %v242
                %v244 = vld [vmem:[%s152 + $0x11c] sm:%s145]
                %245 = vst [vmem:[%s153 + $0xb4] sm:%s145] %v244
                %v246 = vld [vmem:[%s152 + $0x120] sm:%s145]
                %247 = vst [vmem:[%s153 + $0xb8] sm:%s145] %v246
                %v248 = vld [vmem:[%s152 + $0x124] sm:%s145]
                %249 = vst [vmem:[%s153 + $0xbc] sm:%s145] %v248
                %v250 = vld [vmem:[%s152 + $0x128] sm:%s145]
                %251 = vst [vmem:[%s153 + $0xc0] sm:%s145] %v250
                %v252 = vld [vmem:[%s152 + $0x12c] sm:%s145]
                %253 = vst [vmem:[%s153 + $0xc4] sm:%s145] %v252
                %v254 = vld [vmem:[%s152 + $0x130] sm:%s145]
                %255 = vst [vmem:[%s153 + $0xc8] sm:%s145] %v254
                %v256 = vld [vmem:[%s152 + $0x134] sm:%s145]
                %257 = vst [vmem:[%s153 + $0xcc] sm:%s145] %v256
                %v258 = vld [vmem:[%s152 + $0x1a0] sm:%s145]
                %259 = vst [vmem:[%s153 + $0xd0] sm:%s145] %v258
                %v260 = vld [vmem:[%s152 + $0x1a4] sm:%s145]
                %261 = vst [vmem:[%s153 + $0xd4] sm:%s145] %v260
                %v262 = vld [vmem:[%s152 + $0x1a8] sm:%s145]
                %263 = vst [vmem:[%s153 + $0xd8] sm:%s145] %v262
                %v264 = vld [vmem:[%s152 + $0x1ac] sm:%s145]
                %265 = vst [vmem:[%s153 + $0xdc] sm:%s145] %v264
                %v266 = vld [vmem:[%s152 + $0x1b0] sm:%s145]
                %267 = vst [vmem:[%s153 + $0xe0] sm:%s145] %v266
                %v268 = vld [vmem:[%s152 + $0x1b4] sm:%s145]
                %269 = vst [vmem:[%s153 + $0xe4] sm:%s145] %v268
                %v270 = vld [vmem:[%s152 + $0x1b8] sm:%s145]
                %271 = vst [vmem:[%s153 + $0xe8] sm:%s145] %v270
                %v272 = vld [vmem:[%s152 + $0x1bc] sm:%s145]
                %273 = vst [vmem:[%s153 + $0xec] sm:%s145] %v272
                %v274 = vld [vmem:[%s152 + $0x1c0] sm:%s145]
                %275 = vst [vmem:[%s153 + $0xf0] sm:%s145] %v274
                %v276 = vld [vmem:[%s152 + $0x1c4] sm:%s145]
                %277 = vst [vmem:[%s153 + $0xf4] sm:%s145] %v276
                %v278 = vld [vmem:[%s152 + $0x1c8] sm:%s145]
                %279 = vst [vmem:[%s153 + $0xf8] sm:%s145] %v278
                %v280 = vld [vmem:[%s152 + $0x1cc] sm:%s145]
                %281 = vst [vmem:[%s153 + $0xfc] sm:%s145] %v280
                %v282 = vld [vmem:[%s152 + $0x1d0] sm:%s145]
                %283 = vst [vmem:[%s153 + $0x100] sm:%s145] %v282
                %v284 = vld [vmem:[%s152 + $0x1d4] sm:%s145]
                %285 = vst [vmem:[%s153 + $0x104] sm:%s145] %v284
                %v286 = vld [vmem:[%s152 + $0x1d8] sm:%s145]
                %287 = vst [vmem:[%s153 + $0x108] sm:%s145] %v286
                %v288 = vld [vmem:[%s152 + $0x1dc] sm:%s145]
                %289 = vst [vmem:[%s153 + $0x10c] sm:%s145] %v288
                %v290 = vld [vmem:[%s152 + $0x1e0] sm:%s145]
                %291 = vst [vmem:[%s153 + $0x110] sm:%s145] %v290
                %v292 = vld [vmem:[%s152 + $0x1e4] sm:%s145]
                %293 = vst [vmem:[%s153 + $0x114] sm:%s145] %v292
                %v294 = vld [vmem:[%s152 + $0x1e8] sm:%s145]
                %295 = vst [vmem:[%s153 + $0x118] sm:%s145] %v294
                %v296 = vld [vmem:[%s152 + $0x1ec] sm:%s145]
                %297 = vst [vmem:[%s153 + $0x11c] sm:%s145] %v296
                %v298 = vld [vmem:[%s152 + $0x1f0] sm:%s145]
                %299 = vst [vmem:[%s153 + $0x120] sm:%s145] %v298
                %v300 = vld [vmem:[%s152 + $0x1f4] sm:%s145]
                %301 = vst [vmem:[%s153 + $0x124] sm:%s145] %v300
                %v302 = vld [vmem:[%s152 + $0x1f8] sm:%s145]
                %303 = vst [vmem:[%s153 + $0x128] sm:%s145] %v302
                %v304 = vld [vmem:[%s152 + $0x1fc] sm:%s145]
                %305 = vst [vmem:[%s153 + $0x12c] sm:%s145] %v304
                %v306 = vld [vmem:[%s152 + $0x200] sm:%s145]
                %307 = vst [vmem:[%s153 + $0x130] sm:%s145] %v306
                %v308 = vld [vmem:[%s152 + $0x204] sm:%s145]
                %309 = vst [vmem:[%s153 + $0x134] sm:%s145] %v308
                %v310 = vld [vmem:[%s152 + $0x270] sm:%s145]
                %311 = vst [vmem:[%s153 + $0x138] sm:%s145] %v310
                %v312 = vld [vmem:[%s152 + $0x274] sm:%s145]
                %313 = vst [vmem:[%s153 + $0x13c] sm:%s145] %v312
                %v314 = vld [vmem:[%s152 + $0x278] sm:%s145]
                %315 = vst [vmem:[%s153 + $0x140] sm:%s145] %v314
                %v316 = vld [vmem:[%s152 + $0x27c] sm:%s145]
                %317 = vst [vmem:[%s153 + $0x144] sm:%s145] %v316
                %v318 = vld [vmem:[%s152 + $0x280] sm:%s145]
                %319 = vst [vmem:[%s153 + $0x148] sm:%s145] %v318
                %v320 = vld [vmem:[%s152 + $0x284] sm:%s145]
                %321 = vst [vmem:[%s153 + $0x14c] sm:%s145] %v320
                %v322 = vld [vmem:[%s152 + $0x288] sm:%s145]
                %323 = vst [vmem:[%s153 + $0x150] sm:%s145] %v322
                %v324 = vld [vmem:[%s152 + $0x28c] sm:%s145]
                %325 = vst [vmem:[%s153 + $0x154] sm:%s145] %v324
                %v326 = vld [vmem:[%s152 + $0x290] sm:%s145]
                %327 = vst [vmem:[%s153 + $0x158] sm:%s145] %v326
                %v328 = vld [vmem:[%s152 + $0x294] sm:%s145]
                %329 = vst [vmem:[%s153 + $0x15c] sm:%s145] %v328
                %v330 = vld [vmem:[%s152 + $0x298] sm:%s145]
                %331 = vst [vmem:[%s153 + $0x160] sm:%s145] %v330
                %v332 = vld [vmem:[%s152 + $0x29c] sm:%s145]
                %333 = vst [vmem:[%s153 + $0x164] sm:%s145] %v332
                %v334 = vld [vmem:[%s152 + $0x2a0] sm:%s145]
                %335 = vst [vmem:[%s153 + $0x168] sm:%s145] %v334
                %v336 = vld [vmem:[%s152 + $0x2a4] sm:%s145]
                %337 = vst [vmem:[%s153 + $0x16c] sm:%s145] %v336
                %v338 = vld [vmem:[%s152 + $0x2a8] sm:%s145]
                %339 = vst [vmem:[%s153 + $0x170] sm:%s145] %v338
                %v340 = vld [vmem:[%s152 + $0x2ac] sm:%s145]
                %341 = vst [vmem:[%s153 + $0x174] sm:%s145] %v340
                %v342 = vld [vmem:[%s152 + $0x2b0] sm:%s145]
                %343 = vst [vmem:[%s153 + $0x178] sm:%s145] %v342
                %v344 = vld [vmem:[%s152 + $0x2b4] sm:%s145]
                %345 = vst [vmem:[%s153 + $0x17c] sm:%s145] %v344
                %v346 = vld [vmem:[%s152 + $0x2b8] sm:%s145]
                %347 = vst [vmem:[%s153 + $0x180] sm:%s145] %v346
                %v348 = vld [vmem:[%s152 + $0x2bc] sm:%s145]
                %349 = vst [vmem:[%s153 + $0x184] sm:%s145] %v348
                %v350 = vld [vmem:[%s152 + $0x2c0] sm:%s145]
                %351 = vst [vmem:[%s153 + $0x188] sm:%s145] %v350
                %v352 = vld [vmem:[%s152 + $0x2c4] sm:%s145]
                %353 = vst [vmem:[%s153 + $0x18c] sm:%s145] %v352
                %v354 = vld [vmem:[%s152 + $0x2c8] sm:%s145]
                %355 = vst [vmem:[%s153 + $0x190] sm:%s145] %v354
                %v356 = vld [vmem:[%s152 + $0x2cc] sm:%s145]
                %357 = vst [vmem:[%s153 + $0x194] sm:%s145] %v356
                %v358 = vld [vmem:[%s152 + $0x2d0] sm:%s145]
                %359 = vst [vmem:[%s153 + $0x198] sm:%s145] %v358
                %v360 = vld [vmem:[%s152 + $0x2d4] sm:%s145]
                %361 = vst [vmem:[%s153 + $0x19c] sm:%s145] %v360
              $region45: #{convnet_forward.3} parent=39 // loop_footer
                %s151 = sadd.s32 1, %s147
              $region46: #{convnet_forward.3} parent=39 // loop_footer_branch
                %146 = sbr.rel target = $region42
              $region47: #{convnet_forward.3} parent=39 // loop_exit
                _
            $region40: #{convnet_forward.3} parent=31 // pred_fallthru
              _
          $region32: #{convnet_forward.3} parent=27 // pred_fallthru
            _
          %590 = vnop
        $region28: #{convnet_forward.3} parent=23 // pred_fallthru
          _
      $region24: #{convnet_forward.3} parent=5 // pred_fallthru
        _
      %p591 = scmp.le.s32.totalorder 1, %s9
      %p592 = scmp.lt.s32.totalorder %s9, 3
      %p593 = pnand %p591, %p592
      %p594 = pneg %p593
      // Predicated region
      $region66: #{convnet_forward.3} parent=5 // pred_check
        _
      $region67: #{convnet_forward.3} parent=5 // pred_check_branch
        %596 = sbr.rel (%p593) target = $region69
      $region68: #{convnet_forward.3} parent=5 // pred_region
        %s597 = ssub.s32 %s9, 1
        %s598 = sand.u32 %s22, 1
        %s599 = sand.u32 %s22, 1
        %s600 = smul.addr %s599, 416
        %s601 = scalar_lea.vmem [#allocation2], %s600
        // Predicated region
        $region70: #{convnet_forward.3} parent=68 // pred_check
          %p602 = pneg %p35
        $region71: #{convnet_forward.3} parent=68 // pred_check_branch
          %604 = sbr.rel (%p602) target = $region73
        $region72: #{convnet_forward.3} parent=68 // pred_region
          _
        $region73: #{convnet_forward.3} parent=68 // pred_fallthru
          _
        %s605 = sand.u32 %s22, 1
        %s606 = sand.u32 %s22, 1
        %s607 = smul.addr %s606, 416
        %s608 = scalar_lea.vmem [#allocation2], %s607
        %p609 = pneg %p35
        %p610 = pneg %p32
        %p611 = pneg %p56
        %p612 = pneg %p53
        %p613 = pneg %p77
        %p614 = pneg %p74
        %p615 = pneg %p103
        %p616 = pneg %p100
        %s617 = smul.u32 26, %s14
        %p618 = scmp.lt.s32.totalorder %s617, 51
        %s619 = scalar_select %p618, %s617, 51
        %s620 = smul.addr %s619, 4
        %s621 = scalar_lea.vmem %s3, %s620
        %s622 = smul.u32 26, %s14
        %s623 = smul.u32 26, %s14
        %p624 = scmp.lt.s32.totalorder %s623, 51
        %s625 = scalar_select %p624, %s623, 51
        %s626 = smul.addr %s625, 4
        %s627 = scalar_lea.vmem %s3, %s626
        %s628 = smul.u32 26, %s14
        %v630 = vld [vmem:[%s1] sm:$0xf]
        %v631 = vld [vmem:[%s1 + $0x4] sm:$0xf]
        %v632 = vld [vmem:[%s1 + $0x8] sm:$0xf]
        %v633 = vld [vmem:[%s1 + $0xc] sm:$0xf]
        %v634 = vld [vmem:[%s1 + $0x10] sm:$0xf]
        %v635 = vld [vmem:[%s1 + $0x14] sm:$0xf]
        %v636 = vld [vmem:[%s1 + $0x18] sm:$0xf]
        %v637 = vld [vmem:[%s1 + $0x1c] sm:$0xf]
        %v638 = vld [vmem:[%s1 + $0x20] sm:$0xf]
        %v639 = vld [vmem:[%s1 + $0x24] sm:$0x3]
        %v640 = vld [vmem:[%s601] sm:$0xf]
        %v641 = vld [vmem:[%s601 + $0x4] sm:$0xf]
        %v642 = vld [vmem:[%s601 + $0x8] sm:$0xf]
        %v643 = vld [vmem:[%s601 + $0xc] sm:$0xf]
        %v644 = vld [vmem:[%s601 + $0x10] sm:$0xf]
        %v645 = vld [vmem:[%s601 + $0x14] sm:$0xf]
        %v646 = vld [vmem:[%s601 + $0x18] sm:$0xf]
        %v647 = vld [vmem:[%s601 + $0x1c] sm:$0xf]
        %v648 = vld [vmem:[%s601 + $0x20] sm:$0xf]
        %v649 = vld [vmem:[%s601 + $0x24] sm:$0xf]
        %v650 = vld [vmem:[%s601 + $0x28] sm:$0xf]
        %v651 = vld [vmem:[%s601 + $0x2c] sm:$0xf]
        %v652 = vld [vmem:[%s601 + $0x30] sm:$0xf]
        %v653 = vld [vmem:[%s601 + $0x34] sm:$0xf]
        %v654 = vld [vmem:[%s601 + $0x38] sm:$0xf]
        %v655 = vld [vmem:[%s601 + $0x3c] sm:$0xf]
        %v656 = vld [vmem:[%s601 + $0x40] sm:$0xf]
        %v657 = vld [vmem:[%s601 + $0x44] sm:$0xf]
        %v658 = vld [vmem:[%s601 + $0x48] sm:$0xf]
        %v659 = vld [vmem:[%s601 + $0x4c] sm:$0xf]
        %v660 = vld [vmem:[%s601 + $0x50] sm:$0xf]
        %v661 = vld [vmem:[%s601 + $0x54] sm:$0xf]
        %v662 = vld [vmem:[%s601 + $0x58] sm:$0xf]
        %v663 = vld [vmem:[%s601 + $0x5c] sm:$0xf]
        %v664 = vld [vmem:[%s601 + $0x60] sm:$0xf]
        %v665 = vld [vmem:[%s601 + $0x64] sm:$0xf]
        %v692 = vunpack.c.l.b16 %v640
        %v693 = vunpack.c.l.b16 %v641
        %v694 = vunpack.c.l.b16 %v642
        %v695 = vunpack.c.l.b16 %v643
        %v696 = vunpack.c.l.b16 %v644
        %v697 = vunpack.c.l.b16 %v645
        %v698 = vunpack.c.l.b16 %v646
        %v699 = vunpack.c.l.b16 %v647
        %v700 = vunpack.c.l.b16 %v648
        %v701 = vunpack.c.l.b16 %v649
        %v702 = vunpack.c.l.b16 %v650
        %v703 = vunpack.c.l.b16 %v651
        %v704 = vunpack.c.l.b16 %v652
        %v705 = vunpack.c.l.b16 %v653
        %v706 = vunpack.c.l.b16 %v654
        %v707 = vunpack.c.l.b16 %v655
        %v708 = vunpack.c.l.b16 %v656
        %v709 = vunpack.c.l.b16 %v657
        %v710 = vunpack.c.l.b16 %v658
        %v711 = vunpack.c.l.b16 %v659
        %v712 = vunpack.c.l.b16 %v660
        %v713 = vunpack.c.l.b16 %v661
        %v714 = vunpack.c.l.b16 %v662
        %v715 = vunpack.c.l.b16 %v663
        %v716 = vunpack.c.l.b16 %v664
        %v717 = vunpack.c.l.b16 %v665
        %v718 = vpack.c.b16 %v693, %v692
        %v719 = vpack.c.b16 %v695, %v694
        %v720 = vpack.c.b16 %v697, %v696
        %v721 = vpack.c.b16 %v699, %v698
        %v722 = vpack.c.b16 %v701, %v700
        %v723 = vpack.c.b16 %v703, %v702
        %v724 = vpack.c.b16 %v705, %v704
        %v725 = vpack.c.b16 %v707, %v706
        %v726 = vpack.c.b16 %v709, %v708
        %v727 = vpack.c.b16 %v711, %v710
        %v728 = vpack.c.b16 %v713, %v712
        %v729 = vpack.c.b16 %v715, %v714
        %v730 = vpack.c.b16 %v717, %v716
        %v741 = vunpack.c.l.b16 %v630
        %v742 = vunpack.c.l.b16 %v631
        %v743 = vunpack.c.l.b16 %v632
        %v744 = vunpack.c.l.b16 %v633
        %v745 = vunpack.c.l.b16 %v634
        %v746 = vunpack.c.l.b16 %v635
        %v747 = vunpack.c.l.b16 %v636
        %v748 = vunpack.c.l.b16 %v637
        %v749 = vunpack.c.l.b16 %v638
        %v750 = vunpack.c.l.b16 %v639
        %v751 = vpack.c.b16 %v742, %v741
        %v752 = vpack.c.b16 %v744, %v743
        %v753 = vpack.c.b16 %v746, %v745
        %v754 = vpack.c.b16 %v748, %v747
        %v755 = vpack.c.b16 %v750, %v749
        %vm760 = vcmask 613376
        %v762 = vsel %vm760, %v718, 0
        %v765 = vsel %vm760, %v719, 0
        %v768 = vsel %vm760, %v720, 0
        %v771 = vsel %vm760, %v721, 0
        %v774 = vsel %vm760, %v722, 0
        %v777 = vsel %vm760, %v723, 0
        %v780 = vsel %vm760, %v724, 0
        %v783 = vsel %vm760, %v725, 0
        %v786 = vsel %vm760, %v726, 0
        %v789 = vsel %vm760, %v727, 0
        %v792 = vsel %vm760, %v728, 0
        %v795 = vsel %vm760, %v729, 0
        %v798 = vsel %vm760, %v730, 0
        %vm800 = vcmask 1044480
        %vm801 = vcmask 1045504
        %v802 = vsel %vm800, 4294967295, 65535
        %v803 = vsel %vm801, %v802, 0
        %v805 = vand.u32 %v755, %v803
        %807 = vmatprep.subr.bf16.mxu0 0
        %808 = vmatpush1.bf16.msra.mxu0 0
        %809 = vmatprep.subr.bf16.mxu0 0
        %810 = vmatpush1.bf16.msra.mxu0 0
        %811 = vmatprep.subr.bf16.mxu0 0
        %812 = vmatpush1.bf16.msra.mxu0 0
        %813 = vmatprep.subr.bf16.mxu0 0
        %814 = vmatpush1.bf16.msra.mxu0 %v805
        %815 = vmatprep.subr.bf16.mxu0 0
        %816 = vmatpush1.bf16.msra.mxu0 %v754
        %817 = vmatprep.subr.bf16.mxu0 0
        %818 = vmatpush1.bf16.msra.mxu0 %v753
        %819 = vmatprep.subr.bf16.mxu0 0
        %820 = vmatpush1.bf16.msra.mxu0 %v752
        %821 = vmatprep.subr.bf16.mxu0 0
        %822 = vmatpush1.bf16.msra.mxu0 %v751
        %823 = vmatprep.subr.bf16.mxu0 0
        %824 = vmatpush2.bf16.msra.mxu0 0
        %825 = vmatprep.subr.bf16.mxu0 0
        %826 = vmatpush2.bf16.msra.mxu0 0
        %827 = vmatprep.subr.bf16.mxu0 0
        %828 = vmatpush2.bf16.msra.mxu0 0
        %829 = vmatprep.subr.bf16.mxu0 0
        %830 = vmatpush2.bf16.msra.mxu0 0
        %831 = vmatprep.subr.bf16.mxu0 0
        %832 = vmatpush2.bf16.msra.mxu0 0
        %833 = vmatprep.subr.bf16.mxu0 0
        %834 = vmatpush2.bf16.msra.mxu0 0
        %835 = vmatprep.subr.bf16.mxu0 0
        %836 = vmatpush2.bf16.msra.mxu0 0
        %837 = vmatprep.subr.bf16.mxu0 0
        %838 = vmatpush2.bf16.msra.mxu0 0
        %839 = vmatprep.mubr.bf16.mxu0 0
        %840 = vmatmul.mubr.bf16.gmra.mxu0 %v762
        %v841 = vpop.f32.mrf.mxu0
        %v842 = vadd.f32 0.0, %v841
        %v843 = vpop.f32.mrf.mxu0
        %v844 = vpop.f32.mrf.mxu0
        %v845 = vadd.f32 0.0, %v844
        %v846 = vpop.f32.mrf.mxu0
        %847 = vmatprep.mubr.bf16.mxu0 0
        %848 = vmatmul.mubr.bf16.gmra.mxu0 %v765
        %v849 = vpop.f32.mrf.mxu0
        %v850 = vadd.f32 0.0, %v849
        %v851 = vpop.f32.mrf.mxu0
        %v852 = vpop.f32.mrf.mxu0
        %v853 = vadd.f32 0.0, %v852
        %v854 = vpop.f32.mrf.mxu0
        %855 = vmatprep.mubr.bf16.mxu0 0
        %856 = vmatmul.mubr.bf16.gmra.mxu0 %v768
        %v857 = vpop.f32.mrf.mxu0
        %v858 = vadd.f32 0.0, %v857
        %v859 = vpop.f32.mrf.mxu0
        %v860 = vpop.f32.mrf.mxu0
        %v861 = vadd.f32 0.0, %v860
        %v862 = vpop.f32.mrf.mxu0
        %863 = vmatprep.mubr.bf16.mxu0 0
        %864 = vmatmul.mubr.bf16.gmra.mxu0 %v771
        %v865 = vpop.f32.mrf.mxu0
        %v866 = vadd.f32 0.0, %v865
        %v867 = vpop.f32.mrf.mxu0
        %v868 = vpop.f32.mrf.mxu0
        %v869 = vadd.f32 0.0, %v868
        %v870 = vpop.f32.mrf.mxu0
        %871 = vmatprep.mubr.bf16.mxu0 0
        %872 = vmatmul.mubr.bf16.gmra.mxu0 %v774
        %v873 = vpop.f32.mrf.mxu0
        %v874 = vadd.f32 0.0, %v873
        %v875 = vpop.f32.mrf.mxu0
        %v876 = vpop.f32.mrf.mxu0
        %v877 = vadd.f32 0.0, %v876
        %v878 = vpop.f32.mrf.mxu0
        %879 = vmatprep.mubr.bf16.mxu0 0
        %880 = vmatmul.mubr.bf16.gmra.mxu0 %v777
        %v881 = vpop.f32.mrf.mxu0
        %v882 = vadd.f32 0.0, %v881
        %v883 = vpop.f32.mrf.mxu0
        %v884 = vpop.f32.mrf.mxu0
        %v885 = vadd.f32 0.0, %v884
        %v886 = vpop.f32.mrf.mxu0
        %887 = vmatprep.mubr.bf16.mxu0 0
        %888 = vmatmul.mubr.bf16.gmra.mxu0 %v780
        %v889 = vpop.f32.mrf.mxu0
        %v890 = vadd.f32 0.0, %v889
        %v891 = vpop.f32.mrf.mxu0
        %v892 = vpop.f32.mrf.mxu0
        %v893 = vadd.f32 0.0, %v892
        %v894 = vpop.f32.mrf.mxu0
        %895 = vmatprep.mubr.bf16.mxu0 0
        %896 = vmatmul.mubr.bf16.gmra.mxu0 %v783
        %v897 = vpop.f32.mrf.mxu0
        %v898 = vadd.f32 0.0, %v897
        %v899 = vpop.f32.mrf.mxu0
        %v900 = vpop.f32.mrf.mxu0
        %v901 = vadd.f32 0.0, %v900
        %v902 = vpop.f32.mrf.mxu0
        %903 = vmatprep.mubr.bf16.mxu0 0
        %904 = vmatmul.mubr.bf16.gmra.mxu0 %v786
        %v905 = vpop.f32.mrf.mxu0
        %v906 = vadd.f32 0.0, %v905
        %v907 = vpop.f32.mrf.mxu0
        %v908 = vpop.f32.mrf.mxu0
        %v909 = vadd.f32 0.0, %v908
        %v910 = vpop.f32.mrf.mxu0
        %911 = vmatprep.mubr.bf16.mxu0 0
        %912 = vmatmul.mubr.bf16.gmra.mxu0 %v789
        %v913 = vpop.f32.mrf.mxu0
        %v914 = vadd.f32 0.0, %v913
        %v915 = vpop.f32.mrf.mxu0
        %v916 = vpop.f32.mrf.mxu0
        %v917 = vadd.f32 0.0, %v916
        %v918 = vpop.f32.mrf.mxu0
        %919 = vmatprep.mubr.bf16.mxu0 0
        %920 = vmatmul.mubr.bf16.gmra.mxu0 %v792
        %v921 = vpop.f32.mrf.mxu0
        %v922 = vadd.f32 0.0, %v921
        %v923 = vpop.f32.mrf.mxu0
        %v924 = vpop.f32.mrf.mxu0
        %v925 = vadd.f32 0.0, %v924
        %v926 = vpop.f32.mrf.mxu0
        %927 = vmatprep.mubr.bf16.mxu0 0
        %928 = vmatmul.mubr.bf16.gmra.mxu0 %v795
        %v929 = vpop.f32.mrf.mxu0
        %v930 = vadd.f32 0.0, %v929
        %v931 = vpop.f32.mrf.mxu0
        %v932 = vpop.f32.mrf.mxu0
        %v933 = vadd.f32 0.0, %v932
        %v934 = vpop.f32.mrf.mxu0
        %935 = vmatprep.mubr.bf16.mxu0 0
        %936 = vmatmul.mubr.bf16.gmra.mxu0 %v798
        %v937 = vpop.f32.mrf.mxu0
        %v938 = vadd.f32 0.0, %v937
        %v939 = vpop.f32.mrf.mxu0
        %v940 = vpop.f32.mrf.mxu0
        %v941 = vadd.f32 0.0, %v940
        %v942 = vpop.f32.mrf.mxu0
        %943 = vdwg.mxu0
        %s944 = scalar_lea.vmem %s601, 104 [#allocation2]
        %v945 = vld [vmem:[%s944] sm:$0xf]
        %v946 = vld [vmem:[%s944 + $0x4] sm:$0xf]
        %v947 = vld [vmem:[%s944 + $0x8] sm:$0xf]
        %v948 = vld [vmem:[%s944 + $0xc] sm:$0xf]
        %v949 = vld [vmem:[%s944 + $0x10] sm:$0xf]
        %v950 = vld [vmem:[%s944 + $0x14] sm:$0xf]
        %v951 = vld [vmem:[%s944 + $0x18] sm:$0xf]
        %v952 = vld [vmem:[%s944 + $0x1c] sm:$0xf]
        %v953 = vld [vmem:[%s944 + $0x20] sm:$0xf]
        %v954 = vld [vmem:[%s944 + $0x24] sm:$0xf]
        %v955 = vld [vmem:[%s944 + $0x28] sm:$0xf]
        %v956 = vld [vmem:[%s944 + $0x2c] sm:$0xf]
        %v957 = vld [vmem:[%s944 + $0x30] sm:$0xf]
        %v958 = vld [vmem:[%s944 + $0x34] sm:$0xf]
        %v959 = vld [vmem:[%s944 + $0x38] sm:$0xf]
        %v960 = vld [vmem:[%s944 + $0x3c] sm:$0xf]
        %v961 = vld [vmem:[%s944 + $0x40] sm:$0xf]
        %v962 = vld [vmem:[%s944 + $0x44] sm:$0xf]
        %v963 = vld [vmem:[%s944 + $0x48] sm:$0xf]
        %v964 = vld [vmem:[%s944 + $0x4c] sm:$0xf]
        %v965 = vld [vmem:[%s944 + $0x50] sm:$0xf]
        %v966 = vld [vmem:[%s944 + $0x54] sm:$0xf]
        %v967 = vld [vmem:[%s944 + $0x58] sm:$0xf]
        %v968 = vld [vmem:[%s944 + $0x5c] sm:$0xf]
        %v969 = vld [vmem:[%s944 + $0x60] sm:$0xf]
        %v970 = vld [vmem:[%s944 + $0x64] sm:$0xf]
        %v997 = vunpack.c.l.b16 %v945
        %v998 = vunpack.c.l.b16 %v946
        %v999 = vunpack.c.l.b16 %v947
        %v1000 = vunpack.c.l.b16 %v948
        %v1001 = vunpack.c.l.b16 %v949
        %v1002 = vunpack.c.l.b16 %v950
        %v1003 = vunpack.c.l.b16 %v951
        %v1004 = vunpack.c.l.b16 %v952
        %v1005 = vunpack.c.l.b16 %v953
        %v1006 = vunpack.c.l.b16 %v954
        %v1007 = vunpack.c.l.b16 %v955
        %v1008 = vunpack.c.l.b16 %v956
        %v1009 = vunpack.c.l.b16 %v957
        %v1010 = vunpack.c.l.b16 %v958
        %v1011 = vunpack.c.l.b16 %v959
        %v1012 = vunpack.c.l.b16 %v960
        %v1013 = vunpack.c.l.b16 %v961
        %v1014 = vunpack.c.l.b16 %v962
        %v1015 = vunpack.c.l.b16 %v963
        %v1016 = vunpack.c.l.b16 %v964
        %v1017 = vunpack.c.l.b16 %v965
        %v1018 = vunpack.c.l.b16 %v966
        %v1019 = vunpack.c.l.b16 %v967
        %v1020 = vunpack.c.l.b16 %v968
        %v1021 = vunpack.c.l.b16 %v969
        %v1022 = vunpack.c.l.b16 %v970
        %v1023 = vpack.c.b16 %v998, %v997
        %v1024 = vpack.c.b16 %v1000, %v999
        %v1025 = vpack.c.b16 %v1002, %v1001
        %v1026 = vpack.c.b16 %v1004, %v1003
        %v1027 = vpack.c.b16 %v1006, %v1005
        %v1028 = vpack.c.b16 %v1008, %v1007
        %v1029 = vpack.c.b16 %v1010, %v1009
        %v1030 = vpack.c.b16 %v1012, %v1011
        %v1031 = vpack.c.b16 %v1014, %v1013
        %v1032 = vpack.c.b16 %v1016, %v1015
        %v1033 = vpack.c.b16 %v1018, %v1017
        %v1034 = vpack.c.b16 %v1020, %v1019
        %v1035 = vpack.c.b16 %v1022, %v1021
        %v1037 = vsel %vm760, %v1023, 0
        %v1040 = vsel %vm760, %v1024, 0
        %v1043 = vsel %vm760, %v1025, 0
        %v1046 = vsel %vm760, %v1026, 0
        %v1049 = vsel %vm760, %v1027, 0
        %v1052 = vsel %vm760, %v1028, 0
        %v1055 = vsel %vm760, %v1029, 0
        %v1058 = vsel %vm760, %v1030, 0
        %v1061 = vsel %vm760, %v1031, 0
        %v1064 = vsel %vm760, %v1032, 0
        %v1067 = vsel %vm760, %v1033, 0
        %v1070 = vsel %vm760, %v1034, 0
        %v1073 = vsel %vm760, %v1035, 0
        %1075 = vmatprep.subr.bf16.mxu0 0
        %1076 = vmatpush1.bf16.msra.mxu0 0
        %1077 = vmatprep.subr.bf16.mxu0 0
        %1078 = vmatpush1.bf16.msra.mxu0 0
        %1079 = vmatprep.subr.bf16.mxu0 0
        %1080 = vmatpush1.bf16.msra.mxu0 0
        %1081 = vmatprep.subr.bf16.mxu0 0
        %1082 = vmatpush1.bf16.msra.mxu0 %v805
        %1083 = vmatprep.subr.bf16.mxu0 0
        %1084 = vmatpush1.bf16.msra.mxu0 %v754
        %1085 = vmatprep.subr.bf16.mxu0 0
        %1086 = vmatpush1.bf16.msra.mxu0 %v753
        %1087 = vmatprep.subr.bf16.mxu0 0
        %1088 = vmatpush1.bf16.msra.mxu0 %v752
        %1089 = vmatprep.subr.bf16.mxu0 0
        %1090 = vmatpush1.bf16.msra.mxu0 %v751
        %1091 = vmatprep.subr.bf16.mxu0 0
        %1092 = vmatpush2.bf16.msra.mxu0 0
        %1093 = vmatprep.subr.bf16.mxu0 0
        %1094 = vmatpush2.bf16.msra.mxu0 0
        %1095 = vmatprep.subr.bf16.mxu0 0
        %1096 = vmatpush2.bf16.msra.mxu0 0
        %1097 = vmatprep.subr.bf16.mxu0 0
        %1098 = vmatpush2.bf16.msra.mxu0 0
        %1099 = vmatprep.subr.bf16.mxu0 0
        %1100 = vmatpush2.bf16.msra.mxu0 0
        %1101 = vmatprep.subr.bf16.mxu0 0
        %1102 = vmatpush2.bf16.msra.mxu0 0
        %1103 = vmatprep.subr.bf16.mxu0 0
        %1104 = vmatpush2.bf16.msra.mxu0 0
        %1105 = vmatprep.subr.bf16.mxu0 0
        %1106 = vmatpush2.bf16.msra.mxu0 0
        %1107 = vmatprep.mubr.bf16.mxu0 0
        %1108 = vmatmul.mubr.bf16.gmra.mxu0 %v1037
        %v1109 = vpop.f32.mrf.mxu0
        %v1110 = vadd.f32 0.0, %v1109
        %v1111 = vpop.f32.mrf.mxu0
        %v1112 = vpop.f32.mrf.mxu0
        %v1113 = vadd.f32 0.0, %v1112
        %v1114 = vpop.f32.mrf.mxu0
        %1115 = vmatprep.mubr.bf16.mxu0 0
        %1116 = vmatmul.mubr.bf16.gmra.mxu0 %v1040
        %v1117 = vpop.f32.mrf.mxu0
        %v1118 = vadd.f32 0.0, %v1117
        %v1119 = vpop.f32.mrf.mxu0
        %v1120 = vpop.f32.mrf.mxu0
        %v1121 = vadd.f32 0.0, %v1120
        %v1122 = vpop.f32.mrf.mxu0
        %1123 = vmatprep.mubr.bf16.mxu0 0
        %1124 = vmatmul.mubr.bf16.gmra.mxu0 %v1043
        %v1125 = vpop.f32.mrf.mxu0
        %v1126 = vadd.f32 0.0, %v1125
        %v1127 = vpop.f32.mrf.mxu0
        %v1128 = vpop.f32.mrf.mxu0
        %v1129 = vadd.f32 0.0, %v1128
        %v1130 = vpop.f32.mrf.mxu0
        %1131 = vmatprep.mubr.bf16.mxu0 0
        %1132 = vmatmul.mubr.bf16.gmra.mxu0 %v1046
        %v1133 = vpop.f32.mrf.mxu0
        %v1134 = vadd.f32 0.0, %v1133
        %v1135 = vpop.f32.mrf.mxu0
        %v1136 = vpop.f32.mrf.mxu0
        %v1137 = vadd.f32 0.0, %v1136
        %v1138 = vpop.f32.mrf.mxu0
        %1139 = vmatprep.mubr.bf16.mxu0 0
        %1140 = vmatmul.mubr.bf16.gmra.mxu0 %v1049
        %v1141 = vpop.f32.mrf.mxu0
        %v1142 = vadd.f32 0.0, %v1141
        %v1143 = vpop.f32.mrf.mxu0
        %v1144 = vpop.f32.mrf.mxu0
        %v1145 = vadd.f32 0.0, %v1144
        %v1146 = vpop.f32.mrf.mxu0
        %1147 = vmatprep.mubr.bf16.mxu0 0
        %1148 = vmatmul.mubr.bf16.gmra.mxu0 %v1052
        %v1149 = vpop.f32.mrf.mxu0
        %v1150 = vadd.f32 0.0, %v1149
        %v1151 = vpop.f32.mrf.mxu0
        %v1152 = vpop.f32.mrf.mxu0
        %v1153 = vadd.f32 0.0, %v1152
        %v1154 = vpop.f32.mrf.mxu0
        %1155 = vmatprep.mubr.bf16.mxu0 0
        %1156 = vmatmul.mubr.bf16.gmra.mxu0 %v1055
        %v1157 = vpop.f32.mrf.mxu0
        %v1158 = vadd.f32 0.0, %v1157
        %v1159 = vpop.f32.mrf.mxu0
        %v1160 = vpop.f32.mrf.mxu0
        %v1161 = vadd.f32 0.0, %v1160
        %v1162 = vpop.f32.mrf.mxu0
        %1163 = vmatprep.mubr.bf16.mxu0 0
        %1164 = vmatmul.mubr.bf16.gmra.mxu0 %v1058
        %v1165 = vpop.f32.mrf.mxu0
        %v1166 = vadd.f32 0.0, %v1165
        %v1167 = vpop.f32.mrf.mxu0
        %v1168 = vpop.f32.mrf.mxu0
        %v1169 = vadd.f32 0.0, %v1168
        %v1170 = vpop.f32.mrf.mxu0
        %1171 = vmatprep.mubr.bf16.mxu0 0
        %1172 = vmatmul.mubr.bf16.gmra.mxu0 %v1061
        %v1173 = vpop.f32.mrf.mxu0
        %v1174 = vadd.f32 0.0, %v1173
        %v1175 = vpop.f32.mrf.mxu0
        %v1176 = vpop.f32.mrf.mxu0
        %v1177 = vadd.f32 0.0, %v1176
        %v1178 = vpop.f32.mrf.mxu0
        %1179 = vmatprep.mubr.bf16.mxu0 0
        %1180 = vmatmul.mubr.bf16.gmra.mxu0 %v1064
        %v1181 = vpop.f32.mrf.mxu0
        %v1182 = vadd.f32 0.0, %v1181
        %v1183 = vpop.f32.mrf.mxu0
        %v1184 = vpop.f32.mrf.mxu0
        %v1185 = vadd.f32 0.0, %v1184
        %v1186 = vpop.f32.mrf.mxu0
        %1187 = vmatprep.mubr.bf16.mxu0 0
        %1188 = vmatmul.mubr.bf16.gmra.mxu0 %v1067
        %v1189 = vpop.f32.mrf.mxu0
        %v1190 = vadd.f32 0.0, %v1189
        %v1191 = vpop.f32.mrf.mxu0
        %v1192 = vpop.f32.mrf.mxu0
        %v1193 = vadd.f32 0.0, %v1192
        %v1194 = vpop.f32.mrf.mxu0
        %1195 = vmatprep.mubr.bf16.mxu0 0
        %1196 = vmatmul.mubr.bf16.gmra.mxu0 %v1070
        %v1197 = vpop.f32.mrf.mxu0
        %v1198 = vadd.f32 0.0, %v1197
        %v1199 = vpop.f32.mrf.mxu0
        %v1200 = vpop.f32.mrf.mxu0
        %v1201 = vadd.f32 0.0, %v1200
        %v1202 = vpop.f32.mrf.mxu0
        %1203 = vmatprep.mubr.bf16.mxu0 0
        %1204 = vmatmul.mubr.bf16.gmra.mxu0 %v1073
        %v1205 = vpop.f32.mrf.mxu0
        %v1206 = vadd.f32 0.0, %v1205
        %v1207 = vpop.f32.mrf.mxu0
        %v1208 = vpop.f32.mrf.mxu0
        %v1209 = vadd.f32 0.0, %v1208
        %v1210 = vpop.f32.mrf.mxu0
        %1211 = vdwg.mxu0
        %v1212 = vmax.f32 %v842, %v1110
        %v1213 = vmax.f32 %v845, %v1113
        %v1214 = vmax.f32 %v850, %v1118
        %v1215 = vmax.f32 %v853, %v1121
        %v1216 = vmax.f32 %v858, %v1126
        %v1217 = vmax.f32 %v861, %v1129
        %v1218 = vmax.f32 %v866, %v1134
        %v1219 = vmax.f32 %v869, %v1137
        %v1220 = vmax.f32 %v874, %v1142
        %v1221 = vmax.f32 %v877, %v1145
        %v1222 = vmax.f32 %v882, %v1150
        %v1223 = vmax.f32 %v885, %v1153
        %v1224 = vmax.f32 %v890, %v1158
        %v1225 = vmax.f32 %v893, %v1161
        %v1226 = vmax.f32 %v898, %v1166
        %v1227 = vmax.f32 %v901, %v1169
        %v1228 = vmax.f32 %v906, %v1174
        %v1229 = vmax.f32 %v909, %v1177
        %v1230 = vmax.f32 %v914, %v1182
        %v1231 = vmax.f32 %v917, %v1185
        %v1232 = vmax.f32 %v922, %v1190
        %v1233 = vmax.f32 %v925, %v1193
        %v1234 = vmax.f32 %v930, %v1198
        %v1235 = vmax.f32 %v933, %v1201
        %v1236 = vmax.f32 %v938, %v1206
        %v1237 = vmax.f32 %v941, %v1209
        %s1238 = scalar_lea.vmem %s601, 208 [#allocation2]
        %v1239 = vld [vmem:[%s1238] sm:$0xf]
        %v1240 = vld [vmem:[%s1238 + $0x4] sm:$0xf]
        %v1241 = vld [vmem:[%s1238 + $0x8] sm:$0xf]
        %v1242 = vld [vmem:[%s1238 + $0xc] sm:$0xf]
        %v1243 = vld [vmem:[%s1238 + $0x10] sm:$0xf]
        %v1244 = vld [vmem:[%s1238 + $0x14] sm:$0xf]
        %v1245 = vld [vmem:[%s1238 + $0x18] sm:$0xf]
        %v1246 = vld [vmem:[%s1238 + $0x1c] sm:$0xf]
        %v1247 = vld [vmem:[%s1238 + $0x20] sm:$0xf]
        %v1248 = vld [vmem:[%s1238 + $0x24] sm:$0xf]
        %v1249 = vld [vmem:[%s1238 + $0x28] sm:$0xf]
        %v1250 = vld [vmem:[%s1238 + $0x2c] sm:$0xf]
        %v1251 = vld [vmem:[%s1238 + $0x30] sm:$0xf]
        %v1252 = vld [vmem:[%s1238 + $0x34] sm:$0xf]
        %v1253 = vld [vmem:[%s1238 + $0x38] sm:$0xf]
        %v1254 = vld [vmem:[%s1238 + $0x3c] sm:$0xf]
        %v1255 = vld [vmem:[%s1238 + $0x40] sm:$0xf]
        %v1256 = vld [vmem:[%s1238 + $0x44] sm:$0xf]
        %v1257 = vld [vmem:[%s1238 + $0x48] sm:$0xf]
        %v1258 = vld [vmem:[%s1238 + $0x4c] sm:$0xf]
        %v1259 = vld [vmem:[%s1238 + $0x50] sm:$0xf]
        %v1260 = vld [vmem:[%s1238 + $0x54] sm:$0xf]
        %v1261 = vld [vmem:[%s1238 + $0x58] sm:$0xf]
        %v1262 = vld [vmem:[%s1238 + $0x5c] sm:$0xf]
        %v1263 = vld [vmem:[%s1238 + $0x60] sm:$0xf]
        %v1264 = vld [vmem:[%s1238 + $0x64] sm:$0xf]
        %v1291 = vunpack.c.l.b16 %v1239
        %v1292 = vunpack.c.l.b16 %v1240
        %v1293 = vunpack.c.l.b16 %v1241
        %v1294 = vunpack.c.l.b16 %v1242
        %v1295 = vunpack.c.l.b16 %v1243
        %v1296 = vunpack.c.l.b16 %v1244
        %v1297 = vunpack.c.l.b16 %v1245
        %v1298 = vunpack.c.l.b16 %v1246
        %v1299 = vunpack.c.l.b16 %v1247
        %v1300 = vunpack.c.l.b16 %v1248
        %v1301 = vunpack.c.l.b16 %v1249
        %v1302 = vunpack.c.l.b16 %v1250
        %v1303 = vunpack.c.l.b16 %v1251
        %v1304 = vunpack.c.l.b16 %v1252
        %v1305 = vunpack.c.l.b16 %v1253
        %v1306 = vunpack.c.l.b16 %v1254
        %v1307 = vunpack.c.l.b16 %v1255
        %v1308 = vunpack.c.l.b16 %v1256
        %v1309 = vunpack.c.l.b16 %v1257
        %v1310 = vunpack.c.l.b16 %v1258
        %v1311 = vunpack.c.l.b16 %v1259
        %v1312 = vunpack.c.l.b16 %v1260
        %v1313 = vunpack.c.l.b16 %v1261
        %v1314 = vunpack.c.l.b16 %v1262
        %v1315 = vunpack.c.l.b16 %v1263
        %v1316 = vunpack.c.l.b16 %v1264
        %v1317 = vpack.c.b16 %v1292, %v1291
        %v1318 = vpack.c.b16 %v1294, %v1293
        %v1319 = vpack.c.b16 %v1296, %v1295
        %v1320 = vpack.c.b16 %v1298, %v1297
        %v1321 = vpack.c.b16 %v1300, %v1299
        %v1322 = vpack.c.b16 %v1302, %v1301
        %v1323 = vpack.c.b16 %v1304, %v1303
        %v1324 = vpack.c.b16 %v1306, %v1305
        %v1325 = vpack.c.b16 %v1308, %v1307
        %v1326 = vpack.c.b16 %v1310, %v1309
        %v1327 = vpack.c.b16 %v1312, %v1311
        %v1328 = vpack.c.b16 %v1314, %v1313
        %v1329 = vpack.c.b16 %v1316, %v1315
        %v1331 = vsel %vm760, %v1317, 0
        %v1334 = vsel %vm760, %v1318, 0
        %v1337 = vsel %vm760, %v1319, 0
        %v1340 = vsel %vm760, %v1320, 0
        %v1343 = vsel %vm760, %v1321, 0
        %v1346 = vsel %vm760, %v1322, 0
        %v1349 = vsel %vm760, %v1323, 0
        %v1352 = vsel %vm760, %v1324, 0
        %v1355 = vsel %vm760, %v1325, 0
        %v1358 = vsel %vm760, %v1326, 0
        %v1361 = vsel %vm760, %v1327, 0
        %v1364 = vsel %vm760, %v1328, 0
        %v1367 = vsel %vm760, %v1329, 0
        %1369 = vmatprep.subr.bf16.mxu0 0
        %1370 = vmatpush1.bf16.msra.mxu0 0
        %1371 = vmatprep.subr.bf16.mxu0 0
        %1372 = vmatpush1.bf16.msra.mxu0 0
        %1373 = vmatprep.subr.bf16.mxu0 0
        %1374 = vmatpush1.bf16.msra.mxu0 0
        %1375 = vmatprep.subr.bf16.mxu0 0
        %1376 = vmatpush1.bf16.msra.mxu0 %v805
        %1377 = vmatprep.subr.bf16.mxu0 0
        %1378 = vmatpush1.bf16.msra.mxu0 %v754
        %1379 = vmatprep.subr.bf16.mxu0 0
        %1380 = vmatpush1.bf16.msra.mxu0 %v753
        %1381 = vmatprep.subr.bf16.mxu0 0
        %1382 = vmatpush1.bf16.msra.mxu0 %v752
        %1383 = vmatprep.subr.bf16.mxu0 0
        %1384 = vmatpush1.bf16.msra.mxu0 %v751
        %1385 = vmatprep.subr.bf16.mxu0 0
        %1386 = vmatpush2.bf16.msra.mxu0 0
        %1387 = vmatprep.subr.bf16.mxu0 0
        %1388 = vmatpush2.bf16.msra.mxu0 0
        %1389 = vmatprep.subr.bf16.mxu0 0
        %1390 = vmatpush2.bf16.msra.mxu0 0
        %1391 = vmatprep.subr.bf16.mxu0 0
        %1392 = vmatpush2.bf16.msra.mxu0 0
        %1393 = vmatprep.subr.bf16.mxu0 0
        %1394 = vmatpush2.bf16.msra.mxu0 0
        %1395 = vmatprep.subr.bf16.mxu0 0
        %1396 = vmatpush2.bf16.msra.mxu0 0
        %1397 = vmatprep.subr.bf16.mxu0 0
        %1398 = vmatpush2.bf16.msra.mxu0 0
        %1399 = vmatprep.subr.bf16.mxu0 0
        %1400 = vmatpush2.bf16.msra.mxu0 0
        %1401 = vmatprep.mubr.bf16.mxu0 0
        %1402 = vmatmul.mubr.bf16.gmra.mxu0 %v1331
        %v1403 = vpop.f32.mrf.mxu0
        %v1404 = vadd.f32 0.0, %v1403
        %v1405 = vpop.f32.mrf.mxu0
        %v1406 = vpop.f32.mrf.mxu0
        %v1407 = vadd.f32 0.0, %v1406
        %v1408 = vpop.f32.mrf.mxu0
        %1409 = vmatprep.mubr.bf16.mxu0 0
        %1410 = vmatmul.mubr.bf16.gmra.mxu0 %v1334
        %v1411 = vpop.f32.mrf.mxu0
        %v1412 = vadd.f32 0.0, %v1411
        %v1413 = vpop.f32.mrf.mxu0
        %v1414 = vpop.f32.mrf.mxu0
        %v1415 = vadd.f32 0.0, %v1414
        %v1416 = vpop.f32.mrf.mxu0
        %1417 = vmatprep.mubr.bf16.mxu0 0
        %1418 = vmatmul.mubr.bf16.gmra.mxu0 %v1337
        %v1419 = vpop.f32.mrf.mxu0
        %v1420 = vadd.f32 0.0, %v1419
        %v1421 = vpop.f32.mrf.mxu0
        %v1422 = vpop.f32.mrf.mxu0
        %v1423 = vadd.f32 0.0, %v1422
        %v1424 = vpop.f32.mrf.mxu0
        %1425 = vmatprep.mubr.bf16.mxu0 0
        %1426 = vmatmul.mubr.bf16.gmra.mxu0 %v1340
        %v1427 = vpop.f32.mrf.mxu0
        %v1428 = vadd.f32 0.0, %v1427
        %v1429 = vpop.f32.mrf.mxu0
        %v1430 = vpop.f32.mrf.mxu0
        %v1431 = vadd.f32 0.0, %v1430
        %v1432 = vpop.f32.mrf.mxu0
        %1433 = vmatprep.mubr.bf16.mxu0 0
        %1434 = vmatmul.mubr.bf16.gmra.mxu0 %v1343
        %v1435 = vpop.f32.mrf.mxu0
        %v1436 = vadd.f32 0.0, %v1435
        %v1437 = vpop.f32.mrf.mxu0
        %v1438 = vpop.f32.mrf.mxu0
        %v1439 = vadd.f32 0.0, %v1438
        %v1440 = vpop.f32.mrf.mxu0
        %1441 = vmatprep.mubr.bf16.mxu0 0
        %1442 = vmatmul.mubr.bf16.gmra.mxu0 %v1346
        %v1443 = vpop.f32.mrf.mxu0
        %v1444 = vadd.f32 0.0, %v1443
        %v1445 = vpop.f32.mrf.mxu0
        %v1446 = vpop.f32.mrf.mxu0
        %v1447 = vadd.f32 0.0, %v1446
        %v1448 = vpop.f32.mrf.mxu0
        %1449 = vmatprep.mubr.bf16.mxu0 0
        %1450 = vmatmul.mubr.bf16.gmra.mxu0 %v1349
        %v1451 = vpop.f32.mrf.mxu0
        %v1452 = vadd.f32 0.0, %v1451
        %v1453 = vpop.f32.mrf.mxu0
        %v1454 = vpop.f32.mrf.mxu0
        %v1455 = vadd.f32 0.0, %v1454
        %v1456 = vpop.f32.mrf.mxu0
        %1457 = vmatprep.mubr.bf16.mxu0 0
        %1458 = vmatmul.mubr.bf16.gmra.mxu0 %v1352
        %v1459 = vpop.f32.mrf.mxu0
        %v1460 = vadd.f32 0.0, %v1459
        %v1461 = vpop.f32.mrf.mxu0
        %v1462 = vpop.f32.mrf.mxu0
        %v1463 = vadd.f32 0.0, %v1462
        %v1464 = vpop.f32.mrf.mxu0
        %1465 = vmatprep.mubr.bf16.mxu0 0
        %1466 = vmatmul.mubr.bf16.gmra.mxu0 %v1355
        %v1467 = vpop.f32.mrf.mxu0
        %v1468 = vadd.f32 0.0, %v1467
        %v1469 = vpop.f32.mrf.mxu0
        %v1470 = vpop.f32.mrf.mxu0
        %v1471 = vadd.f32 0.0, %v1470
        %v1472 = vpop.f32.mrf.mxu0
        %1473 = vmatprep.mubr.bf16.mxu0 0
        %1474 = vmatmul.mubr.bf16.gmra.mxu0 %v1358
        %v1475 = vpop.f32.mrf.mxu0
        %v1476 = vadd.f32 0.0, %v1475
        %v1477 = vpop.f32.mrf.mxu0
        %v1478 = vpop.f32.mrf.mxu0
        %v1479 = vadd.f32 0.0, %v1478
        %v1480 = vpop.f32.mrf.mxu0
        %1481 = vmatprep.mubr.bf16.mxu0 0
        %1482 = vmatmul.mubr.bf16.gmra.mxu0 %v1361
        %v1483 = vpop.f32.mrf.mxu0
        %v1484 = vadd.f32 0.0, %v1483
        %v1485 = vpop.f32.mrf.mxu0
        %v1486 = vpop.f32.mrf.mxu0
        %v1487 = vadd.f32 0.0, %v1486
        %v1488 = vpop.f32.mrf.mxu0
        %1489 = vmatprep.mubr.bf16.mxu0 0
        %1490 = vmatmul.mubr.bf16.gmra.mxu0 %v1364
        %v1491 = vpop.f32.mrf.mxu0
        %v1492 = vadd.f32 0.0, %v1491
        %v1493 = vpop.f32.mrf.mxu0
        %v1494 = vpop.f32.mrf.mxu0
        %v1495 = vadd.f32 0.0, %v1494
        %v1496 = vpop.f32.mrf.mxu0
        %1497 = vmatprep.mubr.bf16.mxu0 0
        %1498 = vmatmul.mubr.bf16.gmra.mxu0 %v1367
        %v1499 = vpop.f32.mrf.mxu0
        %v1500 = vadd.f32 0.0, %v1499
        %v1501 = vpop.f32.mrf.mxu0
        %v1502 = vpop.f32.mrf.mxu0
        %v1503 = vadd.f32 0.0, %v1502
        %v1504 = vpop.f32.mrf.mxu0
        %1505 = vdwg.mxu0
        %v1506 = vmax.f32 %v1212, %v1404
        %v1507 = vmax.f32 %v1213, %v1407
        %v1508 = vmax.f32 %v1214, %v1412
        %v1509 = vmax.f32 %v1215, %v1415
        %v1510 = vmax.f32 %v1216, %v1420
        %v1511 = vmax.f32 %v1217, %v1423
        %v1512 = vmax.f32 %v1218, %v1428
        %v1513 = vmax.f32 %v1219, %v1431
        %v1514 = vmax.f32 %v1220, %v1436
        %v1515 = vmax.f32 %v1221, %v1439
        %v1516 = vmax.f32 %v1222, %v1444
        %v1517 = vmax.f32 %v1223, %v1447
        %v1518 = vmax.f32 %v1224, %v1452
        %v1519 = vmax.f32 %v1225, %v1455
        %v1520 = vmax.f32 %v1226, %v1460
        %v1521 = vmax.f32 %v1227, %v1463
        %v1522 = vmax.f32 %v1228, %v1468
        %v1523 = vmax.f32 %v1229, %v1471
        %v1524 = vmax.f32 %v1230, %v1476
        %v1525 = vmax.f32 %v1231, %v1479
        %v1526 = vmax.f32 %v1232, %v1484
        %v1527 = vmax.f32 %v1233, %v1487
        %v1528 = vmax.f32 %v1234, %v1492
        %v1529 = vmax.f32 %v1235, %v1495
        %v1530 = vmax.f32 %v1236, %v1500
        %v1531 = vmax.f32 %v1237, %v1503
        %s1532 = scalar_lea.vmem %s601, 312 [#allocation2]
        %v1533 = vld [vmem:[%s1532] sm:$0xf]
        %v1534 = vld [vmem:[%s1532 + $0x4] sm:$0xf]
        %v1535 = vld [vmem:[%s1532 + $0x8] sm:$0xf]
        %v1536 = vld [vmem:[%s1532 + $0xc] sm:$0xf]
        %v1537 = vld [vmem:[%s1532 + $0x10] sm:$0xf]
        %v1538 = vld [vmem:[%s1532 + $0x14] sm:$0xf]
        %v1539 = vld [vmem:[%s1532 + $0x18] sm:$0xf]
        %v1540 = vld [vmem:[%s1532 + $0x1c] sm:$0xf]
        %v1541 = vld [vmem:[%s1532 + $0x20] sm:$0xf]
        %v1542 = vld [vmem:[%s1532 + $0x24] sm:$0xf]
        %v1543 = vld [vmem:[%s1532 + $0x28] sm:$0xf]
        %v1544 = vld [vmem:[%s1532 + $0x2c] sm:$0xf]
        %v1545 = vld [vmem:[%s1532 + $0x30] sm:$0xf]
        %v1546 = vld [vmem:[%s1532 + $0x34] sm:$0xf]
        %v1547 = vld [vmem:[%s1532 + $0x38] sm:$0xf]
        %v1548 = vld [vmem:[%s1532 + $0x3c] sm:$0xf]
        %v1549 = vld [vmem:[%s1532 + $0x40] sm:$0xf]
        %v1550 = vld [vmem:[%s1532 + $0x44] sm:$0xf]
        %v1551 = vld [vmem:[%s1532 + $0x48] sm:$0xf]
        %v1552 = vld [vmem:[%s1532 + $0x4c] sm:$0xf]
        %v1553 = vld [vmem:[%s1532 + $0x50] sm:$0xf]
        %v1554 = vld [vmem:[%s1532 + $0x54] sm:$0xf]
        %v1555 = vld [vmem:[%s1532 + $0x58] sm:$0xf]
        %v1556 = vld [vmem:[%s1532 + $0x5c] sm:$0xf]
        %v1557 = vld [vmem:[%s1532 + $0x60] sm:$0xf]
        %v1558 = vld [vmem:[%s1532 + $0x64] sm:$0xf]
        %v1585 = vunpack.c.l.b16 %v1533
        %v1586 = vunpack.c.l.b16 %v1534
        %v1587 = vunpack.c.l.b16 %v1535
        %v1588 = vunpack.c.l.b16 %v1536
        %v1589 = vunpack.c.l.b16 %v1537
        %v1590 = vunpack.c.l.b16 %v1538
        %v1591 = vunpack.c.l.b16 %v1539
        %v1592 = vunpack.c.l.b16 %v1540
        %v1593 = vunpack.c.l.b16 %v1541
        %v1594 = vunpack.c.l.b16 %v1542
        %v1595 = vunpack.c.l.b16 %v1543
        %v1596 = vunpack.c.l.b16 %v1544
        %v1597 = vunpack.c.l.b16 %v1545
        %v1598 = vunpack.c.l.b16 %v1546
        %v1599 = vunpack.c.l.b16 %v1547
        %v1600 = vunpack.c.l.b16 %v1548
        %v1601 = vunpack.c.l.b16 %v1549
        %v1602 = vunpack.c.l.b16 %v1550
        %v1603 = vunpack.c.l.b16 %v1551
        %v1604 = vunpack.c.l.b16 %v1552
        %v1605 = vunpack.c.l.b16 %v1553
        %v1606 = vunpack.c.l.b16 %v1554
        %v1607 = vunpack.c.l.b16 %v1555
        %v1608 = vunpack.c.l.b16 %v1556
        %v1609 = vunpack.c.l.b16 %v1557
        %v1610 = vunpack.c.l.b16 %v1558
        %v1611 = vpack.c.b16 %v1586, %v1585
        %v1612 = vpack.c.b16 %v1588, %v1587
        %v1613 = vpack.c.b16 %v1590, %v1589
        %v1614 = vpack.c.b16 %v1592, %v1591
        %v1615 = vpack.c.b16 %v1594, %v1593
        %v1616 = vpack.c.b16 %v1596, %v1595
        %v1617 = vpack.c.b16 %v1598, %v1597
        %v1618 = vpack.c.b16 %v1600, %v1599
        %v1619 = vpack.c.b16 %v1602, %v1601
        %v1620 = vpack.c.b16 %v1604, %v1603
        %v1621 = vpack.c.b16 %v1606, %v1605
        %v1622 = vpack.c.b16 %v1608, %v1607
        %v1623 = vpack.c.b16 %v1610, %v1609
        %v1625 = vsel %vm760, %v1611, 0
        %v1628 = vsel %vm760, %v1612, 0
        %v1631 = vsel %vm760, %v1613, 0
        %v1634 = vsel %vm760, %v1614, 0
        %v1637 = vsel %vm760, %v1615, 0
        %v1640 = vsel %vm760, %v1616, 0
        %v1643 = vsel %vm760, %v1617, 0
        %v1646 = vsel %vm760, %v1618, 0
        %v1649 = vsel %vm760, %v1619, 0
        %v1652 = vsel %vm760, %v1620, 0
        %v1655 = vsel %vm760, %v1621, 0
        %v1658 = vsel %vm760, %v1622, 0
        %v1661 = vsel %vm760, %v1623, 0
        %1663 = vmatprep.subr.bf16.mxu0 0
        %1664 = vmatpush1.bf16.msra.mxu0 0
        %1665 = vmatprep.subr.bf16.mxu0 0
        %1666 = vmatpush1.bf16.msra.mxu0 0
        %1667 = vmatprep.subr.bf16.mxu0 0
        %1668 = vmatpush1.bf16.msra.mxu0 0
        %1669 = vmatprep.subr.bf16.mxu0 0
        %1670 = vmatpush1.bf16.msra.mxu0 %v805
        %1671 = vmatprep.subr.bf16.mxu0 0
        %1672 = vmatpush1.bf16.msra.mxu0 %v754
        %1673 = vmatprep.subr.bf16.mxu0 0
        %1674 = vmatpush1.bf16.msra.mxu0 %v753
        %1675 = vmatprep.subr.bf16.mxu0 0
        %1676 = vmatpush1.bf16.msra.mxu0 %v752
        %1677 = vmatprep.subr.bf16.mxu0 0
        %1678 = vmatpush1.bf16.msra.mxu0 %v751
        %1679 = vmatprep.subr.bf16.mxu0 0
        %1680 = vmatpush2.bf16.msra.mxu0 0
        %1681 = vmatprep.subr.bf16.mxu0 0
        %1682 = vmatpush2.bf16.msra.mxu0 0
        %1683 = vmatprep.subr.bf16.mxu0 0
        %1684 = vmatpush2.bf16.msra.mxu0 0
        %1685 = vmatprep.subr.bf16.mxu0 0
        %1686 = vmatpush2.bf16.msra.mxu0 0
        %1687 = vmatprep.subr.bf16.mxu0 0
        %1688 = vmatpush2.bf16.msra.mxu0 0
        %1689 = vmatprep.subr.bf16.mxu0 0
        %1690 = vmatpush2.bf16.msra.mxu0 0
        %1691 = vmatprep.subr.bf16.mxu0 0
        %1692 = vmatpush2.bf16.msra.mxu0 0
        %1693 = vmatprep.subr.bf16.mxu0 0
        %1694 = vmatpush2.bf16.msra.mxu0 0
        %1695 = vmatprep.mubr.bf16.mxu0 0
        %1696 = vmatmul.mubr.bf16.gmra.mxu0 %v1625
        %v1697 = vpop.f32.mrf.mxu0
        %v1698 = vadd.f32 0.0, %v1697
        %v1699 = vpop.f32.mrf.mxu0
        %v1700 = vpop.f32.mrf.mxu0
        %v1701 = vadd.f32 0.0, %v1700
        %v1702 = vpop.f32.mrf.mxu0
        %1703 = vmatprep.mubr.bf16.mxu0 0
        %1704 = vmatmul.mubr.bf16.gmra.mxu0 %v1628
        %v1705 = vpop.f32.mrf.mxu0
        %v1706 = vadd.f32 0.0, %v1705
        %v1707 = vpop.f32.mrf.mxu0
        %v1708 = vpop.f32.mrf.mxu0
        %v1709 = vadd.f32 0.0, %v1708
        %v1710 = vpop.f32.mrf.mxu0
        %1711 = vmatprep.mubr.bf16.mxu0 0
        %1712 = vmatmul.mubr.bf16.gmra.mxu0 %v1631
        %v1713 = vpop.f32.mrf.mxu0
        %v1714 = vadd.f32 0.0, %v1713
        %v1715 = vpop.f32.mrf.mxu0
        %v1716 = vpop.f32.mrf.mxu0
        %v1717 = vadd.f32 0.0, %v1716
        %v1718 = vpop.f32.mrf.mxu0
        %1719 = vmatprep.mubr.bf16.mxu0 0
        %1720 = vmatmul.mubr.bf16.gmra.mxu0 %v1634
        %v1721 = vpop.f32.mrf.mxu0
        %v1722 = vadd.f32 0.0, %v1721
        %v1723 = vpop.f32.mrf.mxu0
        %v1724 = vpop.f32.mrf.mxu0
        %v1725 = vadd.f32 0.0, %v1724
        %v1726 = vpop.f32.mrf.mxu0
        %1727 = vmatprep.mubr.bf16.mxu0 0
        %1728 = vmatmul.mubr.bf16.gmra.mxu0 %v1637
        %v1729 = vpop.f32.mrf.mxu0
        %v1730 = vadd.f32 0.0, %v1729
        %v1731 = vpop.f32.mrf.mxu0
        %v1732 = vpop.f32.mrf.mxu0
        %v1733 = vadd.f32 0.0, %v1732
        %v1734 = vpop.f32.mrf.mxu0
        %1735 = vmatprep.mubr.bf16.mxu0 0
        %1736 = vmatmul.mubr.bf16.gmra.mxu0 %v1640
        %v1737 = vpop.f32.mrf.mxu0
        %v1738 = vadd.f32 0.0, %v1737
        %v1739 = vpop.f32.mrf.mxu0
        %v1740 = vpop.f32.mrf.mxu0
        %v1741 = vadd.f32 0.0, %v1740
        %v1742 = vpop.f32.mrf.mxu0
        %1743 = vmatprep.mubr.bf16.mxu0 0
        %1744 = vmatmul.mubr.bf16.gmra.mxu0 %v1643
        %v1745 = vpop.f32.mrf.mxu0
        %v1746 = vadd.f32 0.0, %v1745
        %v1747 = vpop.f32.mrf.mxu0
        %v1748 = vpop.f32.mrf.mxu0
        %v1749 = vadd.f32 0.0, %v1748
        %v1750 = vpop.f32.mrf.mxu0
        %1751 = vmatprep.mubr.bf16.mxu0 0
        %1752 = vmatmul.mubr.bf16.gmra.mxu0 %v1646
        %v1753 = vpop.f32.mrf.mxu0
        %v1754 = vadd.f32 0.0, %v1753
        %v1755 = vpop.f32.mrf.mxu0
        %v1756 = vpop.f32.mrf.mxu0
        %v1757 = vadd.f32 0.0, %v1756
        %v1758 = vpop.f32.mrf.mxu0
        %1759 = vmatprep.mubr.bf16.mxu0 0
        %1760 = vmatmul.mubr.bf16.gmra.mxu0 %v1649
        %v1761 = vpop.f32.mrf.mxu0
        %v1762 = vadd.f32 0.0, %v1761
        %v1763 = vpop.f32.mrf.mxu0
        %v1764 = vpop.f32.mrf.mxu0
        %v1765 = vadd.f32 0.0, %v1764
        %v1766 = vpop.f32.mrf.mxu0
        %1767 = vmatprep.mubr.bf16.mxu0 0
        %1768 = vmatmul.mubr.bf16.gmra.mxu0 %v1652
        %v1769 = vpop.f32.mrf.mxu0
        %v1770 = vadd.f32 0.0, %v1769
        %v1771 = vpop.f32.mrf.mxu0
        %v1772 = vpop.f32.mrf.mxu0
        %v1773 = vadd.f32 0.0, %v1772
        %v1774 = vpop.f32.mrf.mxu0
        %1775 = vmatprep.mubr.bf16.mxu0 0
        %1776 = vmatmul.mubr.bf16.gmra.mxu0 %v1655
        %v1777 = vpop.f32.mrf.mxu0
        %v1778 = vadd.f32 0.0, %v1777
        %v1779 = vpop.f32.mrf.mxu0
        %v1780 = vpop.f32.mrf.mxu0
        %v1781 = vadd.f32 0.0, %v1780
        %v1782 = vpop.f32.mrf.mxu0
        %1783 = vmatprep.mubr.bf16.mxu0 0
        %1784 = vmatmul.mubr.bf16.gmra.mxu0 %v1658
        %v1785 = vpop.f32.mrf.mxu0
        %v1786 = vadd.f32 0.0, %v1785
        %v1787 = vpop.f32.mrf.mxu0
        %v1788 = vpop.f32.mrf.mxu0
        %v1789 = vadd.f32 0.0, %v1788
        %v1790 = vpop.f32.mrf.mxu0
        %1791 = vmatprep.mubr.bf16.mxu0 0
        %1792 = vmatmul.mubr.bf16.gmra.mxu0 %v1661
        %v1793 = vpop.f32.mrf.mxu0
        %v1794 = vadd.f32 0.0, %v1793
        %v1795 = vpop.f32.mrf.mxu0
        %v1796 = vpop.f32.mrf.mxu0
        %v1797 = vadd.f32 0.0, %v1796
        %v1798 = vpop.f32.mrf.mxu0
        %1799 = vdwg.mxu0
        %v1800 = vmax.f32 %v1506, %v1698
        %v1801 = vmax.f32 %v1507, %v1701
        %v1802 = vmax.f32 %v1508, %v1706
        %v1803 = vmax.f32 %v1509, %v1709
        %v1804 = vmax.f32 %v1510, %v1714
        %v1805 = vmax.f32 %v1511, %v1717
        %v1806 = vmax.f32 %v1512, %v1722
        %v1807 = vmax.f32 %v1513, %v1725
        %v1808 = vmax.f32 %v1514, %v1730
        %v1809 = vmax.f32 %v1515, %v1733
        %v1810 = vmax.f32 %v1516, %v1738
        %v1811 = vmax.f32 %v1517, %v1741
        %v1812 = vmax.f32 %v1518, %v1746
        %v1813 = vmax.f32 %v1519, %v1749
        %v1814 = vmax.f32 %v1520, %v1754
        %v1815 = vmax.f32 %v1521, %v1757
        %v1816 = vmax.f32 %v1522, %v1762
        %v1817 = vmax.f32 %v1523, %v1765
        %v1818 = vmax.f32 %v1524, %v1770
        %v1819 = vmax.f32 %v1525, %v1773
        %v1820 = vmax.f32 %v1526, %v1778
        %v1821 = vmax.f32 %v1527, %v1781
        %v1822 = vmax.f32 %v1528, %v1786
        %v1823 = vmax.f32 %v1529, %v1789
        %v1824 = vmax.f32 %v1530, %v1794
        %v1825 = vmax.f32 %v1531, %v1797
        %v1826 = vld [vmem:[%s2] sm:$0x1]
        %v1828 = vlaneseq
        %v1829 = vshrl.u32 %v1828, 7
        %v1830 = vsub.s32 0, %v1829
        %v1831 = vrot.slane %v1826, %v1830
        %v1833 = vadd.f32 %v1800, %v1831
        %v1834 = vadd.f32 %v1801, %v1831
        %v1835 = vadd.f32 %v1802, %v1831
        %v1836 = vadd.f32 %v1803, %v1831
        %v1837 = vadd.f32 %v1804, %v1831
        %v1838 = vadd.f32 %v1805, %v1831
        %v1839 = vadd.f32 %v1806, %v1831
        %v1840 = vadd.f32 %v1807, %v1831
        %v1841 = vadd.f32 %v1808, %v1831
        %v1842 = vadd.f32 %v1809, %v1831
        %v1843 = vadd.f32 %v1810, %v1831
        %v1844 = vadd.f32 %v1811, %v1831
        %v1845 = vadd.f32 %v1812, %v1831
        %v1846 = vadd.f32 %v1813, %v1831
        %v1847 = vadd.f32 %v1814, %v1831
        %v1848 = vadd.f32 %v1815, %v1831
        %v1849 = vadd.f32 %v1816, %v1831
        %v1850 = vadd.f32 %v1817, %v1831
        %v1851 = vadd.f32 %v1818, %v1831
        %v1852 = vadd.f32 %v1819, %v1831
        %v1853 = vadd.f32 %v1820, %v1831
        %v1854 = vadd.f32 %v1821, %v1831
        %v1855 = vadd.f32 %v1822, %v1831
        %v1856 = vadd.f32 %v1823, %v1831
        %v1857 = vadd.f32 %v1824, %v1831
        %v1858 = vadd.f32 %v1825, %v1831
        %v1859 = vmax.f32 %v1833, 0.0
        %v1860 = vmax.f32 %v1834, 0.0
        %v1861 = vmax.f32 %v1835, 0.0
        %v1862 = vmax.f32 %v1836, 0.0
        %v1863 = vmax.f32 %v1837, 0.0
        %v1864 = vmax.f32 %v1838, 0.0
        %v1865 = vmax.f32 %v1839, 0.0
        %v1866 = vmax.f32 %v1840, 0.0
        %v1867 = vmax.f32 %v1841, 0.0
        %v1868 = vmax.f32 %v1842, 0.0
        %v1869 = vmax.f32 %v1843, 0.0
        %v1870 = vmax.f32 %v1844, 0.0
        %v1871 = vmax.f32 %v1845, 0.0
        %v1872 = vmax.f32 %v1846, 0.0
        %v1873 = vmax.f32 %v1847, 0.0
        %v1874 = vmax.f32 %v1848, 0.0
        %v1875 = vmax.f32 %v1849, 0.0
        %v1876 = vmax.f32 %v1850, 0.0
        %v1877 = vmax.f32 %v1851, 0.0
        %v1878 = vmax.f32 %v1852, 0.0
        %v1879 = vmax.f32 %v1853, 0.0
        %v1880 = vmax.f32 %v1854, 0.0
        %v1881 = vmax.f32 %v1855, 0.0
        %v1882 = vmax.f32 %v1856, 0.0
        %v1883 = vmax.f32 %v1857, 0.0
        %v1884 = vmax.f32 %v1858, 0.0
        %v1885 = vpack.c.bf16 %v1860, %v1859
        %v1886 = vpack.c.bf16 %v1862, %v1861
        %v1887 = vpack.c.bf16 %v1864, %v1863
        %v1888 = vpack.c.bf16 %v1866, %v1865
        %v1889 = vpack.c.bf16 %v1868, %v1867
        %v1890 = vpack.c.bf16 %v1870, %v1869
        %v1891 = vpack.c.bf16 %v1872, %v1871
        %v1892 = vpack.c.bf16 %v1874, %v1873
        %v1893 = vpack.c.bf16 %v1876, %v1875
        %v1894 = vpack.c.bf16 %v1878, %v1877
        %v1895 = vpack.c.bf16 %v1880, %v1879
        %v1896 = vpack.c.bf16 %v1882, %v1881
        %v1897 = vpack.c.bf16 %v1884, %v1883
        %v1911 = vunpack.c.l.b16 %v1885
        %v1912 = vunpack.c.h.b16 %v1885
        %v1913 = vunpack.c.l.b16 %v1886
        %v1914 = vunpack.c.h.b16 %v1886
        %v1915 = vunpack.c.l.b16 %v1887
        %v1916 = vunpack.c.h.b16 %v1887
        %v1917 = vunpack.c.l.b16 %v1888
        %v1918 = vunpack.c.h.b16 %v1888
        %v1919 = vunpack.c.l.b16 %v1889
        %v1920 = vunpack.c.h.b16 %v1889
        %v1921 = vunpack.c.l.b16 %v1890
        %v1922 = vunpack.c.h.b16 %v1890
        %v1923 = vunpack.c.l.b16 %v1891
        %v1924 = vunpack.c.h.b16 %v1891
        %v1925 = vunpack.c.l.b16 %v1892
        %v1926 = vunpack.c.h.b16 %v1892
        %v1927 = vunpack.c.l.b16 %v1893
        %v1928 = vunpack.c.h.b16 %v1893
        %v1929 = vunpack.c.l.b16 %v1894
        %v1930 = vunpack.c.h.b16 %v1894
        %v1931 = vunpack.c.l.b16 %v1895
        %v1932 = vunpack.c.h.b16 %v1895
        %v1933 = vunpack.c.l.b16 %v1896
        %v1934 = vunpack.c.h.b16 %v1896
        %v1935 = vunpack.c.l.b16 %v1897
        %v1936 = vunpack.c.h.b16 %v1897
        %v1937 = vpack.c.b16 %v1911, %v1911
        %v1938 = vpack.c.b16 %v1912, %v1912
        %v1939 = vpack.c.b16 %v1913, %v1913
        %v1940 = vpack.c.b16 %v1914, %v1914
        %v1941 = vpack.c.b16 %v1915, %v1915
        %v1942 = vpack.c.b16 %v1916, %v1916
        %v1943 = vpack.c.b16 %v1917, %v1917
        %v1944 = vpack.c.b16 %v1918, %v1918
        %v1945 = vpack.c.b16 %v1919, %v1919
        %v1946 = vpack.c.b16 %v1920, %v1920
        %v1947 = vpack.c.b16 %v1921, %v1921
        %v1948 = vpack.c.b16 %v1922, %v1922
        %v1949 = vpack.c.b16 %v1923, %v1923
        %v1950 = vpack.c.b16 %v1924, %v1924
        %v1951 = vpack.c.b16 %v1925, %v1925
        %v1952 = vpack.c.b16 %v1926, %v1926
        %v1953 = vpack.c.b16 %v1927, %v1927
        %v1954 = vpack.c.b16 %v1928, %v1928
        %v1955 = vpack.c.b16 %v1929, %v1929
        %v1956 = vpack.c.b16 %v1930, %v1930
        %v1957 = vpack.c.b16 %v1931, %v1931
        %v1958 = vpack.c.b16 %v1932, %v1932
        %v1959 = vpack.c.b16 %v1933, %v1933
        %v1960 = vpack.c.b16 %v1934, %v1934
        %v1961 = vpack.c.b16 %v1935, %v1935
        %v1962 = vpack.c.b16 %v1936, %v1936
        %vm1989 = vcmask 60416
        %1990 = vst.msk [vmem:[%s627] sm:$0xf] %vm1989, %v1937
        %1991 = vst.msk [vmem:[%s627 + $0x4] sm:$0xf] %vm1989, %v1938
        %1992 = vst.msk [vmem:[%s627 + $0x8] sm:$0xf] %vm1989, %v1939
        %1993 = vst.msk [vmem:[%s627 + $0xc] sm:$0xf] %vm1989, %v1940
        %1994 = vst.msk [vmem:[%s627 + $0x10] sm:$0xf] %vm1989, %v1941
        %1995 = vst.msk [vmem:[%s627 + $0x14] sm:$0xf] %vm1989, %v1942
        %1996 = vst.msk [vmem:[%s627 + $0x18] sm:$0xf] %vm1989, %v1943
        %1997 = vst.msk [vmem:[%s627 + $0x1c] sm:$0xf] %vm1989, %v1944
        %1998 = vst.msk [vmem:[%s627 + $0x20] sm:$0xf] %vm1989, %v1945
        %1999 = vst.msk [vmem:[%s627 + $0x24] sm:$0xf] %vm1989, %v1946
        %2000 = vst.msk [vmem:[%s627 + $0x28] sm:$0xf] %vm1989, %v1947
        %2001 = vst.msk [vmem:[%s627 + $0x2c] sm:$0xf] %vm1989, %v1948
        %2002 = vst.msk [vmem:[%s627 + $0x30] sm:$0xf] %vm1989, %v1949
        %2003 = vst.msk [vmem:[%s627 + $0x34] sm:$0xf] %vm1989, %v1950
        %2004 = vst.msk [vmem:[%s627 + $0x38] sm:$0xf] %vm1989, %v1951
        %2005 = vst.msk [vmem:[%s627 + $0x3c] sm:$0xf] %vm1989, %v1952
        %2006 = vst.msk [vmem:[%s627 + $0x40] sm:$0xf] %vm1989, %v1953
        %2007 = vst.msk [vmem:[%s627 + $0x44] sm:$0xf] %vm1989, %v1954
        %2008 = vst.msk [vmem:[%s627 + $0x48] sm:$0xf] %vm1989, %v1955
        %2009 = vst.msk [vmem:[%s627 + $0x4c] sm:$0xf] %vm1989, %v1956
        %2010 = vst.msk [vmem:[%s627 + $0x50] sm:$0xf] %vm1989, %v1957
        %2011 = vst.msk [vmem:[%s627 + $0x54] sm:$0xf] %vm1989, %v1958
        %2012 = vst.msk [vmem:[%s627 + $0x58] sm:$0xf] %vm1989, %v1959
        %2013 = vst.msk [vmem:[%s627 + $0x5c] sm:$0xf] %vm1989, %v1960
        %2014 = vst.msk [vmem:[%s627 + $0x60] sm:$0xf] %vm1989, %v1961
        %2015 = vst.msk [vmem:[%s627 + $0x64] sm:$0xf] %vm1989, %v1962
        %s2016 = smul.u32 26, %s14
        %p2017 = scmp.lt.s32.totalorder %s2016, 51
        %s2018 = scalar_select %p2017, %s2016, 51
        %s2019 = smul.addr %s2018, 4
        %s2020 = scalar_lea.vmem %s3, %s2019
        // Predicated region
        $region74: #{convnet_forward.3} parent=68 // pred_check
          %p2021 = pneg %p100
        $region75: #{convnet_forward.3} parent=68 // pred_check_branch
          %2023 = sbr.rel (%p2021) target = $region77
        $region76: #{convnet_forward.3} parent=68 // pred_region
          %s2024 = smul.u32 26, %s14
        $region77: #{convnet_forward.3} parent=68 // pred_fallthru
          _
      $region69: #{convnet_forward.3} parent=5 // pred_fallthru
        _
      %p2025 = scmp.le.s32.totalorder 2, %s9
      // Predicated region
      $region78: #{convnet_forward.3} parent=5 // pred_check
        %p2026 = pneg %p2025
      $region79: #{convnet_forward.3} parent=5 // pred_check_branch
        %2028 = sbr.rel (%p2026) target = $region81
      $region80: #{convnet_forward.3} parent=5 // pred_region
        %s2029 = ssub.s32 %s9, 2
        // Predicated region
        $region82: #{convnet_forward.3} parent=80 // pred_check
          %p2030 = pneg %p106
        $region83: #{convnet_forward.3} parent=80 // pred_check_branch
          %2032 = sbr.rel (%p2030) target = $region85
        $region84: #{convnet_forward.3} parent=80 // pred_region
          %s2033 = smul.u32 26, %s15
          %p2034 = scmp.lt.s32.totalorder %s2033, 51
          %s2035 = scalar_select %p2034, %s2033, 51
          %s2036 = smul.addr %s2035, 4
          %s2037 = scalar_lea.vmem %s3, %s2036
        $region85: #{convnet_forward.3} parent=80 // pred_fallthru
          _
      $region81: #{convnet_forward.3} parent=5 // pred_fallthru
        _
    $region6: #{convnet_forward.3} parent=1 // loop_footer
      %s13 = sadd.s32 1, %s9
    $region7: #{convnet_forward.3} parent=1 // loop_footer_branch
      %8 = sbr.rel target = $region3
    $region8: #{convnet_forward.3} parent=1 // loop_exit
      _

// kernel: convnet_forward.4
$region0: #{convnet_forward.4}
  #allocation0 [shape = 'u32[]', space=smem, size = 0x4, offset = 0x4, fixed_abs, tag = 'smem constant byte address 0x4 - core index']
  #allocation1 [shape = 'u32[144,128]{1,0:T(1,128)}', space=vmem, size = 0x12000, scoped, tag = 'internal scratch']
  %s0 = inlined_call_operand.vmem [shape: bf16[4,64,150], index: 0, kind: input, shape index: {}]
  %s1 = inlined_call_operand.vmem [shape: bf16[150,16], index: 1, kind: input, shape index: {}]
  %s2 = inlined_call_operand.vmem [shape: f32[1,16], index: 2, kind: input, shape index: {}]
  %s3 = inlined_call_operand.vmem [shape: bf16[64,16], index: 3, kind: output, shape index: {}]
  %s4 = sld [smem:[#allocation0]]
  $region83: #{convnet_forward.4} parent=0
    _
  %s6 = ssub.s32 1, %s4
  %s7 = scalar_select 0, %s6, %s4
  $region1: #{convnet_forward.4} parent=0
    #allocation2 [shape = 'u8[131072]{0}', space=vmem, size = 0x20000, scoped, tag = 'input window, operand 0']
    loop: start=0, step=1, limit=4
    $region2: #{convnet_forward.4} parent=1 // loop_pre_header
      _
    $region3: #{convnet_forward.4} parent=1 // loop_header
      %s9 = sphi 0, %s13
      %p10 = scmp.ge.s32.totalorder %s9, 4
      %s19 = sphi 0, %s21
      %s22 = sphi 0, %s19
      %s23 = sphi 0, %s22
      %s39 = sphi 0, %s23
      %s43 = sphi 0, %s43
      %s45 = sphi 0, %s43
      %s46 = sphi 0, %s45
      %s60 = sphi 0, %s46
      %s64 = sphi 0, %s64
      %s66 = sphi 0, %s64
      %s67 = sphi 0, %s66
      %s81 = sphi 0, %s67
      %s87 = sphi 0, %s89
      %s90 = sphi 0, %s87
      %s91 = sphi 0, %s90
      %s107 = sphi 0, %s91
    $region4: #{convnet_forward.4} parent=1 // loop_header_branch
      %12 = sbr.rel (%p10) target = $region8
    $region5: #{convnet_forward.4} parent=1 // loop_body
      %s14 = ssub.s32 %s9, 1
      %s15 = ssub.s32 %s9, 2
      %s16 = sadd.s32 %s9, 1
      %s17 = ssub.s32 %s9, %s16
      %p18 = scmp.eq.s32.totalorder %s17, 0
      %s20 = sadd.s32 %s19, 1
      %s21 = scalar_select %p18, %s19, %s20
      %p24 = pneg %p18
      %p25 = scmp.eq.s32.totalorder %s9, 1
      %p26 = por %p24, %p25
      %p27 = scmp.ne.s32.totalorder %s19, %s22
      %p28 = scmp.eq.s32.totalorder %s9, 0
      %p29 = por %p27, %p28
      %p30 = scmp.ne.s32.totalorder %s19, %s22
      %p31 = scmp.eq.s32.totalorder %s14, 1
      %p32 = por %p30, %p31
      %p33 = scmp.ne.s32.totalorder %s22, %s23
      %p34 = scmp.eq.s32.totalorder %s14, 0
      %p35 = por %p33, %p34
      %p36 = scmp.ne.s32.totalorder %s22, %s23
      %p37 = scmp.eq.s32.totalorder %s15, 1
      %p38 = por %p36, %p37
      %p40 = scmp.ne.s32.totalorder %s23, %s39
      %p41 = scmp.eq.s32.totalorder %s15, 0
      %p42 = por %p40, %p41
      %s44 = sadd.s32 %s43, 1
      %p47 = scmp.eq.s32.totalorder %s9, 1
      %p48 = scmp.ne.s32.totalorder %s43, %s45
      %p49 = scmp.eq.s32.totalorder %s9, 0
      %p50 = por %p48, %p49
      %p51 = scmp.ne.s32.totalorder %s43, %s45
      %p52 = scmp.eq.s32.totalorder %s14, 1
      %p53 = por %p51, %p52
      %p54 = scmp.ne.s32.totalorder %s45, %s46
      %p55 = scmp.eq.s32.totalorder %s14, 0
      %p56 = por %p54, %p55
      %p57 = scmp.ne.s32.totalorder %s45, %s46
      %p58 = scmp.eq.s32.totalorder %s15, 1
      %p59 = por %p57, %p58
      %p61 = scmp.ne.s32.totalorder %s46, %s60
      %p62 = scmp.eq.s32.totalorder %s15, 0
      %p63 = por %p61, %p62
      %s65 = sadd.s32 %s64, 1
      %p68 = scmp.eq.s32.totalorder %s9, 1
      %p69 = scmp.ne.s32.totalorder %s64, %s66
      %p70 = scmp.eq.s32.totalorder %s9, 0
      %p71 = por %p69, %p70
      %p72 = scmp.ne.s32.totalorder %s64, %s66
      %p73 = scmp.eq.s32.totalorder %s14, 1
      %p74 = por %p72, %p73
      %p75 = scmp.ne.s32.totalorder %s66, %s67
      %p76 = scmp.eq.s32.totalorder %s14, 0
      %p77 = por %p75, %p76
      %p78 = scmp.ne.s32.totalorder %s66, %s67
      %p79 = scmp.eq.s32.totalorder %s15, 1
      %p80 = por %p78, %p79
      %p82 = scmp.ne.s32.totalorder %s67, %s81
      %p83 = scmp.eq.s32.totalorder %s15, 0
      %p84 = por %p82, %p83
      %s85 = ssub.s32 %s9, %s16
      %p86 = scmp.eq.s32.totalorder %s85, 0
      %s88 = sadd.s32 %s87, 1
      %s89 = scalar_select %p86, %s87, %s88
      %p92 = pneg %p86
      %p93 = scmp.eq.s32.totalorder %s9, 1
      %p94 = por %p92, %p93
      %p95 = scmp.ne.s32.totalorder %s87, %s90
      %p96 = scmp.eq.s32.totalorder %s9, 0
      %p97 = por %p95, %p96
      %p98 = scmp.ne.s32.totalorder %s87, %s90
      %p99 = scmp.eq.s32.totalorder %s14, 1
      %p100 = por %p98, %p99
      %p101 = scmp.ne.s32.totalorder %s90, %s91
      %p102 = scmp.eq.s32.totalorder %s14, 0
      %p103 = por %p101, %p102
      %p104 = scmp.ne.s32.totalorder %s90, %s91
      %p105 = scmp.eq.s32.totalorder %s15, 1
      %p106 = por %p104, %p105
      %p108 = scmp.ne.s32.totalorder %s91, %s107
      %p109 = scmp.eq.s32.totalorder %s15, 0
      %p110 = por %p108, %p109
      %p111 = scmp.le.s32.totalorder 1, %s9
      %p112 = scmp.lt.s32.totalorder %s9, 3
      %p113 = pnand %p111, %p112
      %p114 = pneg %p113
      // Predicated region
      $region9: #{convnet_forward.4} parent=5 // pred_check
        _
      $region10: #{convnet_forward.4} parent=5 // pred_check_branch
        %116 = sbr.rel (%p113) target = $region12
      $region11: #{convnet_forward.4} parent=5 // pred_region
        %s117 = ssub.s32 %s9, 1
        // Predicated region
        $region13: #{convnet_forward.4} parent=11 // pred_check
          %p118 = pneg %p56
        $region14: #{convnet_forward.4} parent=11 // pred_check_branch
          %120 = sbr.rel (%p118) target = $region16
        $region15: #{convnet_forward.4} parent=11 // pred_region
          _
        $region16: #{convnet_forward.4} parent=11 // pred_fallthru
          _
        // Predicated region
        $region17: #{convnet_forward.4} parent=11 // pred_check
          %p121 = pneg %p77
        $region18: #{convnet_forward.4} parent=11 // pred_check_branch
          %123 = sbr.rel (%p121) target = $region20
        $region19: #{convnet_forward.4} parent=11 // pred_region
          _
        $region20: #{convnet_forward.4} parent=11 // pred_fallthru
          _
      $region12: #{convnet_forward.4} parent=5 // pred_fallthru
        _
      %p124 = scmp.lt.s32.totalorder %s9, 2
      // Predicated region
      $region21: #{convnet_forward.4} parent=5 // pred_check
        %p125 = pneg %p124
      $region22: #{convnet_forward.4} parent=5 // pred_check_branch
        %127 = sbr.rel (%p125) target = $region24
      $region23: #{convnet_forward.4} parent=5 // pred_region
        // Predicated region
        $region25: #{convnet_forward.4} parent=23 // pred_check
          %p128 = pneg %p29
        $region26: #{convnet_forward.4} parent=23 // pred_check_branch
          %130 = sbr.rel (%p128) target = $region28
        $region27: #{convnet_forward.4} parent=23 // pred_region
          %s131 = sand.u32 %s19, 1
          %s132 = sand.u32 %s19, 1
          %s133 = smul.addr %s132, 128
          %s134 = scalar_lea.vmem [#allocation2], %s133
          %s135 = smul.u32 4, %s9
          %s136 = smul.addr %s135, 2
          %s137 = smul.addr %s136, 4
          %s138 = scalar_lea.vmem %s0, %s137
          // Predicated region
          $region29: #{convnet_forward.4} parent=27 // pred_check
            _
          $region30: #{convnet_forward.4} parent=27 // pred_check_branch
            %140 = sbr.rel (0) target = $region32
          $region31: #{convnet_forward.4} parent=27 // pred_region
            // Predicated region
            $region33: #{convnet_forward.4} parent=31 // pred_check
              _
            $region34: #{convnet_forward.4} parent=31 // pred_check_branch
              %142 = sbr.rel (0) target = $region36
            $region35: #{convnet_forward.4} parent=31 // pred_region
              // Predicated region
              $region48: #{convnet_forward.4} parent=35 // pred_check
                _
              $region49: #{convnet_forward.4} parent=35 // pred_check_branch
                %188 = sbr.rel (0) target = $region51
              $region50: #{convnet_forward.4} parent=35 // pred_region
                loop: start=0, step=1, limit=1
                $region52: #{convnet_forward.4} parent=50 // loop_pre_header
                  _
                $region53: #{convnet_forward.4} parent=50 // loop_header
                  %s190 = sphi 0, %s194
                  %p191 = scmp.ge.s32.totalorder %s190, 1
                  %s195 = sphi %s138, %s138
                  %s196 = sphi %s134, %s134
                $region54: #{convnet_forward.4} parent=50 // loop_header_branch
                  %193 = sbr.rel (%p191) target = $region58
                $region55: #{convnet_forward.4} parent=50 // loop_body
                  %v197 = vld [vmem:[%s195] sm:$0xff]
                  %198 = vst [vmem:[%s196] sm:$0xff] %v197
                  %v199 = vld [vmem:[%s195 + $0x8] sm:$0xff]
                  %200 = vst [vmem:[%s196 + $0x8] sm:$0xff] %v199
                  %v201 = vld [vmem:[%s195 + $0x10] sm:$0xff]
                  %202 = vst [vmem:[%s196 + $0x10] sm:$0xff] %v201
                  %v203 = vld [vmem:[%s195 + $0x18] sm:$0xff]
                  %204 = vst [vmem:[%s196 + $0x18] sm:$0xff] %v203
                  %v205 = vld [vmem:[%s195 + $0x40] sm:$0xff]
                  %206 = vst [vmem:[%s196 + $0x20] sm:$0xff] %v205
                  %v207 = vld [vmem:[%s195 + $0x48] sm:$0xff]
                  %208 = vst [vmem:[%s196 + $0x28] sm:$0xff] %v207
                  %v209 = vld [vmem:[%s195 + $0x50] sm:$0xff]
                  %210 = vst [vmem:[%s196 + $0x30] sm:$0xff] %v209
                  %v211 = vld [vmem:[%s195 + $0x58] sm:$0xff]
                  %212 = vst [vmem:[%s196 + $0x38] sm:$0xff] %v211
                  %v213 = vld [vmem:[%s195 + $0x80] sm:$0xff]
                  %214 = vst [vmem:[%s196 + $0x40] sm:$0xff] %v213
                  %v215 = vld [vmem:[%s195 + $0x88] sm:$0xff]
                  %216 = vst [vmem:[%s196 + $0x48] sm:$0xff] %v215
                  %v217 = vld [vmem:[%s195 + $0x90] sm:$0xff]
                  %218 = vst [vmem:[%s196 + $0x50] sm:$0xff] %v217
                  %v219 = vld [vmem:[%s195 + $0x98] sm:$0xff]
                  %220 = vst [vmem:[%s196 + $0x58] sm:$0xff] %v219
                  %v221 = vld [vmem:[%s195 + $0xc0] sm:$0xff]
                  %222 = vst [vmem:[%s196 + $0x60] sm:$0xff] %v221
                  %v223 = vld [vmem:[%s195 + $0xc8] sm:$0xff]
                  %224 = vst [vmem:[%s196 + $0x68] sm:$0xff] %v223
                  %v225 = vld [vmem:[%s195 + $0xd0] sm:$0xff]
                  %226 = vst [vmem:[%s196 + $0x70] sm:$0xff] %v225
                  %v227 = vld [vmem:[%s195 + $0xd8] sm:$0xff]
                  %228 = vst [vmem:[%s196 + $0x78] sm:$0xff] %v227
                $region56: #{convnet_forward.4} parent=50 // loop_footer
                  %s194 = sadd.s32 1, %s190
                $region57: #{convnet_forward.4} parent=50 // loop_footer_branch
                  %189 = sbr.rel target = $region53
                $region58: #{convnet_forward.4} parent=50 // loop_exit
                  _
              $region51: #{convnet_forward.4} parent=35 // pred_fallthru
                _
              // Predicated region
              $region59: #{convnet_forward.4} parent=35 // pred_check
                _
              $region60: #{convnet_forward.4} parent=35 // pred_check_branch
                %230 = sbr.rel target = $region62
              $region61: #{convnet_forward.4} parent=35 // pred_region
                _
              $region62: #{convnet_forward.4} parent=35 // pred_fallthru
                _
            $region36: #{convnet_forward.4} parent=31 // pred_fallthru
              _
            // Predicated region
            $region37: #{convnet_forward.4} parent=31 // pred_check
              _
            $region38: #{convnet_forward.4} parent=31 // pred_check_branch
              %144 = sbr.rel target = $region40
            $region39: #{convnet_forward.4} parent=31 // pred_region
              %s146 = ssub.s32 256, 1
              loop: start=0, step=1, limit=1
              $region41: #{convnet_forward.4} parent=39 // loop_pre_header
                _
              $region42: #{convnet_forward.4} parent=39 // loop_header
                %s148 = sphi 0, %s152
                %p149 = scmp.ge.s32.totalorder %s148, 1
                %s153 = sphi %s138, %s138
                %s154 = sphi %s134, %s134
              $region43: #{convnet_forward.4} parent=39 // loop_header_branch
                %151 = sbr.rel (%p149) target = $region47
              $region44: #{convnet_forward.4} parent=39 // loop_body
                %v155 = vld [vmem:[%s153] sm:%s146]
                %156 = vst [vmem:[%s154] sm:%s146] %v155
                %v157 = vld [vmem:[%s153 + $0x8] sm:%s146]
                %158 = vst [vmem:[%s154 + $0x8] sm:%s146] %v157
                %v159 = vld [vmem:[%s153 + $0x10] sm:%s146]
                %160 = vst [vmem:[%s154 + $0x10] sm:%s146] %v159
                %v161 = vld [vmem:[%s153 + $0x18] sm:%s146]
                %162 = vst [vmem:[%s154 + $0x18] sm:%s146] %v161
                %v163 = vld [vmem:[%s153 + $0x40] sm:%s146]
                %164 = vst [vmem:[%s154 + $0x20] sm:%s146] %v163
                %v165 = vld [vmem:[%s153 + $0x48] sm:%s146]
                %166 = vst [vmem:[%s154 + $0x28] sm:%s146] %v165
                %v167 = vld [vmem:[%s153 + $0x50] sm:%s146]
                %168 = vst [vmem:[%s154 + $0x30] sm:%s146] %v167
                %v169 = vld [vmem:[%s153 + $0x58] sm:%s146]
                %170 = vst [vmem:[%s154 + $0x38] sm:%s146] %v169
                %v171 = vld [vmem:[%s153 + $0x80] sm:%s146]
                %172 = vst [vmem:[%s154 + $0x40] sm:%s146] %v171
                %v173 = vld [vmem:[%s153 + $0x88] sm:%s146]
                %174 = vst [vmem:[%s154 + $0x48] sm:%s146] %v173
                %v175 = vld [vmem:[%s153 + $0x90] sm:%s146]
                %176 = vst [vmem:[%s154 + $0x50] sm:%s146] %v175
                %v177 = vld [vmem:[%s153 + $0x98] sm:%s146]
                %178 = vst [vmem:[%s154 + $0x58] sm:%s146] %v177
                %v179 = vld [vmem:[%s153 + $0xc0] sm:%s146]
                %180 = vst [vmem:[%s154 + $0x60] sm:%s146] %v179
                %v181 = vld [vmem:[%s153 + $0xc8] sm:%s146]
                %182 = vst [vmem:[%s154 + $0x68] sm:%s146] %v181
                %v183 = vld [vmem:[%s153 + $0xd0] sm:%s146]
                %184 = vst [vmem:[%s154 + $0x70] sm:%s146] %v183
                %v185 = vld [vmem:[%s153 + $0xd8] sm:%s146]
                %186 = vst [vmem:[%s154 + $0x78] sm:%s146] %v185
              $region45: #{convnet_forward.4} parent=39 // loop_footer
                %s152 = sadd.s32 1, %s148
              $region46: #{convnet_forward.4} parent=39 // loop_footer_branch
                %147 = sbr.rel target = $region42
              $region47: #{convnet_forward.4} parent=39 // loop_exit
                _
            $region40: #{convnet_forward.4} parent=31 // pred_fallthru
              _
          $region32: #{convnet_forward.4} parent=27 // pred_fallthru
            _
          %231 = vnop
        $region28: #{convnet_forward.4} parent=23 // pred_fallthru
          _
      $region24: #{convnet_forward.4} parent=5 // pred_fallthru
        _
      %p232 = scmp.le.s32.totalorder 1, %s9
      %p233 = scmp.lt.s32.totalorder %s9, 3
      %p234 = pnand %p232, %p233
      %p235 = pneg %p234
      // Predicated region
      $region63: #{convnet_forward.4} parent=5 // pred_check
        _
      $region64: #{convnet_forward.4} parent=5 // pred_check_branch
        %237 = sbr.rel (%p234) target = $region66
      $region65: #{convnet_forward.4} parent=5 // pred_region
        %s238 = ssub.s32 %s9, 1
        %s239 = sand.u32 %s22, 1
        %s240 = sand.u32 %s22, 1
        %s241 = smul.addr %s240, 128
        %s242 = scalar_lea.vmem [#allocation2], %s241
        // Predicated region
        $region67: #{convnet_forward.4} parent=65 // pred_check
          %p243 = pneg %p35
        $region68: #{convnet_forward.4} parent=65 // pred_check_branch
          %245 = sbr.rel (%p243) target = $region70
        $region69: #{convnet_forward.4} parent=65 // pred_region
          _
        $region70: #{convnet_forward.4} parent=65 // pred_fallthru
          _
        %s246 = sand.u32 %s22, 1
        %s247 = sand.u32 %s22, 1
        %s248 = smul.addr %s247, 128
        %s249 = scalar_lea.vmem [#allocation2], %s248
        %p250 = pneg %p35
        %p251 = pneg %p32
        %p252 = pneg %p56
        %p253 = pneg %p53
        %p254 = pneg %p77
        %p255 = pneg %p74
        %p256 = pneg %p103
        %p257 = pneg %p100
        %s258 = smul.u32 4, %s14
        %p259 = scmp.lt.s32.totalorder %s258, 7
        %s260 = scalar_select %p259, %s258, 7
        %s261 = smul.addr %s260, 4
        %s262 = scalar_lea.vmem %s3, %s261
        %s263 = smul.u32 4, %s14
        %s264 = smul.u32 4, %s14
        %p265 = scmp.lt.s32.totalorder %s264, 7
        %s266 = scalar_select %p265, %s264, 7
        %s267 = smul.addr %s266, 4
        %s268 = scalar_lea.vmem %s3, %s267
        %s269 = smul.u32 4, %s14
        %v271 = vld [vmem:[%s1] sm:$0xf]
        %v272 = vld [vmem:[%s1 + $0x4] sm:$0xf]
        %v273 = vld [vmem:[%s1 + $0x8] sm:$0xf]
        %v274 = vld [vmem:[%s1 + $0xc] sm:$0xf]
        %v275 = vld [vmem:[%s1 + $0x10] sm:$0xf]
        %v276 = vld [vmem:[%s1 + $0x14] sm:$0xf]
        %v277 = vld [vmem:[%s1 + $0x18] sm:$0xf]
        %v278 = vld [vmem:[%s1 + $0x1c] sm:$0xf]
        %v279 = vld [vmem:[%s1 + $0x20] sm:$0xf]
        %v280 = vld [vmem:[%s1 + $0x24] sm:$0xf]
        %v281 = vld [vmem:[%s1 + $0x28] sm:$0xf]
        %v282 = vld [vmem:[%s1 + $0x2c] sm:$0xf]
        %v283 = vld [vmem:[%s1 + $0x30] sm:$0xf]
        %v284 = vld [vmem:[%s1 + $0x34] sm:$0xf]
        %v285 = vld [vmem:[%s1 + $0x38] sm:$0xf]
        %v286 = vld [vmem:[%s1 + $0x3c] sm:$0xf]
        %v287 = vld [vmem:[%s1 + $0x40] sm:$0xf]
        %v288 = vld [vmem:[%s1 + $0x44] sm:$0xf]
        %v289 = vld [vmem:[%s1 + $0x48] sm:$0x7]
        %v290 = vld [vmem:[%s242] sm:$0xff]
        %v291 = vld [vmem:[%s242 + $0x8] sm:$0xff]
        %v292 = vld [vmem:[%s242 + $0x10] sm:$0xff]
        %v293 = vld [vmem:[%s242 + $0x18] sm:$0xff]
        %v298 = vunpack.c.l.b16 %v290
        %v299 = vunpack.c.h.b16 %v290
        %v300 = vunpack.c.l.b16 %v291
        %v301 = vunpack.c.h.b16 %v291
        %v302 = vunpack.c.l.b16 %v292
        %v303 = vunpack.c.h.b16 %v292
        %v304 = vunpack.c.l.b16 %v293
        %v305 = vunpack.c.h.b16 %v293
        %v306 = vpack.c.b16 %v300, %v298
        %v307 = vpack.c.b16 %v301, %v299
        %v308 = vpack.c.b16 %v304, %v302
        %v309 = vpack.c.b16 %v305, %v303
        %v331 = vunpack.c.l.b16 %v271
        %v332 = vunpack.c.l.b16 %v272
        %v333 = vunpack.c.l.b16 %v273
        %v334 = vunpack.c.l.b16 %v274
        %v335 = vunpack.c.l.b16 %v275
        %v336 = vunpack.c.l.b16 %v276
        %v337 = vunpack.c.l.b16 %v277
        %v338 = vunpack.c.l.b16 %v278
        %v339 = vunpack.c.l.b16 %v279
        %v340 = vunpack.c.l.b16 %v280
        %v341 = vunpack.c.l.b16 %v281
        %v342 = vunpack.c.l.b16 %v282
        %v343 = vunpack.c.l.b16 %v283
        %v344 = vunpack.c.l.b16 %v284
        %v345 = vunpack.c.l.b16 %v285
        %v346 = vunpack.c.l.b16 %v286
        %v347 = vunpack.c.l.b16 %v287
        %v348 = vunpack.c.l.b16 %v288
        %v349 = vunpack.c.l.b16 %v289
        %v350 = vpack.c.b16 %v332, %v331
        %v351 = vpack.c.b16 %v334, %v333
        %v352 = vpack.c.b16 %v336, %v335
        %v353 = vpack.c.b16 %v338, %v337
        %v354 = vpack.c.b16 %v340, %v339
        %v355 = vpack.c.b16 %v342, %v341
        %v356 = vpack.c.b16 %v344, %v343
        %v357 = vpack.c.b16 %v346, %v345
        %v358 = vpack.c.b16 %v348, %v347
        %v359 = vpack.c.b16 %v349, %v349
        %vm369 = vcmask 179200
        %v371 = vsel %vm369, %v307, 0
        %v374 = vsel %vm369, %v309, 0
        %vm376 = vcmask 1042432
        %v378 = vsel %vm376, %v359, 0
        %380 = vmatprep.subr.bf16.mxu0 0
        %381 = vmatpush1.bf16.msra.mxu0 %v357
        %382 = vmatprep.subr.bf16.mxu0 0
        %383 = vmatpush1.bf16.msra.mxu0 %v356
        %384 = vmatprep.subr.bf16.mxu0 0
        %385 = vmatpush1.bf16.msra.mxu0 %v355
        %386 = vmatprep.subr.bf16.mxu0 0
        %387 = vmatpush1.bf16.msra.mxu0 %v354
        %388 = vmatprep.subr.bf16.mxu0 0
        %389 = vmatpush1.bf16.msra.mxu0 %v353
        %390 = vmatprep.subr.bf16.mxu0 0
        %391 = vmatpush1.bf16.msra.mxu0 %v352
        %392 = vmatprep.subr.bf16.mxu0 0
        %393 = vmatpush1.bf16.msra.mxu0 %v351
        %394 = vmatprep.subr.bf16.mxu0 0
        %395 = vmatpush1.bf16.msra.mxu0 %v350
        %396 = vmatprep.subr.bf16.mxu0 0
        %397 = vmatpush2.bf16.msra.mxu0 0
        %398 = vmatprep.subr.bf16.mxu0 0
        %399 = vmatpush2.bf16.msra.mxu0 0
        %400 = vmatprep.subr.bf16.mxu0 0
        %401 = vmatpush2.bf16.msra.mxu0 0
        %402 = vmatprep.subr.bf16.mxu0 0
        %403 = vmatpush2.bf16.msra.mxu0 0
        %404 = vmatprep.subr.bf16.mxu0 0
        %405 = vmatpush2.bf16.msra.mxu0 0
        %406 = vmatprep.subr.bf16.mxu0 0
        %407 = vmatpush2.bf16.msra.mxu0 0
        %408 = vmatprep.subr.bf16.mxu0 0
        %409 = vmatpush2.bf16.msra.mxu0 %v378
        %410 = vmatprep.subr.bf16.mxu0 0
        %411 = vmatpush2.bf16.msra.mxu0 %v358
        %412 = vmatprep.mubr.bf16.mxu0 %v371
        %413 = vmatmul.mubr.bf16.gmra.mxu0 %v306
        %v414 = vpop.f32.mrf.mxu0
        %v415 = vadd.f32 0.0, %v414
        %v416 = vpop.f32.mrf.mxu0
        %v417 = vpop.f32.mrf.mxu0
        %v418 = vadd.f32 0.0, %v417
        %v419 = vpop.f32.mrf.mxu0
        %420 = vmatprep.mubr.bf16.mxu0 %v374
        %421 = vmatmul.mubr.bf16.gmra.mxu0 %v308
        %v422 = vpop.f32.mrf.mxu0
        %v423 = vadd.f32 0.0, %v422
        %v424 = vpop.f32.mrf.mxu0
        %v425 = vpop.f32.mrf.mxu0
        %v426 = vadd.f32 0.0, %v425
        %v427 = vpop.f32.mrf.mxu0
        %428 = vdwg.mxu0
        %s429 = scalar_lea.vmem %s242, 32 [#allocation2]
        %v430 = vld [vmem:[%s429] sm:$0xff]
        %v431 = vld [vmem:[%s429 + $0x8] sm:$0xff]
        %v432 = vld [vmem:[%s429 + $0x10] sm:$0xff]
        %v433 = vld [vmem:[%s429 + $0x18] sm:$0xff]
        %v438 = vunpack.c.l.b16 %v430
        %v439 = vunpack.c.h.b16 %v430
        %v440 = vunpack.c.l.b16 %v431
        %v441 = vunpack.c.h.b16 %v431
        %v442 = vunpack.c.l.b16 %v432
        %v443 = vunpack.c.h.b16 %v432
        %v444 = vunpack.c.l.b16 %v433
        %v445 = vunpack.c.h.b16 %v433
        %v446 = vpack.c.b16 %v440, %v438
        %v447 = vpack.c.b16 %v441, %v439
        %v448 = vpack.c.b16 %v444, %v442
        %v449 = vpack.c.b16 %v445, %v443
        %v453 = vsel %vm369, %v447, 0
        %v456 = vsel %vm369, %v449, 0
        %458 = vmatprep.subr.bf16.mxu0 0
        %459 = vmatpush1.bf16.msra.mxu0 %v357
        %460 = vmatprep.subr.bf16.mxu0 0
        %461 = vmatpush1.bf16.msra.mxu0 %v356
        %462 = vmatprep.subr.bf16.mxu0 0
        %463 = vmatpush1.bf16.msra.mxu0 %v355
        %464 = vmatprep.subr.bf16.mxu0 0
        %465 = vmatpush1.bf16.msra.mxu0 %v354
        %466 = vmatprep.subr.bf16.mxu0 0
        %467 = vmatpush1.bf16.msra.mxu0 %v353
        %468 = vmatprep.subr.bf16.mxu0 0
        %469 = vmatpush1.bf16.msra.mxu0 %v352
        %470 = vmatprep.subr.bf16.mxu0 0
        %471 = vmatpush1.bf16.msra.mxu0 %v351
        %472 = vmatprep.subr.bf16.mxu0 0
        %473 = vmatpush1.bf16.msra.mxu0 %v350
        %474 = vmatprep.subr.bf16.mxu0 0
        %475 = vmatpush2.bf16.msra.mxu0 0
        %476 = vmatprep.subr.bf16.mxu0 0
        %477 = vmatpush2.bf16.msra.mxu0 0
        %478 = vmatprep.subr.bf16.mxu0 0
        %479 = vmatpush2.bf16.msra.mxu0 0
        %480 = vmatprep.subr.bf16.mxu0 0
        %481 = vmatpush2.bf16.msra.mxu0 0
        %482 = vmatprep.subr.bf16.mxu0 0
        %483 = vmatpush2.bf16.msra.mxu0 0
        %484 = vmatprep.subr.bf16.mxu0 0
        %485 = vmatpush2.bf16.msra.mxu0 0
        %486 = vmatprep.subr.bf16.mxu0 0
        %487 = vmatpush2.bf16.msra.mxu0 %v378
        %488 = vmatprep.subr.bf16.mxu0 0
        %489 = vmatpush2.bf16.msra.mxu0 %v358
        %490 = vmatprep.mubr.bf16.mxu0 %v453
        %491 = vmatmul.mubr.bf16.gmra.mxu0 %v446
        %v492 = vpop.f32.mrf.mxu0
        %v493 = vadd.f32 0.0, %v492
        %v494 = vpop.f32.mrf.mxu0
        %v495 = vpop.f32.mrf.mxu0
        %v496 = vadd.f32 0.0, %v495
        %v497 = vpop.f32.mrf.mxu0
        %498 = vmatprep.mubr.bf16.mxu0 %v456
        %499 = vmatmul.mubr.bf16.gmra.mxu0 %v448
        %v500 = vpop.f32.mrf.mxu0
        %v501 = vadd.f32 0.0, %v500
        %v502 = vpop.f32.mrf.mxu0
        %v503 = vpop.f32.mrf.mxu0
        %v504 = vadd.f32 0.0, %v503
        %v505 = vpop.f32.mrf.mxu0
        %506 = vdwg.mxu0
        %v507 = vmax.f32 %v415, %v493
        %v508 = vmax.f32 %v418, %v496
        %v509 = vmax.f32 %v423, %v501
        %v510 = vmax.f32 %v426, %v504
        %s511 = scalar_lea.vmem %s242, 64 [#allocation2]
        %v512 = vld [vmem:[%s511] sm:$0xff]
        %v513 = vld [vmem:[%s511 + $0x8] sm:$0xff]
        %v514 = vld [vmem:[%s511 + $0x10] sm:$0xff]
        %v515 = vld [vmem:[%s511 + $0x18] sm:$0xff]
        %v520 = vunpack.c.l.b16 %v512
        %v521 = vunpack.c.h.b16 %v512
        %v522 = vunpack.c.l.b16 %v513
        %v523 = vunpack.c.h.b16 %v513
        %v524 = vunpack.c.l.b16 %v514
        %v525 = vunpack.c.h.b16 %v514
        %v526 = vunpack.c.l.b16 %v515
        %v527 = vunpack.c.h.b16 %v515
        %v528 = vpack.c.b16 %v522, %v520
        %v529 = vpack.c.b16 %v523, %v521
        %v530 = vpack.c.b16 %v526, %v524
        %v531 = vpack.c.b16 %v527, %v525
        %v535 = vsel %vm369, %v529, 0
        %v538 = vsel %vm369, %v531, 0
        %540 = vmatprep.subr.bf16.mxu0 0
        %541 = vmatpush1.bf16.msra.mxu0 %v357
        %542 = vmatprep.subr.bf16.mxu0 0
        %543 = vmatpush1.bf16.msra.mxu0 %v356
        %544 = vmatprep.subr.bf16.mxu0 0
        %545 = vmatpush1.bf16.msra.mxu0 %v355
        %546 = vmatprep.subr.bf16.mxu0 0
        %547 = vmatpush1.bf16.msra.mxu0 %v354
        %548 = vmatprep.subr.bf16.mxu0 0
        %549 = vmatpush1.bf16.msra.mxu0 %v353
        %550 = vmatprep.subr.bf16.mxu0 0
        %551 = vmatpush1.bf16.msra.mxu0 %v352
        %552 = vmatprep.subr.bf16.mxu0 0
        %553 = vmatpush1.bf16.msra.mxu0 %v351
        %554 = vmatprep.subr.bf16.mxu0 0
        %555 = vmatpush1.bf16.msra.mxu0 %v350
        %556 = vmatprep.subr.bf16.mxu0 0
        %557 = vmatpush2.bf16.msra.mxu0 0
        %558 = vmatprep.subr.bf16.mxu0 0
        %559 = vmatpush2.bf16.msra.mxu0 0
        %560 = vmatprep.subr.bf16.mxu0 0
        %561 = vmatpush2.bf16.msra.mxu0 0
        %562 = vmatprep.subr.bf16.mxu0 0
        %563 = vmatpush2.bf16.msra.mxu0 0
        %564 = vmatprep.subr.bf16.mxu0 0
        %565 = vmatpush2.bf16.msra.mxu0 0
        %566 = vmatprep.subr.bf16.mxu0 0
        %567 = vmatpush2.bf16.msra.mxu0 0
        %568 = vmatprep.subr.bf16.mxu0 0
        %569 = vmatpush2.bf16.msra.mxu0 %v378
        %570 = vmatprep.subr.bf16.mxu0 0
        %571 = vmatpush2.bf16.msra.mxu0 %v358
        %572 = vmatprep.mubr.bf16.mxu0 %v535
        %573 = vmatmul.mubr.bf16.gmra.mxu0 %v528
        %v574 = vpop.f32.mrf.mxu0
        %v575 = vadd.f32 0.0, %v574
        %v576 = vpop.f32.mrf.mxu0
        %v577 = vpop.f32.mrf.mxu0
        %v578 = vadd.f32 0.0, %v577
        %v579 = vpop.f32.mrf.mxu0
        %580 = vmatprep.mubr.bf16.mxu0 %v538
        %581 = vmatmul.mubr.bf16.gmra.mxu0 %v530
        %v582 = vpop.f32.mrf.mxu0
        %v583 = vadd.f32 0.0, %v582
        %v584 = vpop.f32.mrf.mxu0
        %v585 = vpop.f32.mrf.mxu0
        %v586 = vadd.f32 0.0, %v585
        %v587 = vpop.f32.mrf.mxu0
        %588 = vdwg.mxu0
        %v589 = vmax.f32 %v507, %v575
        %v590 = vmax.f32 %v508, %v578
        %v591 = vmax.f32 %v509, %v583
        %v592 = vmax.f32 %v510, %v586
        %s593 = scalar_lea.vmem %s242, 96 [#allocation2]
        %v594 = vld [vmem:[%s593] sm:$0xff]
        %v595 = vld [vmem:[%s593 + $0x8] sm:$0xff]
        %v596 = vld [vmem:[%s593 + $0x10] sm:$0xff]
        %v597 = vld [vmem:[%s593 + $0x18] sm:$0xff]
        %v602 = vunpack.c.l.b16 %v594
        %v603 = vunpack.c.h.b16 %v594
        %v604 = vunpack.c.l.b16 %v595
        %v605 = vunpack.c.h.b16 %v595
        %v606 = vunpack.c.l.b16 %v596
        %v607 = vunpack.c.h.b16 %v596
        %v608 = vunpack.c.l.b16 %v597
        %v609 = vunpack.c.h.b16 %v597
        %v610 = vpack.c.b16 %v604, %v602
        %v611 = vpack.c.b16 %v605, %v603
        %v612 = vpack.c.b16 %v608, %v606
        %v613 = vpack.c.b16 %v609, %v607
        %v617 = vsel %vm369, %v611, 0
        %v620 = vsel %vm369, %v613, 0
        %622 = vmatprep.subr.bf16.mxu0 0
        %623 = vmatpush1.bf16.msra.mxu0 %v357
        %624 = vmatprep.subr.bf16.mxu0 0
        %625 = vmatpush1.bf16.msra.mxu0 %v356
        %626 = vmatprep.subr.bf16.mxu0 0
        %627 = vmatpush1.bf16.msra.mxu0 %v355
        %628 = vmatprep.subr.bf16.mxu0 0
        %629 = vmatpush1.bf16.msra.mxu0 %v354
        %630 = vmatprep.subr.bf16.mxu0 0
        %631 = vmatpush1.bf16.msra.mxu0 %v353
        %632 = vmatprep.subr.bf16.mxu0 0
        %633 = vmatpush1.bf16.msra.mxu0 %v352
        %634 = vmatprep.subr.bf16.mxu0 0
        %635 = vmatpush1.bf16.msra.mxu0 %v351
        %636 = vmatprep.subr.bf16.mxu0 0
        %637 = vmatpush1.bf16.msra.mxu0 %v350
        %638 = vmatprep.subr.bf16.mxu0 0
        %639 = vmatpush2.bf16.msra.mxu0 0
        %640 = vmatprep.subr.bf16.mxu0 0
        %641 = vmatpush2.bf16.msra.mxu0 0
        %642 = vmatprep.subr.bf16.mxu0 0
        %643 = vmatpush2.bf16.msra.mxu0 0
        %644 = vmatprep.subr.bf16.mxu0 0
        %645 = vmatpush2.bf16.msra.mxu0 0
        %646 = vmatprep.subr.bf16.mxu0 0
        %647 = vmatpush2.bf16.msra.mxu0 0
        %648 = vmatprep.subr.bf16.mxu0 0
        %649 = vmatpush2.bf16.msra.mxu0 0
        %650 = vmatprep.subr.bf16.mxu0 0
        %651 = vmatpush2.bf16.msra.mxu0 %v378
        %652 = vmatprep.subr.bf16.mxu0 0
        %653 = vmatpush2.bf16.msra.mxu0 %v358
        %654 = vmatprep.mubr.bf16.mxu0 %v617
        %655 = vmatmul.mubr.bf16.gmra.mxu0 %v610
        %v656 = vpop.f32.mrf.mxu0
        %v657 = vadd.f32 0.0, %v656
        %v658 = vpop.f32.mrf.mxu0
        %v659 = vpop.f32.mrf.mxu0
        %v660 = vadd.f32 0.0, %v659
        %v661 = vpop.f32.mrf.mxu0
        %662 = vmatprep.mubr.bf16.mxu0 %v620
        %663 = vmatmul.mubr.bf16.gmra.mxu0 %v612
        %v664 = vpop.f32.mrf.mxu0
        %v665 = vadd.f32 0.0, %v664
        %v666 = vpop.f32.mrf.mxu0
        %v667 = vpop.f32.mrf.mxu0
        %v668 = vadd.f32 0.0, %v667
        %v669 = vpop.f32.mrf.mxu0
        %670 = vdwg.mxu0
        %v671 = vmax.f32 %v589, %v657
        %v672 = vmax.f32 %v590, %v660
        %v673 = vmax.f32 %v591, %v665
        %v674 = vmax.f32 %v592, %v668
        %v675 = vld [vmem:[%s2] sm:$0x1]
        %v677 = vlaneseq
        %v678 = vshrl.u32 %v677, 7
        %v679 = vsub.s32 0, %v678
        %v680 = vrot.slane %v675, %v679
        %v682 = vadd.f32 %v671, %v680
        %v683 = vadd.f32 %v672, %v680
        %v684 = vadd.f32 %v673, %v680
        %v685 = vadd.f32 %v674, %v680
        %v686 = vmax.f32 %v682, 0.0
        %v687 = vmax.f32 %v683, 0.0
        %v688 = vmax.f32 %v684, 0.0
        %v689 = vmax.f32 %v685, 0.0
        %v690 = vpack.c.bf16 %v687, %v686
        %v691 = vpack.c.bf16 %v689, %v688
        %v694 = vunpack.c.l.b16 %v690
        %v695 = vunpack.c.h.b16 %v690
        %v696 = vunpack.c.l.b16 %v691
        %v697 = vunpack.c.h.b16 %v691
        %v698 = vpack.c.b16 %v694, %v694
        %v699 = vpack.c.b16 %v695, %v695
        %v700 = vpack.c.b16 %v696, %v696
        %v701 = vpack.c.b16 %v697, %v697
        %vm706 = vcmask 125952
        %707 = vst.msk [vmem:[%s268] sm:$0xf] %vm706, %v698
        %708 = vst.msk [vmem:[%s268 + $0x4] sm:$0xf] %vm706, %v699
        %709 = vst.msk [vmem:[%s268 + $0x8] sm:$0xf] %vm706, %v700
        %710 = vst.msk [vmem:[%s268 + $0xc] sm:$0xf] %vm706, %v701
        %s711 = smul.u32 4, %s14
        %p712 = scmp.lt.s32.totalorder %s711, 7
        %s713 = scalar_select %p712, %s711, 7
        %s714 = smul.addr %s713, 4
        %s715 = scalar_lea.vmem %s3, %s714
        // Predicated region
        $region71: #{convnet_forward.4} parent=65 // pred_check
          %p716 = pneg %p100
        $region72: #{convnet_forward.4} parent=65 // pred_check_branch
          %718 = sbr.rel (%p716) target = $region74
        $region73: #{convnet_forward.4} parent=65 // pred_region
          %s719 = smul.u32 4, %s14
        $region74: #{convnet_forward.4} parent=65 // pred_fallthru
          _
      $region66: #{convnet_forward.4} parent=5 // pred_fallthru
        _
      %p720 = scmp.le.s32.totalorder 2, %s9
      // Predicated region
      $region75: #{convnet_forward.4} parent=5 // pred_check
        %p721 = pneg %p720
      $region76: #{convnet_forward.4} parent=5 // pred_check_branch
        %723 = sbr.rel (%p721) target = $region78
      $region77: #{convnet_forward.4} parent=5 // pred_region
        %s724 = ssub.s32 %s9, 2
        // Predicated region
        $region79: #{convnet_forward.4} parent=77 // pred_check
          %p725 = pneg %p106
        $region80: #{convnet_forward.4} parent=77 // pred_check_branch
          %727 = sbr.rel (%p725) target = $region82
        $region81: #{convnet_forward.4} parent=77 // pred_region
          %s728 = smul.u32 4, %s15
          %p729 = scmp.lt.s32.totalorder %s728, 7
          %s730 = scalar_select %p729, %s728, 7
          %s731 = smul.addr %s730, 4
          %s732 = scalar_lea.vmem %s3, %s731
        $region82: #{convnet_forward.4} parent=77 // pred_fallthru
          _
      $region78: #{convnet_forward.4} parent=5 // pred_fallthru
        _
    $region6: #{convnet_forward.4} parent=1 // loop_footer
      %s13 = sadd.s32 1, %s9
    $region7: #{convnet_forward.4} parent=1 // loop_footer_branch
      %8 = sbr.rel target = $region3
    $region8: #{convnet_forward.4} parent=1 // loop_exit
      _

// kernel: convnet_forward.5
$region0: #{convnet_forward.5}
  #allocation0 [shape = 'u32[]', space=smem, size = 0x4, offset = 0x4, fixed_abs, tag = 'smem constant byte address 0x4 - core index']
  #allocation1 [shape = 'u32[144,128]{1,0:T(1,128)}', space=vmem, size = 0x12000, scoped, tag = 'internal scratch']
  %s0 = inlined_call_operand.vmem [shape: bf16[8,400], index: 0, kind: input, shape index: {}]
  %s1 = inlined_call_operand.vmem [shape: bf16[400,120], index: 1, kind: input, shape index: {}]
  %s2 = inlined_call_operand.vmem [shape: f32[1,120], index: 2, kind: input, shape index: {}]
  %s3 = inlined_call_operand.vmem [shape: bf16[120,84], index: 3, kind: input, shape index: {}]
  %s4 = inlined_call_operand.vmem [shape: f32[1,84], index: 4, kind: input, shape index: {}]
  %s5 = inlined_call_operand.vmem [shape: bf16[84,10], index: 5, kind: input, shape index: {}]
  %s6 = inlined_call_operand.vmem [shape: f32[1,10], index: 6, kind: input, shape index: {}]
  %s7 = inlined_call_operand.vmem [shape: f32[8,10], index: 7, kind: output, shape index: {}]
  %s8 = sld [smem:[#allocation0]]
  $region38: #{convnet_forward.5} parent=0
    _
  %s10 = ssub.s32 1, %s8
  %s11 = scalar_select 0, %s10, %s8
  // Predicated region
  $region2: #{convnet_forward.5} parent=0 // pred_check
    _
  $region3: #{convnet_forward.5} parent=0 // pred_check_branch
    %13 = sbr.rel (0) target = $region5
  $region4: #{convnet_forward.5} parent=0 // pred_region
    _
  $region5: #{convnet_forward.5} parent=0 // pred_fallthru
    _
  // Predicated region
  $region6: #{convnet_forward.5} parent=0 // pred_check
    _
  $region7: #{convnet_forward.5} parent=0 // pred_check_branch
    %15 = sbr.rel (0) target = $region9
  $region8: #{convnet_forward.5} parent=0 // pred_region
    _
  $region9: #{convnet_forward.5} parent=0 // pred_fallthru
    _
  // Predicated region
  $region10: #{convnet_forward.5} parent=0 // pred_check
    _
  $region11: #{convnet_forward.5} parent=0 // pred_check_branch
    %17 = sbr.rel (0) target = $region13
  $region12: #{convnet_forward.5} parent=0 // pred_region
    _
  $region13: #{convnet_forward.5} parent=0 // pred_fallthru
    _
  // Predicated region
  $region14: #{convnet_forward.5} parent=0 // pred_check
    _
  $region15: #{convnet_forward.5} parent=0 // pred_check_branch
    %19 = sbr.rel (0) target = $region17
  $region16: #{convnet_forward.5} parent=0 // pred_region
    _
  $region17: #{convnet_forward.5} parent=0 // pred_fallthru
    _
  // Predicated region
  $region18: #{convnet_forward.5} parent=0 // pred_check
    _
  $region19: #{convnet_forward.5} parent=0 // pred_check_branch
    %21 = sbr.rel (0) target = $region21
  $region20: #{convnet_forward.5} parent=0 // pred_region
    _
  $region21: #{convnet_forward.5} parent=0 // pred_fallthru
    _
  // Predicated region
  $region22: #{convnet_forward.5} parent=0 // pred_check
    _
  $region23: #{convnet_forward.5} parent=0 // pred_check_branch
    %23 = sbr.rel (0) target = $region25
  $region24: #{convnet_forward.5} parent=0 // pred_region
    _
  $region25: #{convnet_forward.5} parent=0 // pred_fallthru
    _
  // Predicated region
  $region26: #{convnet_forward.5} parent=0 // pred_check
    _
  $region27: #{convnet_forward.5} parent=0 // pred_check_branch
    %25 = sbr.rel (0) target = $region29
  $region28: #{convnet_forward.5} parent=0 // pred_region
    _
  $region29: #{convnet_forward.5} parent=0 // pred_fallthru
    _
  %v27 = vld [vmem:[%s0] sm:$0xff]
  %v28 = vld [vmem:[%s0 + $0x8] sm:$0xff]
  %v29 = vld [vmem:[%s1] sm:$0xf]
  %v30 = vld [vmem:[%s1 + $0x4] sm:$0xf]
  %v31 = vld [vmem:[%s1 + $0x8] sm:$0xf]
  %v32 = vld [vmem:[%s1 + $0xc] sm:$0xf]
  %v33 = vld [vmem:[%s1 + $0x10] sm:$0xf]
  %v34 = vld [vmem:[%s1 + $0x14] sm:$0xf]
  %v35 = vld [vmem:[%s1 + $0x18] sm:$0xf]
  %v36 = vld [vmem:[%s1 + $0x1c] sm:$0xf]
  %v37 = vld [vmem:[%s1 + $0x20] sm:$0xf]
  %v38 = vld [vmem:[%s1 + $0x24] sm:$0xf]
  %v39 = vld [vmem:[%s1 + $0x28] sm:$0xf]
  %v40 = vld [vmem:[%s1 + $0x2c] sm:$0xf]
  %v41 = vld [vmem:[%s1 + $0x30] sm:$0xf]
  %v42 = vld [vmem:[%s1 + $0x34] sm:$0xf]
  %v43 = vld [vmem:[%s1 + $0x38] sm:$0xf]
  %v44 = vld [vmem:[%s1 + $0x3c] sm:$0xf]
  %v45 = vld [vmem:[%s1 + $0x40] sm:$0xf]
  %v46 = vld [vmem:[%s1 + $0x44] sm:$0xf]
  %v47 = vld [vmem:[%s1 + $0x48] sm:$0xf]
  %v48 = vld [vmem:[%s1 + $0x4c] sm:$0xf]
  %v49 = vld [vmem:[%s1 + $0x50] sm:$0xf]
  %v50 = vld [vmem:[%s1 + $0x54] sm:$0xf]
  %v51 = vld [vmem:[%s1 + $0x58] sm:$0xf]
  %v52 = vld [vmem:[%s1 + $0x5c] sm:$0xf]
  %v53 = vld [vmem:[%s1 + $0x60] sm:$0xf]
  %v54 = vld [vmem:[%s1 + $0x64] sm:$0xf]
  %v55 = vld [vmem:[%s1 + $0x68] sm:$0xf]
  %v56 = vld [vmem:[%s1 + $0x6c] sm:$0xf]
  %v57 = vld [vmem:[%s1 + $0x70] sm:$0xf]
  %v58 = vld [vmem:[%s1 + $0x74] sm:$0xf]
  %v59 = vld [vmem:[%s1 + $0x78] sm:$0xf]
  %v60 = vld [vmem:[%s1 + $0x7c] sm:$0xf]
  %v61 = vld [vmem:[%s1 + $0x80] sm:$0xf]
  %v62 = vld [vmem:[%s1 + $0x84] sm:$0xf]
  %v63 = vld [vmem:[%s1 + $0x88] sm:$0xf]
  %v64 = vld [vmem:[%s1 + $0x8c] sm:$0xf]
  %v65 = vld [vmem:[%s1 + $0x90] sm:$0xf]
  %v66 = vld [vmem:[%s1 + $0x94] sm:$0xf]
  %v67 = vld [vmem:[%s1 + $0x98] sm:$0xf]
  %v68 = vld [vmem:[%s1 + $0x9c] sm:$0xf]
  %v69 = vld [vmem:[%s1 + $0xa0] sm:$0xf]
  %v70 = vld [vmem:[%s1 + $0xa4] sm:$0xf]
  %v71 = vld [vmem:[%s1 + $0xa8] sm:$0xf]
  %v72 = vld [vmem:[%s1 + $0xac] sm:$0xf]
  %v73 = vld [vmem:[%s1 + $0xb0] sm:$0xf]
  %v74 = vld [vmem:[%s1 + $0xb4] sm:$0xf]
  %v75 = vld [vmem:[%s1 + $0xb8] sm:$0xf]
  %v76 = vld [vmem:[%s1 + $0xbc] sm:$0xf]
  %v77 = vld [vmem:[%s1 + $0xc0] sm:$0xf]
  %v78 = vld [vmem:[%s1 + $0xc4] sm:$0xf]
  %v79 = vld [vmem:[%s2] sm:$0x1]
  %v81 = vlaneseq
  %v82 = vshrl.u32 %v81, 7
  %v83 = vsub.s32 0, %v82
  %v84 = vrot.slane %v79, %v83
  %v88 = vunpack.c.l.b16 %v27
  %v89 = vunpack.c.h.b16 %v27
  %v90 = vunpack.c.l.b16 %v28
  %v91 = vunpack.c.h.b16 %v28
  %v92 = vpack.c.b16 %v88, %v88
  %v93 = vpack.c.b16 %v89, %v89
  %v94 = vpack.c.b16 %v90, %v90
  %v95 = vpack.c.b16 %v91, %v91
  %v149 = vunpack.c.l.b16 %v29
  %v150 = vunpack.c.l.b16 %v30
  %v151 = vunpack.c.l.b16 %v31
  %v152 = vunpack.c.l.b16 %v32
  %v153 = vunpack.c.l.b16 %v33
  %v154 = vunpack.c.l.b16 %v34
  %v155 = vunpack.c.l.b16 %v35
  %v156 = vunpack.c.l.b16 %v36
  %v157 = vunpack.c.l.b16 %v37
  %v158 = vunpack.c.l.b16 %v38
  %v159 = vunpack.c.l.b16 %v39
  %v160 = vunpack.c.l.b16 %v40
  %v161 = vunpack.c.l.b16 %v41
  %v162 = vunpack.c.l.b16 %v42
  %v163 = vunpack.c.l.b16 %v43
  %v164 = vunpack.c.l.b16 %v44
  %v165 = vunpack.c.l.b16 %v45
  %v166 = vunpack.c.l.b16 %v46
  %v167 = vunpack.c.l.b16 %v47
  %v168 = vunpack.c.l.b16 %v48
  %v169 = vunpack.c.l.b16 %v49
  %v170 = vunpack.c.l.b16 %v50
  %v171 = vunpack.c.l.b16 %v51
  %v172 = vunpack.c.l.b16 %v52
  %v173 = vunpack.c.l.b16 %v53
  %v174 = vunpack.c.l.b16 %v54
  %v175 = vunpack.c.l.b16 %v55
  %v176 = vunpack.c.l.b16 %v56
  %v177 = vunpack.c.l.b16 %v57
  %v178 = vunpack.c.l.b16 %v58
  %v179 = vunpack.c.l.b16 %v59
  %v180 = vunpack.c.l.b16 %v60
  %v181 = vunpack.c.l.b16 %v61
  %v182 = vunpack.c.l.b16 %v62
  %v183 = vunpack.c.l.b16 %v63
  %v184 = vunpack.c.l.b16 %v64
  %v185 = vunpack.c.l.b16 %v65
  %v186 = vunpack.c.l.b16 %v66
  %v187 = vunpack.c.l.b16 %v67
  %v188 = vunpack.c.l.b16 %v68
  %v189 = vunpack.c.l.b16 %v69
  %v190 = vunpack.c.l.b16 %v70
  %v191 = vunpack.c.l.b16 %v71
  %v192 = vunpack.c.l.b16 %v72
  %v193 = vunpack.c.l.b16 %v73
  %v194 = vunpack.c.l.b16 %v74
  %v195 = vunpack.c.l.b16 %v75
  %v196 = vunpack.c.l.b16 %v76
  %v197 = vunpack.c.l.b16 %v77
  %v198 = vunpack.c.l.b16 %v78
  %v199 = vpack.c.b16 %v150, %v149
  %v200 = vpack.c.b16 %v152, %v151
  %v201 = vpack.c.b16 %v154, %v153
  %v202 = vpack.c.b16 %v156, %v155
  %v203 = vpack.c.b16 %v158, %v157
  %v204 = vpack.c.b16 %v160, %v159
  %v205 = vpack.c.b16 %v162, %v161
  %v206 = vpack.c.b16 %v164, %v163
  %v207 = vpack.c.b16 %v166, %v165
  %v208 = vpack.c.b16 %v168, %v167
  %v209 = vpack.c.b16 %v170, %v169
  %v210 = vpack.c.b16 %v172, %v171
  %v211 = vpack.c.b16 %v174, %v173
  %v212 = vpack.c.b16 %v176, %v175
  %v213 = vpack.c.b16 %v178, %v177
  %v214 = vpack.c.b16 %v180, %v179
  %v215 = vpack.c.b16 %v182, %v181
  %v216 = vpack.c.b16 %v184, %v183
  %v217 = vpack.c.b16 %v186, %v185
  %v218 = vpack.c.b16 %v188, %v187
  %v219 = vpack.c.b16 %v190, %v189
  %v220 = vpack.c.b16 %v192, %v191
  %v221 = vpack.c.b16 %v194, %v193
  %v222 = vpack.c.b16 %v196, %v195
  %v223 = vpack.c.b16 %v198, %v197
  %vm249 = vcmask 130048
  %v251 = vsel %vm249, %v95, 0
  %253 = vmatprep.subr.bf16.mxu0 0
  %254 = vmatpush1.bf16.msra.mxu0 %v206
  %255 = vmatprep.subr.bf16.mxu0 0
  %256 = vmatpush1.bf16.msra.mxu0 %v205
  %257 = vmatprep.subr.bf16.mxu0 0
  %258 = vmatpush1.bf16.msra.mxu0 %v204
  %259 = vmatprep.subr.bf16.mxu0 0
  %260 = vmatpush1.bf16.msra.mxu0 %v203
  %261 = vmatprep.subr.bf16.mxu0 0
  %262 = vmatpush1.bf16.msra.mxu0 %v202
  %263 = vmatprep.subr.bf16.mxu0 0
  %264 = vmatpush1.bf16.msra.mxu0 %v201
  %265 = vmatprep.subr.bf16.mxu0 0
  %266 = vmatpush1.bf16.msra.mxu0 %v200
  %267 = vmatprep.subr.bf16.mxu0 0
  %268 = vmatpush1.bf16.msra.mxu0 %v199
  %269 = vmatprep.subr.bf16.mxu0 0
  %270 = vmatpush2.bf16.msra.mxu0 %v214
  %271 = vmatprep.subr.bf16.mxu0 0
  %272 = vmatpush2.bf16.msra.mxu0 %v213
  %273 = vmatprep.subr.bf16.mxu0 0
  %274 = vmatpush2.bf16.msra.mxu0 %v212
  %275 = vmatprep.subr.bf16.mxu0 0
  %276 = vmatpush2.bf16.msra.mxu0 %v211
  %277 = vmatprep.subr.bf16.mxu0 0
  %278 = vmatpush2.bf16.msra.mxu0 %v210
  %279 = vmatprep.subr.bf16.mxu0 0
  %280 = vmatpush2.bf16.msra.mxu0 %v209
  %281 = vmatprep.subr.bf16.mxu0 0
  %282 = vmatpush2.bf16.msra.mxu0 %v208
  %283 = vmatprep.subr.bf16.mxu0 0
  %284 = vmatpush2.bf16.msra.mxu0 %v207
  %285 = vmatprep.mubr.bf16.mxu0 %v93
  %286 = vmatmul.mubr.bf16.gmra.mxu0 %v92
  %v287 = vpop.f32.mrf.mxu0
  %v288 = vadd.f32 %v84, %v287
  %v289 = vpop.f32.mrf.mxu0
  %v290 = vpop.f32.mrf.mxu0
  %v291 = vpop.f32.mrf.mxu0
  %292 = vdwg.mxu0
  %293 = vmatprep.subr.bf16.mxu0 0
  %294 = vmatpush1.bf16.msra.mxu0 %v222
  %295 = vmatprep.subr.bf16.mxu0 0
  %296 = vmatpush1.bf16.msra.mxu0 %v221
  %297 = vmatprep.subr.bf16.mxu0 0
  %298 = vmatpush1.bf16.msra.mxu0 %v220
  %299 = vmatprep.subr.bf16.mxu0 0
  %300 = vmatpush1.bf16.msra.mxu0 %v219
  %301 = vmatprep.subr.bf16.mxu0 0
  %302 = vmatpush1.bf16.msra.mxu0 %v218
  %303 = vmatprep.subr.bf16.mxu0 0
  %304 = vmatpush1.bf16.msra.mxu0 %v217
  %305 = vmatprep.subr.bf16.mxu0 0
  %306 = vmatpush1.bf16.msra.mxu0 %v216
  %307 = vmatprep.subr.bf16.mxu0 0
  %308 = vmatpush1.bf16.msra.mxu0 %v215
  %309 = vmatprep.subr.bf16.mxu0 0
  %310 = vmatpush2.bf16.msra.mxu0 0
  %311 = vmatprep.subr.bf16.mxu0 0
  %312 = vmatpush2.bf16.msra.mxu0 0
  %313 = vmatprep.subr.bf16.mxu0 0
  %314 = vmatpush2.bf16.msra.mxu0 0
  %315 = vmatprep.subr.bf16.mxu0 0
  %316 = vmatpush2.bf16.msra.mxu0 0
  %317 = vmatprep.subr.bf16.mxu0 0
  %318 = vmatpush2.bf16.msra.mxu0 0
  %319 = vmatprep.subr.bf16.mxu0 0
  %320 = vmatpush2.bf16.msra.mxu0 0
  %321 = vmatprep.subr.bf16.mxu0 0
  %322 = vmatpush2.bf16.msra.mxu0 0
  %323 = vmatprep.subr.bf16.mxu0 0
  %324 = vmatpush2.bf16.msra.mxu0 %v223
  %325 = vmatprep.mubr.bf16.mxu0 %v251
  %326 = vmatmul.mubr.bf16.gmra.mxu0 %v94
  %v327 = vpop.f32.mrf.mxu0
  %v328 = vadd.f32 %v288, %v327
  %v329 = vpop.f32.mrf.mxu0
  %v330 = vpop.f32.mrf.mxu0
  %v331 = vpop.f32.mrf.mxu0
  %332 = vdwg.mxu0
  %v333 = vmax.f32 %v328, 0.0
  %v334 = vpack.c.bf16 %v333, %v333
  %v335 = vld [vmem:[%s3] sm:$0xf]
  %v336 = vld [vmem:[%s3 + $0x4] sm:$0xf]
  %v337 = vld [vmem:[%s3 + $0x8] sm:$0xf]
  %v338 = vld [vmem:[%s3 + $0xc] sm:$0xf]
  %v339 = vld [vmem:[%s3 + $0x10] sm:$0xf]
  %v340 = vld [vmem:[%s3 + $0x14] sm:$0xf]
  %v341 = vld [vmem:[%s3 + $0x18] sm:$0xf]
  %v342 = vld [vmem:[%s3 + $0x1c] sm:$0xf]
  %v343 = vld [vmem:[%s3 + $0x20] sm:$0xf]
  %v344 = vld [vmem:[%s3 + $0x24] sm:$0xf]
  %v345 = vld [vmem:[%s3 + $0x28] sm:$0xf]
  %v346 = vld [vmem:[%s3 + $0x2c] sm:$0xf]
  %v347 = vld [vmem:[%s3 + $0x30] sm:$0xf]
  %v348 = vld [vmem:[%s3 + $0x34] sm:$0xf]
  %v349 = vld [vmem:[%s3 + $0x38] sm:$0xf]
  %v350 = vld [vmem:[%s4] sm:$0x1]
  %v352 = vlaneseq
  %v353 = vshrl.u32 %v352, 7
  %v354 = vsub.s32 0, %v353
  %v355 = vrot.slane %v350, %v354
  %v372 = vunpack.c.l.b16 %v335
  %v373 = vunpack.c.l.b16 %v336
  %v374 = vunpack.c.l.b16 %v337
  %v375 = vunpack.c.l.b16 %v338
  %v376 = vunpack.c.l.b16 %v339
  %v377 = vunpack.c.l.b16 %v340
  %v378 = vunpack.c.l.b16 %v341
  %v379 = vunpack.c.l.b16 %v342
  %v380 = vunpack.c.l.b16 %v343
  %v381 = vunpack.c.l.b16 %v344
  %v382 = vunpack.c.l.b16 %v345
  %v383 = vunpack.c.l.b16 %v346
  %v384 = vunpack.c.l.b16 %v347
  %v385 = vunpack.c.l.b16 %v348
  %v386 = vunpack.c.l.b16 %v349
  %v387 = vpack.c.b16 %v373, %v372
  %v388 = vpack.c.b16 %v375, %v374
  %v389 = vpack.c.b16 %v377, %v376
  %v390 = vpack.c.b16 %v379, %v378
  %v391 = vpack.c.b16 %v381, %v380
  %v392 = vpack.c.b16 %v383, %v382
  %v393 = vpack.c.b16 %v385, %v384
  %v394 = vpack.c.b16 %v386, %v386
  %vm402 = vcmask 982016
  %v404 = vsel %vm402, %v334, 0
  %vm406 = vcmask 1043456
  %v408 = vsel %vm406, %v394, 0
  %410 = vmatprep.subr.bf16.mxu0 0
  %411 = vmatpush1.bf16.msra.mxu0 %v408
  %412 = vmatprep.subr.bf16.mxu0 0
  %413 = vmatpush1.bf16.msra.mxu0 %v393
  %414 = vmatprep.subr.bf16.mxu0 0
  %415 = vmatpush1.bf16.msra.mxu0 %v392
  %416 = vmatprep.subr.bf16.mxu0 0
  %417 = vmatpush1.bf16.msra.mxu0 %v391
  %418 = vmatprep.subr.bf16.mxu0 0
  %419 = vmatpush1.bf16.msra.mxu0 %v390
  %420 = vmatprep.subr.bf16.mxu0 0
  %421 = vmatpush1.bf16.msra.mxu0 %v389
  %422 = vmatprep.subr.bf16.mxu0 0
  %423 = vmatpush1.bf16.msra.mxu0 %v388
  %424 = vmatprep.subr.bf16.mxu0 0
  %425 = vmatpush1.bf16.msra.mxu0 %v387
  %426 = vmatprep.subr.bf16.mxu0 0
  %427 = vmatpush2.bf16.msra.mxu0 0
  %428 = vmatprep.subr.bf16.mxu0 0
  %429 = vmatpush2.bf16.msra.mxu0 0
  %430 = vmatprep.subr.bf16.mxu0 0
  %431 = vmatpush2.bf16.msra.mxu0 0
  %432 = vmatprep.subr.bf16.mxu0 0
  %433 = vmatpush2.bf16.msra.mxu0 0
  %434 = vmatprep.subr.bf16.mxu0 0
  %435 = vmatpush2.bf16.msra.mxu0 0
  %436 = vmatprep.subr.bf16.mxu0 0
  %437 = vmatpush2.bf16.msra.mxu0 0
  %438 = vmatprep.subr.bf16.mxu0 0
  %439 = vmatpush2.bf16.msra.mxu0 0
  %440 = vmatprep.subr.bf16.mxu0 0
  %441 = vmatpush2.bf16.msra.mxu0 0
  %442 = vmatprep.mubr.bf16.mxu0 0
  %443 = vmatmul.mubr.bf16.gmra.mxu0 %v404
  %v444 = vpop.f32.mrf.mxu0
  %v445 = vadd.f32 %v355, %v444
  %v446 = vpop.f32.mrf.mxu0
  %v447 = vpop.f32.mrf.mxu0
  %v448 = vpop.f32.mrf.mxu0
  %449 = vdwg.mxu0
  %v450 = vmax.f32 %v445, 0.0
  %v451 = vpack.c.bf16 %v450, %v450
  %v452 = vld [vmem:[%s5] sm:$0xf]
  %v453 = vld [vmem:[%s5 + $0x4] sm:$0xf]
  %v454 = vld [vmem:[%s5 + $0x8] sm:$0xf]
  %v455 = vld [vmem:[%s5 + $0xc] sm:$0xf]
  %v456 = vld [vmem:[%s5 + $0x10] sm:$0xf]
  %v457 = vld [vmem:[%s5 + $0x14] sm:$0xf]
  %v458 = vld [vmem:[%s5 + $0x18] sm:$0xf]
  %v459 = vld [vmem:[%s5 + $0x1c] sm:$0xf]
  %v460 = vld [vmem:[%s5 + $0x20] sm:$0xf]
  %v461 = vld [vmem:[%s5 + $0x24] sm:$0xf]
  %v462 = vld [vmem:[%s5 + $0x28] sm:$0x3]
  %v463 = vld [vmem:[%s6] sm:$0x1]
  %v465 = vlaneseq
  %v466 = vshrl.u32 %v465, 7
  %v467 = vsub.s32 0, %v466
  %v468 = vrot.slane %v463, %v467
  %v481 = vunpack.c.l.b16 %v452
  %v482 = vunpack.c.l.b16 %v453
  %v483 = vunpack.c.l.b16 %v454
  %v484 = vunpack.c.l.b16 %v455
  %v485 = vunpack.c.l.b16 %v456
  %v486 = vunpack.c.l.b16 %v457
  %v487 = vunpack.c.l.b16 %v458
  %v488 = vunpack.c.l.b16 %v459
  %v489 = vunpack.c.l.b16 %v460
  %v490 = vunpack.c.l.b16 %v461
  %v491 = vunpack.c.l.b16 %v462
  %v492 = vpack.c.b16 %v482, %v481
  %v493 = vpack.c.b16 %v484, %v483
  %v494 = vpack.c.b16 %v486, %v485
  %v495 = vpack.c.b16 %v488, %v487
  %v496 = vpack.c.b16 %v490, %v489
  %v497 = vpack.c.b16 %v491, %v491
  %vm503 = vcmask 687104
  %v505 = vsel %vm503, %v451, 0
  %vm507 = vcmask 1041408
  %v509 = vsel %vm507, %v497, 0
  %511 = vmatprep.subr.bf16.mxu0 0
  %512 = vmatpush1.bf16.msra.mxu0 0
  %513 = vmatprep.subr.bf16.mxu0 0
  %514 = vmatpush1.bf16.msra.mxu0 0
  %515 = vmatprep.subr.bf16.mxu0 0
  %516 = vmatpush1.bf16.msra.mxu0 %v509
  %517 = vmatprep.subr.bf16.mxu0 0
  %518 = vmatpush1.bf16.msra.mxu0 %v496
  %519 = vmatprep.subr.bf16.mxu0 0
  %520 = vmatpush1.bf16.msra.mxu0 %v495
  %521 = vmatprep.subr.bf16.mxu0 0
  %522 = vmatpush1.bf16.msra.mxu0 %v494
  %523 = vmatprep.subr.bf16.mxu0 0
  %524 = vmatpush1.bf16.msra.mxu0 %v493
  %525 = vmatprep.subr.bf16.mxu0 0
  %526 = vmatpush1.bf16.msra.mxu0 %v492
  %527 = vmatprep.subr.bf16.mxu0 0
  %528 = vmatpush2.bf16.msra.mxu0 0
  %529 = vmatprep.subr.bf16.mxu0 0
  %530 = vmatpush2.bf16.msra.mxu0 0
  %531 = vmatprep.subr.bf16.mxu0 0
  %532 = vmatpush2.bf16.msra.mxu0 0
  %533 = vmatprep.subr.bf16.mxu0 0
  %534 = vmatpush2.bf16.msra.mxu0 0
  %535 = vmatprep.subr.bf16.mxu0 0
  %536 = vmatpush2.bf16.msra.mxu0 0
  %537 = vmatprep.subr.bf16.mxu0 0
  %538 = vmatpush2.bf16.msra.mxu0 0
  %539 = vmatprep.subr.bf16.mxu0 0
  %540 = vmatpush2.bf16.msra.mxu0 0
  %541 = vmatprep.subr.bf16.mxu0 0
  %542 = vmatpush2.bf16.msra.mxu0 0
  %543 = vmatprep.mubr.bf16.mxu0 0
  %544 = vmatmul.mubr.bf16.gmra.mxu0 %v505
  %v545 = vpop.f32.mrf.mxu0
  %v546 = vadd.f32 %v468, %v545
  %v547 = vpop.f32.mrf.mxu0
  %v548 = vpop.f32.mrf.mxu0
  %v549 = vpop.f32.mrf.mxu0
  %550 = vdwg.mxu0
  %vm551 = vcmask 80896
  %552 = vst.msk [vmem:[%s7] sm:$0xff] %vm551, %v546
  // Predicated region
  $region30: #{convnet_forward.5} parent=0 // pred_check
    _
  $region31: #{convnet_forward.5} parent=0 // pred_check_branch
    %554 = sbr.rel (0) target = $region33
  $region32: #{convnet_forward.5} parent=0 // pred_region
    _
  $region33: #{convnet_forward.5} parent=0 // pred_fallthru
    _
  // Predicated region
  $region34: #{convnet_forward.5} parent=0 // pred_check
    _
  $region35: #{convnet_forward.5} parent=0 // pred_check_branch
    %556 = sbr.rel (0) target = $region37
  $region36: #{convnet_forward.5} parent=0 // pred_region
    _
  $region37: #{convnet_forward.5} parent=0 // pred_fallthru
    _

</llo_original>
